<compile_context>
chip_gen: v7x
topology: tpu7x:2x2x1
jax: 0.10.0
libtpu: 0.0.40
codegen_flags: <defaults>
</compile_context>

<pallas_src>
import functools
import math

import jax
import jax.numpy as jnp
from jax.experimental import pallas as pl
from jax.experimental.pallas import tpu as pltpu

LOG_2PI = math.log(2.0 * math.pi)
_LANE = 128


def _round_up(v, m):
    return ((v + m - 1) // m) * m


def aesmc_block_kernel(x_ref, eps_ref, z0_ref, phiz0_ref, expand_ref,
                       W_enc_ref, b_enc_ref,
                       Wz_ref, bz_ref, Wpz_ref, Wpx_ref,
                       W_phiz_ref, b_phiz_ref,
                       W_em_ref, b_em_ref, em_inv_std_ref,
                       cz_prior_ref, c_obs_ref, logw_const_ref,
                       logw_ref, z_all_ref,
                       z_scr, phiz_scr,
                       *, z_dim, obs_dim, hp, t_block):
    tb = pl.program_id(0)

    # Initialize the carried latent state at the first time block only; scratch
    # persists across grid iterations along the (arbitrary) time-block axis.
    @pl.when(tb == 0)
    def _():
        z_scr[...] = z0_ref[...]
        phiz_scr[...] = phiz0_ref[...]

    expand = expand_ref[...]                      # [N, B] one-hot particle expansion
    ones_z = jnp.ones((z_dim, 1), jnp.float32)
    logw_const = logw_const_ref[...]              # [1, 1]

    z = z_scr[...]                                # [N, z_dim]
    phi_z = phiz_scr[...]                         # [N, phi_z_dim]

    # Static (fully unrolled) loop over the time block — equivalent to
    # lax.fori_loop(..., unroll=True); gives the LLO scheduler visibility over
    # all Tt iterations of tiny MXU pushes / EUP softplus+log ops.
    for tt in range(t_block):
        x_b = x_ref[tt]                           # [B, obs_dim]
        eps_t = eps_ref[tt]                       # [N, z_dim]

        # Fused prev_z matmul: transition (mu | prestd) and proposal (mu | prestd)
        # heads, each padded to a 128-lane boundary -> all head slices are
        # vreg-aligned (no cross-lane rotates).
        h4 = (jnp.dot(z, Wz_ref[...], preferred_element_type=jnp.float32)
              + bz_ref[...])                      # [N, 4*hp]
        mu_p = h4[:, 0:z_dim]
        std_p = jax.nn.softplus(h4[:, hp:hp + z_dim])
        h_q = h4[:, 2 * hp:4 * hp]                # proposal heads (bias already added)

        # Encoding network on the B un-broadcast observation rows.
        phi_x_b = jnp.maximum(
            jnp.dot(x_b, W_enc_ref[...], preferred_element_type=jnp.float32)
            + b_enc_ref[...], 0.0)                # [B, phi_x_dim]
        projx_b = jnp.dot(phi_x_b, Wpx_ref[...],
                          preferred_element_type=jnp.float32)     # [B, 2*hp]

        # Single particle-expansion matmul for both the proposal's observation
        # projection and the raw observation rows (concat at aligned offset 2*hp).
        cat_b = jnp.concatenate([projx_b, x_b], axis=1)           # [B, 2*hp + obs_dim]
        cat_n = jnp.dot(expand, cat_b,
                        preferred_element_type=jnp.float32)       # [N, 2*hp + obs_dim]
        x_rows = cat_n[:, 2 * hp:2 * hp + obs_dim]                # [N, obs_dim]

        h_q = (h_q + cat_n[:, 0:2 * hp]
               + jnp.dot(phi_z, Wpz_ref[...], preferred_element_type=jnp.float32))
        mu_q = h_q[:, 0:z_dim]
        std_q = jax.nn.softplus(h_q[:, hp:hp + z_dim])

        # Reparameterized sample.
        z = mu_q + std_q * eps_t

        # TODO(synk): approximate reciprocal is fine for forward IS estimates;
        # switch to exact division if this ever feeds IWAE gradients.
        zp = (z - mu_p) * pl.reciprocal(std_p, approx=True)

        # Deterministic transition and emission mean.
        phi_z = jnp.maximum(
            jnp.dot(z, W_phiz_ref[...], preferred_element_type=jnp.float32)
            + b_phiz_ref[...], 0.0)                               # [N, phi_z_dim]
        mu_x = (jnp.dot(phi_z, W_em_ref[...], preferred_element_type=jnp.float32)
                + b_em_ref[...])                                  # [N, obs_dim]
        zx = (x_rows - mu_x) * em_inv_std_ref[...]

        # log w = prior*log p(z|z_prev) + obs*log p(x|z) - log q(z|...).
        # (z - mu_q)/std_q == eps exactly.  Every cross-lane reduction is a dot
        # against a coefficient column (MXU) instead of an XLU reduce.
        term_p = -0.5 * zp * zp - jnp.log(std_p)                  # [N, z_dim]
        term_q = 0.5 * eps_t * eps_t + jnp.log(std_q)             # [N, z_dim]
        logw_col = (jnp.dot(term_p, cz_prior_ref[...], preferred_element_type=jnp.float32)
                    + jnp.dot(term_q, ones_z, preferred_element_type=jnp.float32)
                    + jnp.dot(zx * zx, c_obs_ref[...], preferred_element_type=jnp.float32)
                    + logw_const)                                 # [N, 1]

        # Time sits on the lane axis of the logw block: the [N,1] column lands at
        # lane tt with no per-step sublane->lane relayout.
        logw_ref[0, :, tt:tt + 1] = logw_col
        z_all_ref[tt] = z

    # Carry the latent state to the next time block.
    z_scr[...] = z
    phiz_scr[...] = phi_z


def _choose_time_block(T, B, N, obs_dim, z_dim, max_tt=16, budget_bytes=4 << 20):
    # Bytes streamed per timestep (x + eps in, z + logw out).  A small per-block
    # budget keeps the double-buffered streams well inside v7x's 64 MiB physical
    # VMEM (and the 16/32 MiB scoped defaults on v5e/v6e).
    per_step = 4 * (B * obs_dim + 2 * N * z_dim + N)
    tt = max(1, min(max_tt, budget_bytes // max(per_step, 1)))
    return int(min(tt, T))


def run_aesmc_kernel(params, x, eps, z0, observation_coef, prior_coef):
    """x: [T, B, obs_dim] (NOT particle-broadcast), eps: [T, N, z_dim], z0: [N, z_dim]."""
    T, B, obs_dim = x.shape
    _, N, z_dim = eps.shape
    phi_z_dim = params["W_phiz"].shape[1]
    K = N // B
    hp = _round_up(z_dim, _LANE)     # per-head lane padding -> vreg-aligned slices
    f32 = jnp.float32

    prior_c = jnp.asarray(prior_coef, f32)
    obs_c = jnp.asarray(observation_coef, f32)

    # ---- host/XLA-side packing, hoisted out of the kernel (once per call) ----
    def pad_heads(w_mu, w_std):
        d_in = w_mu.shape[0]
        w = jnp.zeros((d_in, 2 * hp), f32)
        return w.at[:, 0:z_dim].set(w_mu).at[:, hp:hp + z_dim].set(w_std)

    Wz_fused = jnp.concatenate([pad_heads(params["W_trans_mu"], params["W_trans_std"]),
                                pad_heads(params["Wq_z_mu"], params["Wq_z_std"])], axis=1)
    bz_fused = jnp.concatenate([pad_heads(params["b_trans_mu"], params["b_trans_std"]),
                                pad_heads(params["bq_mu"], params["bq_std"])], axis=1)
    Wpz_fused = pad_heads(params["Wq_pz_mu"], params["Wq_pz_std"])
    Wpx_fused = pad_heads(params["Wq_px_mu"], params["Wq_px_std"])

    em_inv_std = jnp.exp(-params["em_logstd"])                       # 1 / std_x
    phiz0 = jnp.maximum(z0 @ params["W_phiz"] + params["b_phiz"], 0.0)
    expand = jnp.repeat(jnp.eye(B, dtype=f32), K, axis=0)            # [N, B]

    # Coefficients enter as data (reduction columns + additive constant), so
    # changing observation_coef / prior_coef never retraces the kernel.
    cz_prior = prior_c * jnp.ones((z_dim, 1), f32)
    c_obs = (-0.5 * obs_c) * jnp.ones((obs_dim, 1), f32)
    logw_const = jnp.reshape(
        -0.5 * LOG_2PI * (prior_c * z_dim + obs_c * obs_dim - z_dim)
        - obs_c * jnp.sum(params["em_logstd"]), (1, 1)).astype(f32)

    # ---- time blocking ----
    t_block = _choose_time_block(T, B, N, obs_dim, z_dim)
    nblk = -(-T // t_block)
    T_pad = nblk * t_block
    if T_pad != T:
        x = jnp.pad(x, ((0, T_pad - T), (0, 0), (0, 0)))
        eps = jnp.pad(eps, ((0, T_pad - T), (0, 0), (0, 0)))

    inputs = (x, eps, z0, phiz0, expand,
              params["W_enc"], params["b_enc"],
              Wz_fused, bz_fused, Wpz_fused, Wpx_fused,
              params["W_phiz"], params["b_phiz"],
              params["W_em"], params["b_em"], em_inv_std,
              cz_prior, c_obs, logw_const)

    # Small weights/constants live whole in VMEM (no per-step double-buffering).
    in_specs = ([pl.BlockSpec((t_block, B, obs_dim), lambda t: (t, 0, 0)),   # x block
                 pl.BlockSpec((t_block, N, z_dim), lambda t: (t, 0, 0))]     # eps block
                + [pl.BlockSpec(memory_space=pltpu.MemorySpace.VMEM)
                   for _ in range(len(inputs) - 2)])

    kernel = functools.partial(aesmc_block_kernel, z_dim=z_dim, obs_dim=obs_dim,
                               hp=hp, t_block=t_block)

    logw_raw, z_all = pl.pallas_call(
        kernel,
        out_shape=(jax.ShapeDtypeStruct((nblk, N, t_block), f32),
                   jax.ShapeDtypeStruct((T_pad, N, z_dim), f32)),
        grid=(nblk,),
        in_specs=in_specs,
        out_specs=(pl.BlockSpec((1, N, t_block), lambda t: (t, 0, 0)),
                   pl.BlockSpec((t_block, N, z_dim), lambda t: (t, 0, 0))),
        scratch_shapes=[pltpu.VMEM((N, z_dim), f32),
                        pltpu.VMEM((N, phi_z_dim), f32)],
        compiler_params=pltpu.CompilerParams(
            dimension_semantics=("arbitrary",),      # time blocks carry scratch state
            vmem_limit_bytes=32 * 1024 * 1024),
    )(*inputs)

    # [nblk, N, t_block] -> [T, N] (tiny host-side relayout, outside the kernel).
    logw = logw_raw.transpose(1, 0, 2).reshape(N, T_pad)[:, :T].T
    return logw, z_all[:T]


def init_params(key, obs_dim, phi_x_dim, z_dim, phi_z_dim, scale=0.1):
    ks = jax.random.split(key, 11)
    n = lambda k, s: scale * jax.random.normal(k, s, jnp.float32)
    zeros = lambda s: jnp.zeros(s, jnp.float32)
    return dict(
        # encoding network phi_x(x)
        W_enc=n(ks[0], (obs_dim, phi_x_dim)), b_enc=zeros((1, phi_x_dim)),
        # transition network p(z_t | z_{t-1}): mean and pre-softplus-std heads
        W_trans_mu=n(ks[1], (z_dim, z_dim)), W_trans_std=n(ks[2], (z_dim, z_dim)),
        b_trans_mu=zeros((1, z_dim)), b_trans_std=zeros((1, z_dim)),
        # proposal network q(z_t | z_{t-1}, phi_z_{t-1}, phi_x_t) (concat inputs)
        Wq_z_mu=n(ks[3], (z_dim, z_dim)), Wq_z_std=n(ks[4], (z_dim, z_dim)),
        Wq_pz_mu=n(ks[5], (phi_z_dim, z_dim)), Wq_pz_std=n(ks[6], (phi_z_dim, z_dim)),
        Wq_px_mu=n(ks[7], (phi_x_dim, z_dim)), Wq_px_std=n(ks[8], (phi_x_dim, z_dim)),
        bq_mu=zeros((1, z_dim)), bq_std=zeros((1, z_dim)),
        # deterministic transition network phi_z(z)
        W_phiz=n(ks[9], (z_dim, phi_z_dim)), b_phiz=zeros((1, phi_z_dim)),
        # emission network p(x_t | z_t)
        W_em=n(ks[10], (phi_z_dim, obs_dim)), b_em=zeros((1, obs_dim)),
        em_logstd=zeros((1, obs_dim)),
    )


class AutoEncoder:
    """JAX/Pallas re-implementation of the AESMC AutoEncoder forward pass (IS/IWAE)."""

    def __init__(self, params, z_dim):
        self.params = params
        self.z_dim = z_dim

    def forward(self, observation_states, num_particles, resample,
                previous_latent_state=None, observation_coef=1.0, prior_coef=1.0,
                rng_key=None):
        if resample:
            # TODO(synk): ancestral (multinomial) resampling for the SMC path has
            # no clean in-kernel equivalent here; only the 'is' path is implemented.
            raise NotImplementedError("resample=True (SMC) path not implemented")

        all_x = observation_states["all_x"]              # [T, B, C, H, W]
        T, B, C, H, W = all_x.shape
        obs_dim = C * H * W
        K = num_particles
        N = B * K

        # Observations stay un-broadcast: [T, B, obs_dim]; the kernel expands to
        # particle rows internally (saves K x HBM traffic on the largest input).
        x = all_x.reshape(T, B, obs_dim).astype(jnp.float32)

        if rng_key is None:
            rng_key = jax.random.PRNGKey(1)              # pass a fresh key per call
        eps = jax.random.normal(rng_key, (T, N, self.z_dim), jnp.float32)
        # TODO(synk): generate eps in-kernel (pltpu.prng_*) to drop this input stream.

        if previous_latent_state is None:
            z0 = jnp.zeros((N, self.z_dim), jnp.float32)
        else:
            z0 = jnp.asarray(previous_latent_state, jnp.float32).reshape(N, self.z_dim)

        logw, z_all = run_aesmc_kernel(self.params, x, eps, z0,
                                       observation_coef, prior_coef)

        log_weights = logw.reshape(T, B, K)                      # per-step log weights
        log_weight = jnp.sum(log_weights, axis=0)                # [B, K]
        log_marginal_likelihood = (jax.nn.logsumexp(log_weight, axis=-1)
                                   - jnp.log(float(K)))          # [B]
        original_latent_states = z_all.reshape(T, B, K, self.z_dim)

        return dict(
            log_marginal_likelihood=log_marginal_likelihood,
            log_weights=log_weights,
            log_weight=log_weight,
            original_latent_states=original_latent_states,
            latent_states=original_latent_states,   # no resampling (IS path)
            ancestral_indices=None,
            num_killed_particles=None,
        )


if __name__ == "__main__":
    # Small, deterministic example consistent with all_x: [T, B, C, H, W].
    T, B, C, H, W = 4, 2, 1, 8, 8
    obs_dim = C * H * W          # 64
    phi_x_dim, z_dim, phi_z_dim = 32, 16, 32
    num_particles = 8

    key = jax.random.PRNGKey(0)
    k_obs, k_par, k_eps = jax.random.split(key, 3)
    all_x = jax.random.normal(k_obs, (T, B, C, H, W), jnp.float32)
    params = init_params(k_par, obs_dim, phi_x_dim, z_dim, phi_z_dim)

    model = AutoEncoder(params, z_dim)
    result = model.forward(
        observation_states={"all_x": all_x},
        num_particles=num_particles,
        resample=False,
        previous_latent_state=None,
        observation_coef=1.0,
        prior_coef=1.0,
        rng_key=k_eps,
    )

    lml = jax.block_until_ready(result["log_marginal_likelihood"])
    jax.block_until_ready(result["log_weight"])
    jax.block_until_ready(result["original_latent_states"])
    assert bool(jnp.all(jnp.isfinite(lml)))
    assert bool(jnp.all(jnp.isfinite(result["log_weights"])))
    print("KERNEL_OK")
</pallas_src>

<mosaic_0001>
module attributes {stable_mosaic.version = 11 : i64} {
  func.func @aesmc_block_kernel(%arg0: i32, %arg1: memref<4x2x64xf32, #tpu.memory_space<vmem>>, %arg2: memref<4x16x16xf32, #tpu.memory_space<vmem>>, %arg3: memref<16x16xf32, #tpu.memory_space<vmem>>, %arg4: memref<16x32xf32, #tpu.memory_space<vmem>>, %arg5: memref<16x2xf32, #tpu.memory_space<vmem>>, %arg6: memref<64x32xf32, #tpu.memory_space<vmem>>, %arg7: memref<1x32xf32, #tpu.memory_space<vmem>>, %arg8: memref<16x512xf32, #tpu.memory_space<vmem>>, %arg9: memref<1x512xf32, #tpu.memory_space<vmem>>, %arg10: memref<32x256xf32, #tpu.memory_space<vmem>>, %arg11: memref<32x256xf32, #tpu.memory_space<vmem>>, %arg12: memref<16x32xf32, #tpu.memory_space<vmem>>, %arg13: memref<1x32xf32, #tpu.memory_space<vmem>>, %arg14: memref<32x64xf32, #tpu.memory_space<vmem>>, %arg15: memref<1x64xf32, #tpu.memory_space<vmem>>, %arg16: memref<1x64xf32, #tpu.memory_space<vmem>>, %arg17: memref<16x1xf32, #tpu.memory_space<vmem>>, %arg18: memref<64x1xf32, #tpu.memory_space<vmem>>, %arg19: memref<1x1xf32, #tpu.memory_space<vmem>>, %arg20: memref<1x16x4xf32, #tpu.memory_space<vmem>>, %arg21: memref<4x16x16xf32, #tpu.memory_space<vmem>>, %arg22: memref<16x16xf32, #tpu.memory_space<vmem>>, %arg23: memref<16x32xf32, #tpu.memory_space<vmem>>) attributes {dimension_semantics = [#tpu.dimension_semantics<arbitrary>], iteration_bounds = array<i64: 1>, scalar_prefetch = 0 : i64, scratch_operands = 2 : i64, tpu.core_type = #tpu.core_type<tc>, window_params = [{transform_indices = @transform_0, window_bounds = array<i64: 4, 2, 64>}, {transform_indices = @transform_1, window_bounds = array<i64: 4, 16, 16>}, {pipeline_mode = #tpu.pipeline_mode<synchronous>, transform_indices = @transform_2, window_bounds = array<i64: 16, 16>}, {pipeline_mode = #tpu.pipeline_mode<synchronous>, transform_indices = @transform_3, window_bounds = array<i64: 16, 32>}, {pipeline_mode = #tpu.pipeline_mode<synchronous>, transform_indices = @transform_4, window_bounds = array<i64: 16, 2>}, {pipeline_mode = #tpu.pipeline_mode<synchronous>, transform_indices = @transform_5, window_bounds = array<i64: 64, 32>}, {pipeline_mode = #tpu.pipeline_mode<synchronous>, transform_indices = @transform_6, window_bounds = array<i64: 1, 32>}, {pipeline_mode = #tpu.pipeline_mode<synchronous>, transform_indices = @transform_7, window_bounds = array<i64: 16, 512>}, {pipeline_mode = #tpu.pipeline_mode<synchronous>, transform_indices = @transform_8, window_bounds = array<i64: 1, 512>}, {pipeline_mode = #tpu.pipeline_mode<synchronous>, transform_indices = @transform_9, window_bounds = array<i64: 32, 256>}, {pipeline_mode = #tpu.pipeline_mode<synchronous>, transform_indices = @transform_10, window_bounds = array<i64: 32, 256>}, {pipeline_mode = #tpu.pipeline_mode<synchronous>, transform_indices = @transform_11, window_bounds = array<i64: 16, 32>}, {pipeline_mode = #tpu.pipeline_mode<synchronous>, transform_indices = @transform_12, window_bounds = array<i64: 1, 32>}, {pipeline_mode = #tpu.pipeline_mode<synchronous>, transform_indices = @transform_13, window_bounds = array<i64: 32, 64>}, {pipeline_mode = #tpu.pipeline_mode<synchronous>, transform_indices = @transform_14, window_bounds = array<i64: 1, 64>}, {pipeline_mode = #tpu.pipeline_mode<synchronous>, transform_indices = @transform_15, window_bounds = array<i64: 1, 64>}, {pipeline_mode = #tpu.pipeline_mode<synchronous>, transform_indices = @transform_16, window_bounds = array<i64: 16, 1>}, {pipeline_mode = #tpu.pipeline_mode<synchronous>, transform_indices = @transform_17, window_bounds = array<i64: 64, 1>}, {pipeline_mode = #tpu.pipeline_mode<synchronous>, transform_indices = @transform_18, window_bounds = array<i64: 1, 1>}, {transform_indices = @transform_19, window_bounds = array<i64: 1, 16, 4>}, {transform_indices = @transform_20, window_bounds = array<i64: 4, 16, 16>}]} {
    %c0_i32 = arith.constant 0 : i32
    %0 = arith.cmpi eq, %arg0, %c0_i32 : i32
    %1 = arith.extui %0 : i1 to i32
    %c0_i32_0 = arith.constant 0 : i32
    %2 = arith.cmpi ne, %1, %c0_i32_0 : i32
    scf.if %2 {
      %c0_233 = arith.constant 0 : index
      %c0_234 = arith.constant 0 : index
      %434 = vector.load %arg3[%c0_233, %c0_234] : memref<16x16xf32, #tpu.memory_space<vmem>>, vector<16x16xf32>
      %c0_235 = arith.constant 0 : index
      %c0_236 = arith.constant 0 : index
      %435 = vector.load %arg22[%c0_235, %c0_236] : memref<16x16xf32, #tpu.memory_space<vmem>>, vector<16x16xf32>
      tpu.vector_store %arg22[%c0_235, %c0_236], %434 {strides = array<i32>} : memref<16x16xf32, #tpu.memory_space<vmem>>, vector<16x16xf32>,
      %c0_237 = arith.constant 0 : index
      %c0_238 = arith.constant 0 : index
      %436 = vector.load %arg4[%c0_237, %c0_238] : memref<16x32xf32, #tpu.memory_space<vmem>>, vector<16x32xf32>
      %c0_239 = arith.constant 0 : index
      %c0_240 = arith.constant 0 : index
      %437 = vector.load %arg23[%c0_239, %c0_240] : memref<16x32xf32, #tpu.memory_space<vmem>>, vector<16x32xf32>
      tpu.vector_store %arg23[%c0_239, %c0_240], %436 {strides = array<i32>} : memref<16x32xf32, #tpu.memory_space<vmem>>, vector<16x32xf32>,
    } else {
    }
    %c0 = arith.constant 0 : index
    %c0_1 = arith.constant 0 : index
    %3 = vector.load %arg5[%c0, %c0_1] : memref<16x2xf32, #tpu.memory_space<vmem>>, vector<16x2xf32>
    %cst = arith.constant 1.000000e+00 : f32
    %4 = vector.broadcast %cst : f32 to vector<16x1xf32>
    %c0_2 = arith.constant 0 : index
    %c0_3 = arith.constant 0 : index
    %5 = vector.load %arg19[%c0_2, %c0_3] : memref<1x1xf32, #tpu.memory_space<vmem>>, vector<1x1xf32>
    %c0_4 = arith.constant 0 : index
    %c0_5 = arith.constant 0 : index
    %6 = vector.load %arg22[%c0_4, %c0_5] : memref<16x16xf32, #tpu.memory_space<vmem>>, vector<16x16xf32>
    %c0_6 = arith.constant 0 : index
    %c0_7 = arith.constant 0 : index
    %7 = vector.load %arg23[%c0_6, %c0_7] : memref<16x32xf32, #tpu.memory_space<vmem>>, vector<16x32xf32>
    %c0_8 = arith.constant 0 : index
    %c0_9 = arith.constant 0 : index
    %c0_10 = arith.constant 0 : index
    %8 = vector.load %arg1[%c0_8, %c0_9, %c0_10] : memref<4x2x64xf32, #tpu.memory_space<vmem>>, vector<1x2x64xf32>
    %9 = vector.shape_cast %8 : vector<1x2x64xf32> to vector<2x64xf32>
    %c0_11 = arith.constant 0 : index
    %c0_12 = arith.constant 0 : index
    %c0_13 = arith.constant 0 : index
    %10 = vector.load %arg2[%c0_11, %c0_12, %c0_13] : memref<4x16x16xf32, #tpu.memory_space<vmem>>, vector<1x16x16xf32>
    %11 = vector.shape_cast %10 : vector<1x16x16xf32> to vector<16x16xf32>
    %c0_14 = arith.constant 0 : index
    %c0_15 = arith.constant 0 : index
    %12 = vector.load %arg8[%c0_14, %c0_15] : memref<16x512xf32, #tpu.memory_space<vmem>>, vector<16x512xf32>
    %cst_16 = arith.constant dense<0.000000e+00> : vector<16x512xf32>
    %13 = tpu.matmul %6, %12, %cst_16 {dimension_numbers = #tpu.dot_dimension_numbers<[1], [0], [0], [1], [0, 0, 1, 1], [], []>} : vector<16x16xf32>, vector<16x512xf32>, vector<16x512xf32> -> vector<16x512xf32>
    %c0_17 = arith.constant 0 : index
    %c0_18 = arith.constant 0 : index
    %14 = vector.load %arg9[%c0_17, %c0_18] : memref<1x512xf32, #tpu.memory_space<vmem>>, vector<1x512xf32>
    %15 = vector.broadcast %14 : vector<1x512xf32> to vector<16x512xf32>
    %16 = arith.addf %13, %15 : vector<16x512xf32>
    %17 = vector.extract_strided_slice %16 {offsets = [0, 0], sizes = [16, 16], strides = [1, 1]} : vector<16x512xf32> to vector<16x16xf32>
    %18 = vector.extract_strided_slice %16 {offsets = [0, 128], sizes = [16, 16], strides = [1, 1]} : vector<16x512xf32> to vector<16x16xf32>
    %cst_19 = arith.constant 0.000000e+00 : f32
    %19 = vector.broadcast %cst_19 : f32 to vector<16x16xf32>
    %20 = arith.maximumf %18, %19 : vector<16x16xf32>
    %21 = vector.broadcast %cst_19 : f32 to vector<16x16xf32>
    %22 = arith.subf %18, %21 : vector<16x16xf32>
    %23 = arith.cmpf one, %22, %22 : vector<16x16xf32>
    %24 = vector.broadcast %cst_19 : f32 to vector<16x16xf32>
    %25 = arith.addf %18, %24 : vector<16x16xf32>
    %26 = math.absf %22 : vector<16x16xf32>
    %cst_20 = arith.constant 0.000000e+00 : f32
    %27 = vector.broadcast %cst_20 : f32 to vector<16x16xf32>
    %28 = arith.subf %27, %26 : vector<16x16xf32>
    %29 = math.exp %28 : vector<16x16xf32>
    %30 = math.log1p %29 : vector<16x16xf32>
    %31 = arith.addf %20, %30 : vector<16x16xf32>
    %32 = arith.select %23, %25, %31 : vector<16x16xi1>, vector<16x16xf32>
    %33 = vector.extract_strided_slice %16 {offsets = [0, 256], sizes = [16, 256], strides = [1, 1]} : vector<16x512xf32> to vector<16x256xf32>
    %c0_21 = arith.constant 0 : index
    %c0_22 = arith.constant 0 : index
    %34 = vector.load %arg6[%c0_21, %c0_22] : memref<64x32xf32, #tpu.memory_space<vmem>>, vector<64x32xf32>
    %cst_23 = arith.constant dense<0.000000e+00> : vector<2x32xf32>
    %35 = tpu.matmul %9, %34, %cst_23 {dimension_numbers = #tpu.dot_dimension_numbers<[1], [0], [0], [1], [0, 0, 1, 1], [], []>} : vector<2x64xf32>, vector<64x32xf32>, vector<2x32xf32> -> vector<2x32xf32>
    %c0_24 = arith.constant 0 : index
    %c0_25 = arith.constant 0 : index
    %36 = vector.load %arg7[%c0_24, %c0_25] : memref<1x32xf32, #tpu.memory_space<vmem>>, vector<1x32xf32>
    %37 = vector.broadcast %36 : vector<1x32xf32> to vector<2x32xf32>
    %38 = arith.addf %35, %37 : vector<2x32xf32>
    %cst_26 = arith.constant 0.000000e+00 : f32
    %39 = vector.broadcast %cst_26 : f32 to vector<2x32xf32>
    %40 = arith.maximumf %38, %39 : vector<2x32xf32>
    %c0_27 = arith.constant 0 : index
    %c0_28 = arith.constant 0 : index
    %41 = vector.load %arg11[%c0_27, %c0_28] : memref<32x256xf32, #tpu.memory_space<vmem>>, vector<32x256xf32>
    %cst_29 = arith.constant dense<0.000000e+00> : vector<2x256xf32>
    %42 = tpu.matmul %40, %41, %cst_29 {dimension_numbers = #tpu.dot_dimension_numbers<[1], [0], [0], [1], [0, 0, 1, 1], [], []>} : vector<2x32xf32>, vector<32x256xf32>, vector<2x256xf32> -> vector<2x256xf32>
    %43 = tpu.concatenate %42, %9 in 1 : vector<2x256xf32>, vector<2x64xf32> -> vector<2x320xf32>
    %cst_30 = arith.constant dense<0.000000e+00> : vector<16x320xf32>
    %44 = tpu.matmul %3, %43, %cst_30 {dimension_numbers = #tpu.dot_dimension_numbers<[1], [0], [0], [1], [0, 0, 1, 1], [], []>} : vector<16x2xf32>, vector<2x320xf32>, vector<16x320xf32> -> vector<16x320xf32>
    %45 = vector.extract_strided_slice %44 {offsets = [0, 256], sizes = [16, 64], strides = [1, 1]} : vector<16x320xf32> to vector<16x64xf32>
    %46 = vector.extract_strided_slice %44 {offsets = [0, 0], sizes = [16, 256], strides = [1, 1]} : vector<16x320xf32> to vector<16x256xf32>
    %47 = arith.addf %33, %46 : vector<16x256xf32>
    %c0_31 = arith.constant 0 : index
    %c0_32 = arith.constant 0 : index
    %48 = vector.load %arg10[%c0_31, %c0_32] : memref<32x256xf32, #tpu.memory_space<vmem>>, vector<32x256xf32>
    %cst_33 = arith.constant dense<0.000000e+00> : vector<16x256xf32>
    %49 = tpu.matmul %7, %48, %cst_33 {dimension_numbers = #tpu.dot_dimension_numbers<[1], [0], [0], [1], [0, 0, 1, 1], [], []>} : vector<16x32xf32>, vector<32x256xf32>, vector<16x256xf32> -> vector<16x256xf32>
    %50 = arith.addf %47, %49 : vector<16x256xf32>
    %51 = vector.extract_strided_slice %50 {offsets = [0, 0], sizes = [16, 16], strides = [1, 1]} : vector<16x256xf32> to vector<16x16xf32>
    %52 = vector.extract_strided_slice %50 {offsets = [0, 128], sizes = [16, 16], strides = [1, 1]} : vector<16x256xf32> to vector<16x16xf32>
    %cst_34 = arith.constant 0.000000e+00 : f32
    %53 = vector.broadcast %cst_34 : f32 to vector<16x16xf32>
    %54 = arith.maximumf %52, %53 : vector<16x16xf32>
    %55 = vector.broadcast %cst_34 : f32 to vector<16x16xf32>
    %56 = arith.subf %52, %55 : vector<16x16xf32>
    %57 = arith.cmpf one, %56, %56 : vector<16x16xf32>
    %58 = vector.broadcast %cst_34 : f32 to vector<16x16xf32>
    %59 = arith.addf %52, %58 : vector<16x16xf32>
    %60 = math.absf %56 : vector<16x16xf32>
    %cst_35 = arith.constant 0.000000e+00 : f32
    %61 = vector.broadcast %cst_35 : f32 to vector<16x16xf32>
    %62 = arith.subf %61, %60 : vector<16x16xf32>
    %63 = math.exp %62 : vector<16x16xf32>
    %64 = math.log1p %63 : vector<16x16xf32>
    %65 = arith.addf %54, %64 : vector<16x16xf32>
    %66 = arith.select %57, %59, %65 : vector<16x16xi1>, vector<16x16xf32>
    %67 = arith.mulf %66, %11 : vector<16x16xf32>
    %68 = arith.addf %51, %67 : vector<16x16xf32>
    %69 = arith.subf %68, %17 : vector<16x16xf32>
    %70 = tpu.reciprocal %32 {approx = true} : vector<16x16xf32> -> vector<16x16xf32>
    %71 = arith.mulf %69, %70 : vector<16x16xf32>
    %c0_36 = arith.constant 0 : index
    %c0_37 = arith.constant 0 : index
    %72 = vector.load %arg12[%c0_36, %c0_37] : memref<16x32xf32, #tpu.memory_space<vmem>>, vector<16x32xf32>
    %cst_38 = arith.constant dense<0.000000e+00> : vector<16x32xf32>
    %73 = tpu.matmul %68, %72, %cst_38 {dimension_numbers = #tpu.dot_dimension_numbers<[1], [0], [0], [1], [0, 0, 1, 1], [], []>} : vector<16x16xf32>, vector<16x32xf32>, vector<16x32xf32> -> vector<16x32xf32>
    %c0_39 = arith.constant 0 : index
    %c0_40 = arith.constant 0 : index
    %74 = vector.load %arg13[%c0_39, %c0_40] : memref<1x32xf32, #tpu.memory_space<vmem>>, vector<1x32xf32>
    %75 = vector.broadcast %74 : vector<1x32xf32> to vector<16x32xf32>
    %76 = arith.addf %73, %75 : vector<16x32xf32>
    %cst_41 = arith.constant 0.000000e+00 : f32
    %77 = vector.broadcast %cst_41 : f32 to vector<16x32xf32>
    %78 = arith.maximumf %76, %77 : vector<16x32xf32>
    %c0_42 = arith.constant 0 : index
    %c0_43 = arith.constant 0 : index
    %79 = vector.load %arg14[%c0_42, %c0_43] : memref<32x64xf32, #tpu.memory_space<vmem>>, vector<32x64xf32>
    %cst_44 = arith.constant dense<0.000000e+00> : vector<16x64xf32>
    %80 = tpu.matmul %78, %79, %cst_44 {dimension_numbers = #tpu.dot_dimension_numbers<[1], [0], [0], [1], [0, 0, 1, 1], [], []>} : vector<16x32xf32>, vector<32x64xf32>, vector<16x64xf32> -> vector<16x64xf32>
    %c0_45 = arith.constant 0 : index
    %c0_46 = arith.constant 0 : index
    %81 = vector.load %arg15[%c0_45, %c0_46] : memref<1x64xf32, #tpu.memory_space<vmem>>, vector<1x64xf32>
    %82 = vector.broadcast %81 : vector<1x64xf32> to vector<16x64xf32>
    %83 = arith.addf %80, %82 : vector<16x64xf32>
    %84 = arith.subf %45, %83 : vector<16x64xf32>
    %c0_47 = arith.constant 0 : index
    %c0_48 = arith.constant 0 : index
    %85 = vector.load %arg16[%c0_47, %c0_48] : memref<1x64xf32, #tpu.memory_space<vmem>>, vector<1x64xf32>
    %86 = vector.broadcast %85 : vector<1x64xf32> to vector<16x64xf32>
    %87 = arith.mulf %84, %86 : vector<16x64xf32>
    %cst_49 = arith.constant -5.000000e-01 : f32
    %88 = vector.broadcast %cst_49 : f32 to vector<16x16xf32>
    %89 = arith.mulf %88, %71 : vector<16x16xf32>
    %90 = arith.mulf %89, %71 : vector<16x16xf32>
    %91 = math.log %32 : vector<16x16xf32>
    %92 = arith.subf %90, %91 : vector<16x16xf32>
    %cst_50 = arith.constant 5.000000e-01 : f32
    %93 = vector.broadcast %cst_50 : f32 to vector<16x16xf32>
    %94 = arith.mulf %93, %11 : vector<16x16xf32>
    %95 = arith.mulf %94, %11 : vector<16x16xf32>
    %96 = math.log %66 : vector<16x16xf32>
    %97 = arith.addf %95, %96 : vector<16x16xf32>
    %c0_51 = arith.constant 0 : index
    %c0_52 = arith.constant 0 : index
    %98 = vector.load %arg17[%c0_51, %c0_52] : memref<16x1xf32, #tpu.memory_space<vmem>>, vector<16x1xf32>
    %cst_53 = arith.constant dense<0.000000e+00> : vector<16x1xf32>
    %99 = tpu.matmul %92, %98, %cst_53 {dimension_numbers = #tpu.dot_dimension_numbers<[1], [0], [0], [1], [0, 0, 1, 1], [], []>} : vector<16x16xf32>, vector<16x1xf32>, vector<16x1xf32> -> vector<16x1xf32>
    %cst_54 = arith.constant dense<0.000000e+00> : vector<16x1xf32>
    %100 = tpu.matmul %97, %4, %cst_54 {dimension_numbers = #tpu.dot_dimension_numbers<[1], [0], [0], [1], [0, 0, 1, 1], [], []>} : vector<16x16xf32>, vector<16x1xf32>, vector<16x1xf32> -> vector<16x1xf32>
    %101 = arith.addf %99, %100 : vector<16x1xf32>
    %102 = arith.mulf %87, %87 : vector<16x64xf32>
    %c0_55 = arith.constant 0 : index
    %c0_56 = arith.constant 0 : index
    %103 = vector.load %arg18[%c0_55, %c0_56] : memref<64x1xf32, #tpu.memory_space<vmem>>, vector<64x1xf32>
    %cst_57 = arith.constant dense<0.000000e+00> : vector<16x1xf32>
    %104 = tpu.matmul %102, %103, %cst_57 {dimension_numbers = #tpu.dot_dimension_numbers<[1], [0], [0], [1], [0, 0, 1, 1], [], []>} : vector<16x64xf32>, vector<64x1xf32>, vector<16x1xf32> -> vector<16x1xf32>
    %105 = arith.addf %101, %104 : vector<16x1xf32>
    %106 = vector.broadcast %5 : vector<1x1xf32> to vector<16x1xf32>
    %107 = arith.addf %105, %106 : vector<16x1xf32>
    %c0_58 = arith.constant 0 : index
    %c0_59 = arith.constant 0 : index
    %c0_60 = arith.constant 0 : index
    %108 = vector.load %arg20[%c0_58, %c0_59, %c0_60] : memref<1x16x4xf32, #tpu.memory_space<vmem>>, vector<1x16x1xf32>
    %109 = vector.shape_cast %108 : vector<1x16x1xf32> to vector<16x1xf32>
    %110 = vector.shape_cast %107 : vector<16x1xf32> to vector<1x16x1xf32>
    tpu.vector_store %arg20[%c0_58, %c0_59, %c0_60], %110 {strides = array<i32>} : memref<1x16x4xf32, #tpu.memory_space<vmem>>, vector<1x16x1xf32>,
    %c0_61 = arith.constant 0 : index
    %c0_62 = arith.constant 0 : index
    %c0_63 = arith.constant 0 : index
    %111 = vector.load %arg21[%c0_61, %c0_62, %c0_63] : memref<4x16x16xf32, #tpu.memory_space<vmem>>, vector<1x16x16xf32>
    %112 = vector.shape_cast %111 : vector<1x16x16xf32> to vector<16x16xf32>
    %113 = vector.shape_cast %68 : vector<16x16xf32> to vector<1x16x16xf32>
    tpu.vector_store %arg21[%c0_61, %c0_62, %c0_63], %113 {strides = array<i32>} : memref<4x16x16xf32, #tpu.memory_space<vmem>>, vector<1x16x16xf32>,
    %c1 = arith.constant 1 : index
    %c0_64 = arith.constant 0 : index
    %c0_65 = arith.constant 0 : index
    %114 = vector.load %arg1[%c1, %c0_64, %c0_65] : memref<4x2x64xf32, #tpu.memory_space<vmem>>, vector<1x2x64xf32>
    %115 = vector.shape_cast %114 : vector<1x2x64xf32> to vector<2x64xf32>
    %c1_66 = arith.constant 1 : index
    %c0_67 = arith.constant 0 : index
    %c0_68 = arith.constant 0 : index
    %116 = vector.load %arg2[%c1_66, %c0_67, %c0_68] : memref<4x16x16xf32, #tpu.memory_space<vmem>>, vector<1x16x16xf32>
    %117 = vector.shape_cast %116 : vector<1x16x16xf32> to vector<16x16xf32>
    %c0_69 = arith.constant 0 : index
    %c0_70 = arith.constant 0 : index
    %118 = vector.load %arg8[%c0_69, %c0_70] : memref<16x512xf32, #tpu.memory_space<vmem>>, vector<16x512xf32>
    %cst_71 = arith.constant dense<0.000000e+00> : vector<16x512xf32>
    %119 = tpu.matmul %68, %118, %cst_71 {dimension_numbers = #tpu.dot_dimension_numbers<[1], [0], [0], [1], [0, 0, 1, 1], [], []>} : vector<16x16xf32>, vector<16x512xf32>, vector<16x512xf32> -> vector<16x512xf32>
    %c0_72 = arith.constant 0 : index
    %c0_73 = arith.constant 0 : index
    %120 = vector.load %arg9[%c0_72, %c0_73] : memref<1x512xf32, #tpu.memory_space<vmem>>, vector<1x512xf32>
    %121 = vector.broadcast %120 : vector<1x512xf32> to vector<16x512xf32>
    %122 = arith.addf %119, %121 : vector<16x512xf32>
    %123 = vector.extract_strided_slice %122 {offsets = [0, 0], sizes = [16, 16], strides = [1, 1]} : vector<16x512xf32> to vector<16x16xf32>
    %124 = vector.extract_strided_slice %122 {offsets = [0, 128], sizes = [16, 16], strides = [1, 1]} : vector<16x512xf32> to vector<16x16xf32>
    %cst_74 = arith.constant 0.000000e+00 : f32
    %125 = vector.broadcast %cst_74 : f32 to vector<16x16xf32>
    %126 = arith.maximumf %124, %125 : vector<16x16xf32>
    %127 = vector.broadcast %cst_74 : f32 to vector<16x16xf32>
    %128 = arith.subf %124, %127 : vector<16x16xf32>
    %129 = arith.cmpf one, %128, %128 : vector<16x16xf32>
    %130 = vector.broadcast %cst_74 : f32 to vector<16x16xf32>
    %131 = arith.addf %124, %130 : vector<16x16xf32>
    %132 = math.absf %128 : vector<16x16xf32>
    %cst_75 = arith.constant 0.000000e+00 : f32
    %133 = vector.broadcast %cst_75 : f32 to vector<16x16xf32>
    %134 = arith.subf %133, %132 : vector<16x16xf32>
    %135 = math.exp %134 : vector<16x16xf32>
    %136 = math.log1p %135 : vector<16x16xf32>
    %137 = arith.addf %126, %136 : vector<16x16xf32>
    %138 = arith.select %129, %131, %137 : vector<16x16xi1>, vector<16x16xf32>
    %139 = vector.extract_strided_slice %122 {offsets = [0, 256], sizes = [16, 256], strides = [1, 1]} : vector<16x512xf32> to vector<16x256xf32>
    %c0_76 = arith.constant 0 : index
    %c0_77 = arith.constant 0 : index
    %140 = vector.load %arg6[%c0_76, %c0_77] : memref<64x32xf32, #tpu.memory_space<vmem>>, vector<64x32xf32>
    %cst_78 = arith.constant dense<0.000000e+00> : vector<2x32xf32>
    %141 = tpu.matmul %115, %140, %cst_78 {dimension_numbers = #tpu.dot_dimension_numbers<[1], [0], [0], [1], [0, 0, 1, 1], [], []>} : vector<2x64xf32>, vector<64x32xf32>, vector<2x32xf32> -> vector<2x32xf32>
    %c0_79 = arith.constant 0 : index
    %c0_80 = arith.constant 0 : index
    %142 = vector.load %arg7[%c0_79, %c0_80] : memref<1x32xf32, #tpu.memory_space<vmem>>, vector<1x32xf32>
    %143 = vector.broadcast %142 : vector<1x32xf32> to vector<2x32xf32>
    %144 = arith.addf %141, %143 : vector<2x32xf32>
    %cst_81 = arith.constant 0.000000e+00 : f32
    %145 = vector.broadcast %cst_81 : f32 to vector<2x32xf32>
    %146 = arith.maximumf %144, %145 : vector<2x32xf32>
    %c0_82 = arith.constant 0 : index
    %c0_83 = arith.constant 0 : index
    %147 = vector.load %arg11[%c0_82, %c0_83] : memref<32x256xf32, #tpu.memory_space<vmem>>, vector<32x256xf32>
    %cst_84 = arith.constant dense<0.000000e+00> : vector<2x256xf32>
    %148 = tpu.matmul %146, %147, %cst_84 {dimension_numbers = #tpu.dot_dimension_numbers<[1], [0], [0], [1], [0, 0, 1, 1], [], []>} : vector<2x32xf32>, vector<32x256xf32>, vector<2x256xf32> -> vector<2x256xf32>
    %149 = tpu.concatenate %148, %115 in 1 : vector<2x256xf32>, vector<2x64xf32> -> vector<2x320xf32>
    %cst_85 = arith.constant dense<0.000000e+00> : vector<16x320xf32>
    %150 = tpu.matmul %3, %149, %cst_85 {dimension_numbers = #tpu.dot_dimension_numbers<[1], [0], [0], [1], [0, 0, 1, 1], [], []>} : vector<16x2xf32>, vector<2x320xf32>, vector<16x320xf32> -> vector<16x320xf32>
    %151 = vector.extract_strided_slice %150 {offsets = [0, 256], sizes = [16, 64], strides = [1, 1]} : vector<16x320xf32> to vector<16x64xf32>
    %152 = vector.extract_strided_slice %150 {offsets = [0, 0], sizes = [16, 256], strides = [1, 1]} : vector<16x320xf32> to vector<16x256xf32>
    %153 = arith.addf %139, %152 : vector<16x256xf32>
    %c0_86 = arith.constant 0 : index
    %c0_87 = arith.constant 0 : index
    %154 = vector.load %arg10[%c0_86, %c0_87] : memref<32x256xf32, #tpu.memory_space<vmem>>, vector<32x256xf32>
    %cst_88 = arith.constant dense<0.000000e+00> : vector<16x256xf32>
    %155 = tpu.matmul %78, %154, %cst_88 {dimension_numbers = #tpu.dot_dimension_numbers<[1], [0], [0], [1], [0, 0, 1, 1], [], []>} : vector<16x32xf32>, vector<32x256xf32>, vector<16x256xf32> -> vector<16x256xf32>
    %156 = arith.addf %153, %155 : vector<16x256xf32>
    %157 = vector.extract_strided_slice %156 {offsets = [0, 0], sizes = [16, 16], strides = [1, 1]} : vector<16x256xf32> to vector<16x16xf32>
    %158 = vector.extract_strided_slice %156 {offsets = [0, 128], sizes = [16, 16], strides = [1, 1]} : vector<16x256xf32> to vector<16x16xf32>
    %cst_89 = arith.constant 0.000000e+00 : f32
    %159 = vector.broadcast %cst_89 : f32 to vector<16x16xf32>
    %160 = arith.maximumf %158, %159 : vector<16x16xf32>
    %161 = vector.broadcast %cst_89 : f32 to vector<16x16xf32>
    %162 = arith.subf %158, %161 : vector<16x16xf32>
    %163 = arith.cmpf one, %162, %162 : vector<16x16xf32>
    %164 = vector.broadcast %cst_89 : f32 to vector<16x16xf32>
    %165 = arith.addf %158, %164 : vector<16x16xf32>
    %166 = math.absf %162 : vector<16x16xf32>
    %cst_90 = arith.constant 0.000000e+00 : f32
    %167 = vector.broadcast %cst_90 : f32 to vector<16x16xf32>
    %168 = arith.subf %167, %166 : vector<16x16xf32>
    %169 = math.exp %168 : vector<16x16xf32>
    %170 = math.log1p %169 : vector<16x16xf32>
    %171 = arith.addf %160, %170 : vector<16x16xf32>
    %172 = arith.select %163, %165, %171 : vector<16x16xi1>, vector<16x16xf32>
    %173 = arith.mulf %172, %117 : vector<16x16xf32>
    %174 = arith.addf %157, %173 : vector<16x16xf32>
    %175 = arith.subf %174, %123 : vector<16x16xf32>
    %176 = tpu.reciprocal %138 {approx = true} : vector<16x16xf32> -> vector<16x16xf32>
    %177 = arith.mulf %175, %176 : vector<16x16xf32>
    %c0_91 = arith.constant 0 : index
    %c0_92 = arith.constant 0 : index
    %178 = vector.load %arg12[%c0_91, %c0_92] : memref<16x32xf32, #tpu.memory_space<vmem>>, vector<16x32xf32>
    %cst_93 = arith.constant dense<0.000000e+00> : vector<16x32xf32>
    %179 = tpu.matmul %174, %178, %cst_93 {dimension_numbers = #tpu.dot_dimension_numbers<[1], [0], [0], [1], [0, 0, 1, 1], [], []>} : vector<16x16xf32>, vector<16x32xf32>, vector<16x32xf32> -> vector<16x32xf32>
    %c0_94 = arith.constant 0 : index
    %c0_95 = arith.constant 0 : index
    %180 = vector.load %arg13[%c0_94, %c0_95] : memref<1x32xf32, #tpu.memory_space<vmem>>, vector<1x32xf32>
    %181 = vector.broadcast %180 : vector<1x32xf32> to vector<16x32xf32>
    %182 = arith.addf %179, %181 : vector<16x32xf32>
    %cst_96 = arith.constant 0.000000e+00 : f32
    %183 = vector.broadcast %cst_96 : f32 to vector<16x32xf32>
    %184 = arith.maximumf %182, %183 : vector<16x32xf32>
    %c0_97 = arith.constant 0 : index
    %c0_98 = arith.constant 0 : index
    %185 = vector.load %arg14[%c0_97, %c0_98] : memref<32x64xf32, #tpu.memory_space<vmem>>, vector<32x64xf32>
    %cst_99 = arith.constant dense<0.000000e+00> : vector<16x64xf32>
    %186 = tpu.matmul %184, %185, %cst_99 {dimension_numbers = #tpu.dot_dimension_numbers<[1], [0], [0], [1], [0, 0, 1, 1], [], []>} : vector<16x32xf32>, vector<32x64xf32>, vector<16x64xf32> -> vector<16x64xf32>
    %c0_100 = arith.constant 0 : index
    %c0_101 = arith.constant 0 : index
    %187 = vector.load %arg15[%c0_100, %c0_101] : memref<1x64xf32, #tpu.memory_space<vmem>>, vector<1x64xf32>
    %188 = vector.broadcast %187 : vector<1x64xf32> to vector<16x64xf32>
    %189 = arith.addf %186, %188 : vector<16x64xf32>
    %190 = arith.subf %151, %189 : vector<16x64xf32>
    %c0_102 = arith.constant 0 : index
    %c0_103 = arith.constant 0 : index
    %191 = vector.load %arg16[%c0_102, %c0_103] : memref<1x64xf32, #tpu.memory_space<vmem>>, vector<1x64xf32>
    %192 = vector.broadcast %191 : vector<1x64xf32> to vector<16x64xf32>
    %193 = arith.mulf %190, %192 : vector<16x64xf32>
    %cst_104 = arith.constant -5.000000e-01 : f32
    %194 = vector.broadcast %cst_104 : f32 to vector<16x16xf32>
    %195 = arith.mulf %194, %177 : vector<16x16xf32>
    %196 = arith.mulf %195, %177 : vector<16x16xf32>
    %197 = math.log %138 : vector<16x16xf32>
    %198 = arith.subf %196, %197 : vector<16x16xf32>
    %cst_105 = arith.constant 5.000000e-01 : f32
    %199 = vector.broadcast %cst_105 : f32 to vector<16x16xf32>
    %200 = arith.mulf %199, %117 : vector<16x16xf32>
    %201 = arith.mulf %200, %117 : vector<16x16xf32>
    %202 = math.log %172 : vector<16x16xf32>
    %203 = arith.addf %201, %202 : vector<16x16xf32>
    %c0_106 = arith.constant 0 : index
    %c0_107 = arith.constant 0 : index
    %204 = vector.load %arg17[%c0_106, %c0_107] : memref<16x1xf32, #tpu.memory_space<vmem>>, vector<16x1xf32>
    %cst_108 = arith.constant dense<0.000000e+00> : vector<16x1xf32>
    %205 = tpu.matmul %198, %204, %cst_108 {dimension_numbers = #tpu.dot_dimension_numbers<[1], [0], [0], [1], [0, 0, 1, 1], [], []>} : vector<16x16xf32>, vector<16x1xf32>, vector<16x1xf32> -> vector<16x1xf32>
    %cst_109 = arith.constant dense<0.000000e+00> : vector<16x1xf32>
    %206 = tpu.matmul %203, %4, %cst_109 {dimension_numbers = #tpu.dot_dimension_numbers<[1], [0], [0], [1], [0, 0, 1, 1], [], []>} : vector<16x16xf32>, vector<16x1xf32>, vector<16x1xf32> -> vector<16x1xf32>
    %207 = arith.addf %205, %206 : vector<16x1xf32>
    %208 = arith.mulf %193, %193 : vector<16x64xf32>
    %c0_110 = arith.constant 0 : index
    %c0_111 = arith.constant 0 : index
    %209 = vector.load %arg18[%c0_110, %c0_111] : memref<64x1xf32, #tpu.memory_space<vmem>>, vector<64x1xf32>
    %cst_112 = arith.constant dense<0.000000e+00> : vector<16x1xf32>
    %210 = tpu.matmul %208, %209, %cst_112 {dimension_numbers = #tpu.dot_dimension_numbers<[1], [0], [0], [1], [0, 0, 1, 1], [], []>} : vector<16x64xf32>, vector<64x1xf32>, vector<16x1xf32> -> vector<16x1xf32>
    %211 = arith.addf %207, %210 : vector<16x1xf32>
    %212 = vector.broadcast %5 : vector<1x1xf32> to vector<16x1xf32>
    %213 = arith.addf %211, %212 : vector<16x1xf32>
    %c0_113 = arith.constant 0 : index
    %c0_114 = arith.constant 0 : index
    %c1_115 = arith.constant 1 : index
    %214 = vector.load %arg20[%c0_113, %c0_114, %c1_115] : memref<1x16x4xf32, #tpu.memory_space<vmem>>, vector<1x16x1xf32>
    %215 = vector.shape_cast %214 : vector<1x16x1xf32> to vector<16x1xf32>
    %216 = vector.shape_cast %213 : vector<16x1xf32> to vector<1x16x1xf32>
    tpu.vector_store %arg20[%c0_113, %c0_114, %c1_115], %216 {strides = array<i32>} : memref<1x16x4xf32, #tpu.memory_space<vmem>>, vector<1x16x1xf32>,
    %c1_116 = arith.constant 1 : index
    %c0_117 = arith.constant 0 : index
    %c0_118 = arith.constant 0 : index
    %217 = vector.load %arg21[%c1_116, %c0_117, %c0_118] : memref<4x16x16xf32, #tpu.memory_space<vmem>>, vector<1x16x16xf32>
    %218 = vector.shape_cast %217 : vector<1x16x16xf32> to vector<16x16xf32>
    %219 = vector.shape_cast %174 : vector<16x16xf32> to vector<1x16x16xf32>
    tpu.vector_store %arg21[%c1_116, %c0_117, %c0_118], %219 {strides = array<i32>} : memref<4x16x16xf32, #tpu.memory_space<vmem>>, vector<1x16x16xf32>,
    %c2 = arith.constant 2 : index
    %c0_119 = arith.constant 0 : index
    %c0_120 = arith.constant 0 : index
    %220 = vector.load %arg1[%c2, %c0_119, %c0_120] : memref<4x2x64xf32, #tpu.memory_space<vmem>>, vector<1x2x64xf32>
    %221 = vector.shape_cast %220 : vector<1x2x64xf32> to vector<2x64xf32>
    %c2_121 = arith.constant 2 : index
    %c0_122 = arith.constant 0 : index
    %c0_123 = arith.constant 0 : index
    %222 = vector.load %arg2[%c2_121, %c0_122, %c0_123] : memref<4x16x16xf32, #tpu.memory_space<vmem>>, vector<1x16x16xf32>
    %223 = vector.shape_cast %222 : vector<1x16x16xf32> to vector<16x16xf32>
    %c0_124 = arith.constant 0 : index
    %c0_125 = arith.constant 0 : index
    %224 = vector.load %arg8[%c0_124, %c0_125] : memref<16x512xf32, #tpu.memory_space<vmem>>, vector<16x512xf32>
    %cst_126 = arith.constant dense<0.000000e+00> : vector<16x512xf32>
    %225 = tpu.matmul %174, %224, %cst_126 {dimension_numbers = #tpu.dot_dimension_numbers<[1], [0], [0], [1], [0, 0, 1, 1], [], []>} : vector<16x16xf32>, vector<16x512xf32>, vector<16x512xf32> -> vector<16x512xf32>
    %c0_127 = arith.constant 0 : index
    %c0_128 = arith.constant 0 : index
    %226 = vector.load %arg9[%c0_127, %c0_128] : memref<1x512xf32, #tpu.memory_space<vmem>>, vector<1x512xf32>
    %227 = vector.broadcast %226 : vector<1x512xf32> to vector<16x512xf32>
    %228 = arith.addf %225, %227 : vector<16x512xf32>
    %229 = vector.extract_strided_slice %228 {offsets = [0, 0], sizes = [16, 16], strides = [1, 1]} : vector<16x512xf32> to vector<16x16xf32>
    %230 = vector.extract_strided_slice %228 {offsets = [0, 128], sizes = [16, 16], strides = [1, 1]} : vector<16x512xf32> to vector<16x16xf32>
    %cst_129 = arith.constant 0.000000e+00 : f32
    %231 = vector.broadcast %cst_129 : f32 to vector<16x16xf32>
    %232 = arith.maximumf %230, %231 : vector<16x16xf32>
    %233 = vector.broadcast %cst_129 : f32 to vector<16x16xf32>
    %234 = arith.subf %230, %233 : vector<16x16xf32>
    %235 = arith.cmpf one, %234, %234 : vector<16x16xf32>
    %236 = vector.broadcast %cst_129 : f32 to vector<16x16xf32>
    %237 = arith.addf %230, %236 : vector<16x16xf32>
    %238 = math.absf %234 : vector<16x16xf32>
    %cst_130 = arith.constant 0.000000e+00 : f32
    %239 = vector.broadcast %cst_130 : f32 to vector<16x16xf32>
    %240 = arith.subf %239, %238 : vector<16x16xf32>
    %241 = math.exp %240 : vector<16x16xf32>
    %242 = math.log1p %241 : vector<16x16xf32>
    %243 = arith.addf %232, %242 : vector<16x16xf32>
    %244 = arith.select %235, %237, %243 : vector<16x16xi1>, vector<16x16xf32>
    %245 = vector.extract_strided_slice %228 {offsets = [0, 256], sizes = [16, 256], strides = [1, 1]} : vector<16x512xf32> to vector<16x256xf32>
    %c0_131 = arith.constant 0 : index
    %c0_132 = arith.constant 0 : index
    %246 = vector.load %arg6[%c0_131, %c0_132] : memref<64x32xf32, #tpu.memory_space<vmem>>, vector<64x32xf32>
    %cst_133 = arith.constant dense<0.000000e+00> : vector<2x32xf32>
    %247 = tpu.matmul %221, %246, %cst_133 {dimension_numbers = #tpu.dot_dimension_numbers<[1], [0], [0], [1], [0, 0, 1, 1], [], []>} : vector<2x64xf32>, vector<64x32xf32>, vector<2x32xf32> -> vector<2x32xf32>
    %c0_134 = arith.constant 0 : index
    %c0_135 = arith.constant 0 : index
    %248 = vector.load %arg7[%c0_134, %c0_135] : memref<1x32xf32, #tpu.memory_space<vmem>>, vector<1x32xf32>
    %249 = vector.broadcast %248 : vector<1x32xf32> to vector<2x32xf32>
    %250 = arith.addf %247, %249 : vector<2x32xf32>
    %cst_136 = arith.constant 0.000000e+00 : f32
    %251 = vector.broadcast %cst_136 : f32 to vector<2x32xf32>
    %252 = arith.maximumf %250, %251 : vector<2x32xf32>
    %c0_137 = arith.constant 0 : index
    %c0_138 = arith.constant 0 : index
    %253 = vector.load %arg11[%c0_137, %c0_138] : memref<32x256xf32, #tpu.memory_space<vmem>>, vector<32x256xf32>
    %cst_139 = arith.constant dense<0.000000e+00> : vector<2x256xf32>
    %254 = tpu.matmul %252, %253, %cst_139 {dimension_numbers = #tpu.dot_dimension_numbers<[1], [0], [0], [1], [0, 0, 1, 1], [], []>} : vector<2x32xf32>, vector<32x256xf32>, vector<2x256xf32> -> vector<2x256xf32>
    %255 = tpu.concatenate %254, %221 in 1 : vector<2x256xf32>, vector<2x64xf32> -> vector<2x320xf32>
    %cst_140 = arith.constant dense<0.000000e+00> : vector<16x320xf32>
    %256 = tpu.matmul %3, %255, %cst_140 {dimension_numbers = #tpu.dot_dimension_numbers<[1], [0], [0], [1], [0, 0, 1, 1], [], []>} : vector<16x2xf32>, vector<2x320xf32>, vector<16x320xf32> -> vector<16x320xf32>
    %257 = vector.extract_strided_slice %256 {offsets = [0, 256], sizes = [16, 64], strides = [1, 1]} : vector<16x320xf32> to vector<16x64xf32>
    %258 = vector.extract_strided_slice %256 {offsets = [0, 0], sizes = [16, 256], strides = [1, 1]} : vector<16x320xf32> to vector<16x256xf32>
    %259 = arith.addf %245, %258 : vector<16x256xf32>
    %c0_141 = arith.constant 0 : index
    %c0_142 = arith.constant 0 : index
    %260 = vector.load %arg10[%c0_141, %c0_142] : memref<32x256xf32, #tpu.memory_space<vmem>>, vector<32x256xf32>
    %cst_143 = arith.constant dense<0.000000e+00> : vector<16x256xf32>
    %261 = tpu.matmul %184, %260, %cst_143 {dimension_numbers = #tpu.dot_dimension_numbers<[1], [0], [0], [1], [0, 0, 1, 1], [], []>} : vector<16x32xf32>, vector<32x256xf32>, vector<16x256xf32> -> vector<16x256xf32>
    %262 = arith.addf %259, %261 : vector<16x256xf32>
    %263 = vector.extract_strided_slice %262 {offsets = [0, 0], sizes = [16, 16], strides = [1, 1]} : vector<16x256xf32> to vector<16x16xf32>
    %264 = vector.extract_strided_slice %262 {offsets = [0, 128], sizes = [16, 16], strides = [1, 1]} : vector<16x256xf32> to vector<16x16xf32>
    %cst_144 = arith.constant 0.000000e+00 : f32
    %265 = vector.broadcast %cst_144 : f32 to vector<16x16xf32>
    %266 = arith.maximumf %264, %265 : vector<16x16xf32>
    %267 = vector.broadcast %cst_144 : f32 to vector<16x16xf32>
    %268 = arith.subf %264, %267 : vector<16x16xf32>
    %269 = arith.cmpf one, %268, %268 : vector<16x16xf32>
    %270 = vector.broadcast %cst_144 : f32 to vector<16x16xf32>
    %271 = arith.addf %264, %270 : vector<16x16xf32>
    %272 = math.absf %268 : vector<16x16xf32>
    %cst_145 = arith.constant 0.000000e+00 : f32
    %273 = vector.broadcast %cst_145 : f32 to vector<16x16xf32>
    %274 = arith.subf %273, %272 : vector<16x16xf32>
    %275 = math.exp %274 : vector<16x16xf32>
    %276 = math.log1p %275 : vector<16x16xf32>
    %277 = arith.addf %266, %276 : vector<16x16xf32>
    %278 = arith.select %269, %271, %277 : vector<16x16xi1>, vector<16x16xf32>
    %279 = arith.mulf %278, %223 : vector<16x16xf32>
    %280 = arith.addf %263, %279 : vector<16x16xf32>
    %281 = arith.subf %280, %229 : vector<16x16xf32>
    %282 = tpu.reciprocal %244 {approx = true} : vector<16x16xf32> -> vector<16x16xf32>
    %283 = arith.mulf %281, %282 : vector<16x16xf32>
    %c0_146 = arith.constant 0 : index
    %c0_147 = arith.constant 0 : index
    %284 = vector.load %arg12[%c0_146, %c0_147] : memref<16x32xf32, #tpu.memory_space<vmem>>, vector<16x32xf32>
    %cst_148 = arith.constant dense<0.000000e+00> : vector<16x32xf32>
    %285 = tpu.matmul %280, %284, %cst_148 {dimension_numbers = #tpu.dot_dimension_numbers<[1], [0], [0], [1], [0, 0, 1, 1], [], []>} : vector<16x16xf32>, vector<16x32xf32>, vector<16x32xf32> -> vector<16x32xf32>
    %c0_149 = arith.constant 0 : index
    %c0_150 = arith.constant 0 : index
    %286 = vector.load %arg13[%c0_149, %c0_150] : memref<1x32xf32, #tpu.memory_space<vmem>>, vector<1x32xf32>
    %287 = vector.broadcast %286 : vector<1x32xf32> to vector<16x32xf32>
    %288 = arith.addf %285, %287 : vector<16x32xf32>
    %cst_151 = arith.constant 0.000000e+00 : f32
    %289 = vector.broadcast %cst_151 : f32 to vector<16x32xf32>
    %290 = arith.maximumf %288, %289 : vector<16x32xf32>
    %c0_152 = arith.constant 0 : index
    %c0_153 = arith.constant 0 : index
    %291 = vector.load %arg14[%c0_152, %c0_153] : memref<32x64xf32, #tpu.memory_space<vmem>>, vector<32x64xf32>
    %cst_154 = arith.constant dense<0.000000e+00> : vector<16x64xf32>
    %292 = tpu.matmul %290, %291, %cst_154 {dimension_numbers = #tpu.dot_dimension_numbers<[1], [0], [0], [1], [0, 0, 1, 1], [], []>} : vector<16x32xf32>, vector<32x64xf32>, vector<16x64xf32> -> vector<16x64xf32>
    %c0_155 = arith.constant 0 : index
    %c0_156 = arith.constant 0 : index
    %293 = vector.load %arg15[%c0_155, %c0_156] : memref<1x64xf32, #tpu.memory_space<vmem>>, vector<1x64xf32>
    %294 = vector.broadcast %293 : vector<1x64xf32> to vector<16x64xf32>
    %295 = arith.addf %292, %294 : vector<16x64xf32>
    %296 = arith.subf %257, %295 : vector<16x64xf32>
    %c0_157 = arith.constant 0 : index
    %c0_158 = arith.constant 0 : index
    %297 = vector.load %arg16[%c0_157, %c0_158] : memref<1x64xf32, #tpu.memory_space<vmem>>, vector<1x64xf32>
    %298 = vector.broadcast %297 : vector<1x64xf32> to vector<16x64xf32>
    %299 = arith.mulf %296, %298 : vector<16x64xf32>
    %cst_159 = arith.constant -5.000000e-01 : f32
    %300 = vector.broadcast %cst_159 : f32 to vector<16x16xf32>
    %301 = arith.mulf %300, %283 : vector<16x16xf32>
    %302 = arith.mulf %301, %283 : vector<16x16xf32>
    %303 = math.log %244 : vector<16x16xf32>
    %304 = arith.subf %302, %303 : vector<16x16xf32>
    %cst_160 = arith.constant 5.000000e-01 : f32
    %305 = vector.broadcast %cst_160 : f32 to vector<16x16xf32>
    %306 = arith.mulf %305, %223 : vector<16x16xf32>
    %307 = arith.mulf %306, %223 : vector<16x16xf32>
    %308 = math.log %278 : vector<16x16xf32>
    %309 = arith.addf %307, %308 : vector<16x16xf32>
    %c0_161 = arith.constant 0 : index
    %c0_162 = arith.constant 0 : index
    %310 = vector.load %arg17[%c0_161, %c0_162] : memref<16x1xf32, #tpu.memory_space<vmem>>, vector<16x1xf32>
    %cst_163 = arith.constant dense<0.000000e+00> : vector<16x1xf32>
    %311 = tpu.matmul %304, %310, %cst_163 {dimension_numbers = #tpu.dot_dimension_numbers<[1], [0], [0], [1], [0, 0, 1, 1], [], []>} : vector<16x16xf32>, vector<16x1xf32>, vector<16x1xf32> -> vector<16x1xf32>
    %cst_164 = arith.constant dense<0.000000e+00> : vector<16x1xf32>
    %312 = tpu.matmul %309, %4, %cst_164 {dimension_numbers = #tpu.dot_dimension_numbers<[1], [0], [0], [1], [0, 0, 1, 1], [], []>} : vector<16x16xf32>, vector<16x1xf32>, vector<16x1xf32> -> vector<16x1xf32>
    %313 = arith.addf %311, %312 : vector<16x1xf32>
    %314 = arith.mulf %299, %299 : vector<16x64xf32>
    %c0_165 = arith.constant 0 : index
    %c0_166 = arith.constant 0 : index
    %315 = vector.load %arg18[%c0_165, %c0_166] : memref<64x1xf32, #tpu.memory_space<vmem>>, vector<64x1xf32>
    %cst_167 = arith.constant dense<0.000000e+00> : vector<16x1xf32>
    %316 = tpu.matmul %314, %315, %cst_167 {dimension_numbers = #tpu.dot_dimension_numbers<[1], [0], [0], [1], [0, 0, 1, 1], [], []>} : vector<16x64xf32>, vector<64x1xf32>, vector<16x1xf32> -> vector<16x1xf32>
    %317 = arith.addf %313, %316 : vector<16x1xf32>
    %318 = vector.broadcast %5 : vector<1x1xf32> to vector<16x1xf32>
    %319 = arith.addf %317, %318 : vector<16x1xf32>
    %c0_168 = arith.constant 0 : index
    %c0_169 = arith.constant 0 : index
    %c2_170 = arith.constant 2 : index
    %320 = vector.load %arg20[%c0_168, %c0_169, %c2_170] : memref<1x16x4xf32, #tpu.memory_space<vmem>>, vector<1x16x1xf32>
    %321 = vector.shape_cast %320 : vector<1x16x1xf32> to vector<16x1xf32>
    %322 = vector.shape_cast %319 : vector<16x1xf32> to vector<1x16x1xf32>
    tpu.vector_store %arg20[%c0_168, %c0_169, %c2_170], %322 {strides = array<i32>} : memref<1x16x4xf32, #tpu.memory_space<vmem>>, vector<1x16x1xf32>,
    %c2_171 = arith.constant 2 : index
    %c0_172 = arith.constant 0 : index
    %c0_173 = arith.constant 0 : index
    %323 = vector.load %arg21[%c2_171, %c0_172, %c0_173] : memref<4x16x16xf32, #tpu.memory_space<vmem>>, vector<1x16x16xf32>
    %324 = vector.shape_cast %323 : vector<1x16x16xf32> to vector<16x16xf32>
    %325 = vector.shape_cast %280 : vector<16x16xf32> to vector<1x16x16xf32>
    tpu.vector_store %arg21[%c2_171, %c0_172, %c0_173], %325 {strides = array<i32>} : memref<4x16x16xf32, #tpu.memory_space<vmem>>, vector<1x16x16xf32>,
    %c3 = arith.constant 3 : index
    %c0_174 = arith.constant 0 : index
    %c0_175 = arith.constant 0 : index
    %326 = vector.load %arg1[%c3, %c0_174, %c0_175] : memref<4x2x64xf32, #tpu.memory_space<vmem>>, vector<1x2x64xf32>
    %327 = vector.shape_cast %326 : vector<1x2x64xf32> to vector<2x64xf32>
    %c3_176 = arith.constant 3 : index
    %c0_177 = arith.constant 0 : index
    %c0_178 = arith.constant 0 : index
    %328 = vector.load %arg2[%c3_176, %c0_177, %c0_178] : memref<4x16x16xf32, #tpu.memory_space<vmem>>, vector<1x16x16xf32>
    %329 = vector.shape_cast %328 : vector<1x16x16xf32> to vector<16x16xf32>
    %c0_179 = arith.constant 0 : index
    %c0_180 = arith.constant 0 : index
    %330 = vector.load %arg8[%c0_179, %c0_180] : memref<16x512xf32, #tpu.memory_space<vmem>>, vector<16x512xf32>
    %cst_181 = arith.constant dense<0.000000e+00> : vector<16x512xf32>
    %331 = tpu.matmul %280, %330, %cst_181 {dimension_numbers = #tpu.dot_dimension_numbers<[1], [0], [0], [1], [0, 0, 1, 1], [], []>} : vector<16x16xf32>, vector<16x512xf32>, vector<16x512xf32> -> vector<16x512xf32>
    %c0_182 = arith.constant 0 : index
    %c0_183 = arith.constant 0 : index
    %332 = vector.load %arg9[%c0_182, %c0_183] : memref<1x512xf32, #tpu.memory_space<vmem>>, vector<1x512xf32>
    %333 = vector.broadcast %332 : vector<1x512xf32> to vector<16x512xf32>
    %334 = arith.addf %331, %333 : vector<16x512xf32>
    %335 = vector.extract_strided_slice %334 {offsets = [0, 0], sizes = [16, 16], strides = [1, 1]} : vector<16x512xf32> to vector<16x16xf32>
    %336 = vector.extract_strided_slice %334 {offsets = [0, 128], sizes = [16, 16], strides = [1, 1]} : vector<16x512xf32> to vector<16x16xf32>
    %cst_184 = arith.constant 0.000000e+00 : f32
    %337 = vector.broadcast %cst_184 : f32 to vector<16x16xf32>
    %338 = arith.maximumf %336, %337 : vector<16x16xf32>
    %339 = vector.broadcast %cst_184 : f32 to vector<16x16xf32>
    %340 = arith.subf %336, %339 : vector<16x16xf32>
    %341 = arith.cmpf one, %340, %340 : vector<16x16xf32>
    %342 = vector.broadcast %cst_184 : f32 to vector<16x16xf32>
    %343 = arith.addf %336, %342 : vector<16x16xf32>
    %344 = math.absf %340 : vector<16x16xf32>
    %cst_185 = arith.constant 0.000000e+00 : f32
    %345 = vector.broadcast %cst_185 : f32 to vector<16x16xf32>
    %346 = arith.subf %345, %344 : vector<16x16xf32>
    %347 = math.exp %346 : vector<16x16xf32>
    %348 = math.log1p %347 : vector<16x16xf32>
    %349 = arith.addf %338, %348 : vector<16x16xf32>
    %350 = arith.select %341, %343, %349 : vector<16x16xi1>, vector<16x16xf32>
    %351 = vector.extract_strided_slice %334 {offsets = [0, 256], sizes = [16, 256], strides = [1, 1]} : vector<16x512xf32> to vector<16x256xf32>
    %c0_186 = arith.constant 0 : index
    %c0_187 = arith.constant 0 : index
    %352 = vector.load %arg6[%c0_186, %c0_187] : memref<64x32xf32, #tpu.memory_space<vmem>>, vector<64x32xf32>
    %cst_188 = arith.constant dense<0.000000e+00> : vector<2x32xf32>
    %353 = tpu.matmul %327, %352, %cst_188 {dimension_numbers = #tpu.dot_dimension_numbers<[1], [0], [0], [1], [0, 0, 1, 1], [], []>} : vector<2x64xf32>, vector<64x32xf32>, vector<2x32xf32> -> vector<2x32xf32>
    %c0_189 = arith.constant 0 : index
    %c0_190 = arith.constant 0 : index
    %354 = vector.load %arg7[%c0_189, %c0_190] : memref<1x32xf32, #tpu.memory_space<vmem>>, vector<1x32xf32>
    %355 = vector.broadcast %354 : vector<1x32xf32> to vector<2x32xf32>
    %356 = arith.addf %353, %355 : vector<2x32xf32>
    %cst_191 = arith.constant 0.000000e+00 : f32
    %357 = vector.broadcast %cst_191 : f32 to vector<2x32xf32>
    %358 = arith.maximumf %356, %357 : vector<2x32xf32>
    %c0_192 = arith.constant 0 : index
    %c0_193 = arith.constant 0 : index
    %359 = vector.load %arg11[%c0_192, %c0_193] : memref<32x256xf32, #tpu.memory_space<vmem>>, vector<32x256xf32>
    %cst_194 = arith.constant dense<0.000000e+00> : vector<2x256xf32>
    %360 = tpu.matmul %358, %359, %cst_194 {dimension_numbers = #tpu.dot_dimension_numbers<[1], [0], [0], [1], [0, 0, 1, 1], [], []>} : vector<2x32xf32>, vector<32x256xf32>, vector<2x256xf32> -> vector<2x256xf32>
    %361 = tpu.concatenate %360, %327 in 1 : vector<2x256xf32>, vector<2x64xf32> -> vector<2x320xf32>
    %cst_195 = arith.constant dense<0.000000e+00> : vector<16x320xf32>
    %362 = tpu.matmul %3, %361, %cst_195 {dimension_numbers = #tpu.dot_dimension_numbers<[1], [0], [0], [1], [0, 0, 1, 1], [], []>} : vector<16x2xf32>, vector<2x320xf32>, vector<16x320xf32> -> vector<16x320xf32>
    %363 = vector.extract_strided_slice %362 {offsets = [0, 256], sizes = [16, 64], strides = [1, 1]} : vector<16x320xf32> to vector<16x64xf32>
    %364 = vector.extract_strided_slice %362 {offsets = [0, 0], sizes = [16, 256], strides = [1, 1]} : vector<16x320xf32> to vector<16x256xf32>
    %365 = arith.addf %351, %364 : vector<16x256xf32>
    %c0_196 = arith.constant 0 : index
    %c0_197 = arith.constant 0 : index
    %366 = vector.load %arg10[%c0_196, %c0_197] : memref<32x256xf32, #tpu.memory_space<vmem>>, vector<32x256xf32>
    %cst_198 = arith.constant dense<0.000000e+00> : vector<16x256xf32>
    %367 = tpu.matmul %290, %366, %cst_198 {dimension_numbers = #tpu.dot_dimension_numbers<[1], [0], [0], [1], [0, 0, 1, 1], [], []>} : vector<16x32xf32>, vector<32x256xf32>, vector<16x256xf32> -> vector<16x256xf32>
    %368 = arith.addf %365, %367 : vector<16x256xf32>
    %369 = vector.extract_strided_slice %368 {offsets = [0, 0], sizes = [16, 16], strides = [1, 1]} : vector<16x256xf32> to vector<16x16xf32>
    %370 = vector.extract_strided_slice %368 {offsets = [0, 128], sizes = [16, 16], strides = [1, 1]} : vector<16x256xf32> to vector<16x16xf32>
    %cst_199 = arith.constant 0.000000e+00 : f32
    %371 = vector.broadcast %cst_199 : f32 to vector<16x16xf32>
    %372 = arith.maximumf %370, %371 : vector<16x16xf32>
    %373 = vector.broadcast %cst_199 : f32 to vector<16x16xf32>
    %374 = arith.subf %370, %373 : vector<16x16xf32>
    %375 = arith.cmpf one, %374, %374 : vector<16x16xf32>
    %376 = vector.broadcast %cst_199 : f32 to vector<16x16xf32>
    %377 = arith.addf %370, %376 : vector<16x16xf32>
    %378 = math.absf %374 : vector<16x16xf32>
    %cst_200 = arith.constant 0.000000e+00 : f32
    %379 = vector.broadcast %cst_200 : f32 to vector<16x16xf32>
    %380 = arith.subf %379, %378 : vector<16x16xf32>
    %381 = math.exp %380 : vector<16x16xf32>
    %382 = math.log1p %381 : vector<16x16xf32>
    %383 = arith.addf %372, %382 : vector<16x16xf32>
    %384 = arith.select %375, %377, %383 : vector<16x16xi1>, vector<16x16xf32>
    %385 = arith.mulf %384, %329 : vector<16x16xf32>
    %386 = arith.addf %369, %385 : vector<16x16xf32>
    %387 = arith.subf %386, %335 : vector<16x16xf32>
    %388 = tpu.reciprocal %350 {approx = true} : vector<16x16xf32> -> vector<16x16xf32>
    %389 = arith.mulf %387, %388 : vector<16x16xf32>
    %c0_201 = arith.constant 0 : index
    %c0_202 = arith.constant 0 : index
    %390 = vector.load %arg12[%c0_201, %c0_202] : memref<16x32xf32, #tpu.memory_space<vmem>>, vector<16x32xf32>
    %cst_203 = arith.constant dense<0.000000e+00> : vector<16x32xf32>
    %391 = tpu.matmul %386, %390, %cst_203 {dimension_numbers = #tpu.dot_dimension_numbers<[1], [0], [0], [1], [0, 0, 1, 1], [], []>} : vector<16x16xf32>, vector<16x32xf32>, vector<16x32xf32> -> vector<16x32xf32>
    %c0_204 = arith.constant 0 : index
    %c0_205 = arith.constant 0 : index
    %392 = vector.load %arg13[%c0_204, %c0_205] : memref<1x32xf32, #tpu.memory_space<vmem>>, vector<1x32xf32>
    %393 = vector.broadcast %392 : vector<1x32xf32> to vector<16x32xf32>
    %394 = arith.addf %391, %393 : vector<16x32xf32>
    %cst_206 = arith.constant 0.000000e+00 : f32
    %395 = vector.broadcast %cst_206 : f32 to vector<16x32xf32>
    %396 = arith.maximumf %394, %395 : vector<16x32xf32>
    %c0_207 = arith.constant 0 : index
    %c0_208 = arith.constant 0 : index
    %397 = vector.load %arg14[%c0_207, %c0_208] : memref<32x64xf32, #tpu.memory_space<vmem>>, vector<32x64xf32>
    %cst_209 = arith.constant dense<0.000000e+00> : vector<16x64xf32>
    %398 = tpu.matmul %396, %397, %cst_209 {dimension_numbers = #tpu.dot_dimension_numbers<[1], [0], [0], [1], [0, 0, 1, 1], [], []>} : vector<16x32xf32>, vector<32x64xf32>, vector<16x64xf32> -> vector<16x64xf32>
    %c0_210 = arith.constant 0 : index
    %c0_211 = arith.constant 0 : index
    %399 = vector.load %arg15[%c0_210, %c0_211] : memref<1x64xf32, #tpu.memory_space<vmem>>, vector<1x64xf32>
    %400 = vector.broadcast %399 : vector<1x64xf32> to vector<16x64xf32>
    %401 = arith.addf %398, %400 : vector<16x64xf32>
    %402 = arith.subf %363, %401 : vector<16x64xf32>
    %c0_212 = arith.constant 0 : index
    %c0_213 = arith.constant 0 : index
    %403 = vector.load %arg16[%c0_212, %c0_213] : memref<1x64xf32, #tpu.memory_space<vmem>>, vector<1x64xf32>
    %404 = vector.broadcast %403 : vector<1x64xf32> to vector<16x64xf32>
    %405 = arith.mulf %402, %404 : vector<16x64xf32>
    %cst_214 = arith.constant -5.000000e-01 : f32
    %406 = vector.broadcast %cst_214 : f32 to vector<16x16xf32>
    %407 = arith.mulf %406, %389 : vector<16x16xf32>
    %408 = arith.mulf %407, %389 : vector<16x16xf32>
    %409 = math.log %350 : vector<16x16xf32>
    %410 = arith.subf %408, %409 : vector<16x16xf32>
    %cst_215 = arith.constant 5.000000e-01 : f32
    %411 = vector.broadcast %cst_215 : f32 to vector<16x16xf32>
    %412 = arith.mulf %411, %329 : vector<16x16xf32>
    %413 = arith.mulf %412, %329 : vector<16x16xf32>
    %414 = math.log %384 : vector<16x16xf32>
    %415 = arith.addf %413, %414 : vector<16x16xf32>
    %c0_216 = arith.constant 0 : index
    %c0_217 = arith.constant 0 : index
    %416 = vector.load %arg17[%c0_216, %c0_217] : memref<16x1xf32, #tpu.memory_space<vmem>>, vector<16x1xf32>
    %cst_218 = arith.constant dense<0.000000e+00> : vector<16x1xf32>
    %417 = tpu.matmul %410, %416, %cst_218 {dimension_numbers = #tpu.dot_dimension_numbers<[1], [0], [0], [1], [0, 0, 1, 1], [], []>} : vector<16x16xf32>, vector<16x1xf32>, vector<16x1xf32> -> vector<16x1xf32>
    %cst_219 = arith.constant dense<0.000000e+00> : vector<16x1xf32>
    %418 = tpu.matmul %415, %4, %cst_219 {dimension_numbers = #tpu.dot_dimension_numbers<[1], [0], [0], [1], [0, 0, 1, 1], [], []>} : vector<16x16xf32>, vector<16x1xf32>, vector<16x1xf32> -> vector<16x1xf32>
    %419 = arith.addf %417, %418 : vector<16x1xf32>
    %420 = arith.mulf %405, %405 : vector<16x64xf32>
    %c0_220 = arith.constant 0 : index
    %c0_221 = arith.constant 0 : index
    %421 = vector.load %arg18[%c0_220, %c0_221] : memref<64x1xf32, #tpu.memory_space<vmem>>, vector<64x1xf32>
    %cst_222 = arith.constant dense<0.000000e+00> : vector<16x1xf32>
    %422 = tpu.matmul %420, %421, %cst_222 {dimension_numbers = #tpu.dot_dimension_numbers<[1], [0], [0], [1], [0, 0, 1, 1], [], []>} : vector<16x64xf32>, vector<64x1xf32>, vector<16x1xf32> -> vector<16x1xf32>
    %423 = arith.addf %419, %422 : vector<16x1xf32>
    %424 = vector.broadcast %5 : vector<1x1xf32> to vector<16x1xf32>
    %425 = arith.addf %423, %424 : vector<16x1xf32>
    %c0_223 = arith.constant 0 : index
    %c0_224 = arith.constant 0 : index
    %c3_225 = arith.constant 3 : index
    %426 = vector.load %arg20[%c0_223, %c0_224, %c3_225] : memref<1x16x4xf32, #tpu.memory_space<vmem>>, vector<1x16x1xf32>
    %427 = vector.shape_cast %426 : vector<1x16x1xf32> to vector<16x1xf32>
    %428 = vector.shape_cast %425 : vector<16x1xf32> to vector<1x16x1xf32>
    tpu.vector_store %arg20[%c0_223, %c0_224, %c3_225], %428 {strides = array<i32>} : memref<1x16x4xf32, #tpu.memory_space<vmem>>, vector<1x16x1xf32>,
    %c3_226 = arith.constant 3 : index
    %c0_227 = arith.constant 0 : index
    %c0_228 = arith.constant 0 : index
    %429 = vector.load %arg21[%c3_226, %c0_227, %c0_228] : memref<4x16x16xf32, #tpu.memory_space<vmem>>, vector<1x16x16xf32>
    %430 = vector.shape_cast %429 : vector<1x16x16xf32> to vector<16x16xf32>
    %431 = vector.shape_cast %386 : vector<16x16xf32> to vector<1x16x16xf32>
    tpu.vector_store %arg21[%c3_226, %c0_227, %c0_228], %431 {strides = array<i32>} : memref<4x16x16xf32, #tpu.memory_space<vmem>>, vector<1x16x16xf32>,
    %c0_229 = arith.constant 0 : index
    %c0_230 = arith.constant 0 : index
    %432 = vector.load %arg22[%c0_229, %c0_230] : memref<16x16xf32, #tpu.memory_space<vmem>>, vector<16x16xf32>
    tpu.vector_store %arg22[%c0_229, %c0_230], %386 {strides = array<i32>} : memref<16x16xf32, #tpu.memory_space<vmem>>, vector<16x16xf32>,
    %c0_231 = arith.constant 0 : index
    %c0_232 = arith.constant 0 : index
    %433 = vector.load %arg23[%c0_231, %c0_232] : memref<16x32xf32, #tpu.memory_space<vmem>>, vector<16x32xf32>
    tpu.vector_store %arg23[%c0_231, %c0_232], %396 {strides = array<i32>} : memref<16x32xf32, #tpu.memory_space<vmem>>, vector<16x32xf32>,
    return
  }
  func.func @transform_0(%arg0: i32) -> (i32, i32, i32) {
    %c0_i32 = arith.constant 0 : i32
    %c0_i32_0 = arith.constant 0 : i32
    %c0_i32_1 = arith.constant 0 : i32
    return %arg0, %c0_i32, %c0_i32_0 : i32, i32, i32
  }
  func.func @transform_1(%arg0: i32) -> (i32, i32, i32) {
    %c0_i32 = arith.constant 0 : i32
    %c0_i32_0 = arith.constant 0 : i32
    %c0_i32_1 = arith.constant 0 : i32
    return %arg0, %c0_i32, %c0_i32_0 : i32, i32, i32
  }
  func.func @transform_2(%arg0: i32) -> (i32, i32) {
    %c0_i32 = arith.constant 0 : i32
    %c0_i32_0 = arith.constant 0 : i32
    %c0_i32_1 = arith.constant 0 : i32
    return %c0_i32, %c0_i32_0 : i32, i32
  }
  func.func @transform_3(%arg0: i32) -> (i32, i32) {
    %c0_i32 = arith.constant 0 : i32
    %c0_i32_0 = arith.constant 0 : i32
    %c0_i32_1 = arith.constant 0 : i32
    return %c0_i32, %c0_i32_0 : i32, i32
  }
  func.func @transform_4(%arg0: i32) -> (i32, i32) {
    %c0_i32 = arith.constant 0 : i32
    %c0_i32_0 = arith.constant 0 : i32
    %c0_i32_1 = arith.constant 0 : i32
    return %c0_i32, %c0_i32_0 : i32, i32
  }
  func.func @transform_5(%arg0: i32) -> (i32, i32) {
    %c0_i32 = arith.constant 0 : i32
    %c0_i32_0 = arith.constant 0 : i32
    %c0_i32_1 = arith.constant 0 : i32
    return %c0_i32, %c0_i32_0 : i32, i32
  }
  func.func @transform_6(%arg0: i32) -> (i32, i32) {
    %c0_i32 = arith.constant 0 : i32
    %c0_i32_0 = arith.constant 0 : i32
    %c0_i32_1 = arith.constant 0 : i32
    return %c0_i32, %c0_i32_0 : i32, i32
  }
  func.func @transform_7(%arg0: i32) -> (i32, i32) {
    %c0_i32 = arith.constant 0 : i32
    %c0_i32_0 = arith.constant 0 : i32
    %c0_i32_1 = arith.constant 0 : i32
    return %c0_i32, %c0_i32_0 : i32, i32
  }
  func.func @transform_8(%arg0: i32) -> (i32, i32) {
    %c0_i32 = arith.constant 0 : i32
    %c0_i32_0 = arith.constant 0 : i32
    %c0_i32_1 = arith.constant 0 : i32
    return %c0_i32, %c0_i32_0 : i32, i32
  }
  func.func @transform_9(%arg0: i32) -> (i32, i32) {
    %c0_i32 = arith.constant 0 : i32
    %c0_i32_0 = arith.constant 0 : i32
    %c0_i32_1 = arith.constant 0 : i32
    return %c0_i32, %c0_i32_0 : i32, i32
  }
  func.func @transform_10(%arg0: i32) -> (i32, i32) {
    %c0_i32 = arith.constant 0 : i32
    %c0_i32_0 = arith.constant 0 : i32
    %c0_i32_1 = arith.constant 0 : i32
    return %c0_i32, %c0_i32_0 : i32, i32
  }
  func.func @transform_11(%arg0: i32) -> (i32, i32) {
    %c0_i32 = arith.constant 0 : i32
    %c0_i32_0 = arith.constant 0 : i32
    %c0_i32_1 = arith.constant 0 : i32
    return %c0_i32, %c0_i32_0 : i32, i32
  }
  func.func @transform_12(%arg0: i32) -> (i32, i32) {
    %c0_i32 = arith.constant 0 : i32
    %c0_i32_0 = arith.constant 0 : i32
    %c0_i32_1 = arith.constant 0 : i32
    return %c0_i32, %c0_i32_0 : i32, i32
  }
  func.func @transform_13(%arg0: i32) -> (i32, i32) {
    %c0_i32 = arith.constant 0 : i32
    %c0_i32_0 = arith.constant 0 : i32
    %c0_i32_1 = arith.constant 0 : i32
    return %c0_i32, %c0_i32_0 : i32, i32
  }
  func.func @transform_14(%arg0: i32) -> (i32, i32) {
    %c0_i32 = arith.constant 0 : i32
    %c0_i32_0 = arith.constant 0 : i32
    %c0_i32_1 = arith.constant 0 : i32
    return %c0_i32, %c0_i32_0 : i32, i32
  }
  func.func @transform_15(%arg0: i32) -> (i32, i32) {
    %c0_i32 = arith.constant 0 : i32
    %c0_i32_0 = arith.constant 0 : i32
    %c0_i32_1 = arith.constant 0 : i32
    return %c0_i32, %c0_i32_0 : i32, i32
  }
  func.func @transform_16(%arg0: i32) -> (i32, i32) {
    %c0_i32 = arith.constant 0 : i32
    %c0_i32_0 = arith.constant 0 : i32
    %c0_i32_1 = arith.constant 0 : i32
    return %c0_i32, %c0_i32_0 : i32, i32
  }
  func.func @transform_17(%arg0: i32) -> (i32, i32) {
    %c0_i32 = arith.constant 0 : i32
    %c0_i32_0 = arith.constant 0 : i32
    %c0_i32_1 = arith.constant 0 : i32
    return %c0_i32, %c0_i32_0 : i32, i32
  }
  func.func @transform_18(%arg0: i32) -> (i32, i32) {
    %c0_i32 = arith.constant 0 : i32
    %c0_i32_0 = arith.constant 0 : i32
    %c0_i32_1 = arith.constant 0 : i32
    return %c0_i32, %c0_i32_0 : i32, i32
  }
  func.func @transform_19(%arg0: i32) -> (i32, i32, i32) {
    %c0_i32 = arith.constant 0 : i32
    %c0_i32_0 = arith.constant 0 : i32
    %c0_i32_1 = arith.constant 0 : i32
    return %arg0, %c0_i32, %c0_i32_0 : i32, i32, i32
  }
  func.func @transform_20(%arg0: i32) -> (i32, i32, i32) {
    %c0_i32 = arith.constant 0 : i32
    %c0_i32_0 = arith.constant 0 : i32
    %c0_i32_1 = arith.constant 0 : i32
    return %arg0, %c0_i32, %c0_i32_0 : i32, i32, i32
  }
}

</mosaic_0001>

<llo_original>
// kernel: tpu_custom_call.1
$region0: #{tpu_custom_call.1}
  #allocation0 [shape = 'u32[]', space=smem, size = 0x4, offset = 0x4, fixed_abs, tag = 'smem constant byte address 0x4 - core index']
  #allocation1 [shape = 'u32[144,128]{1,0:T(1,128)}', space=vmem, size = 0x12000, scoped, tag = 'internal scratch']
  #allocation2 [shape = 'f32[16,16]{1,0:T(8,128)}', space=vmem, size = 0x2000, scoped, tag = 'scratch operand']
  #allocation3 [shape = 'f32[16,32]{1,0:T(8,128)}', space=vmem, size = 0x2000, scoped, tag = 'scratch operand']
  #allocation4 [shape = 'f32[1,1]{1,0:T(1,128)S(1)}', space=vmem, size = 0x200, scoped, tag = 'scoped memory for tpu_custom_call.1']
  %s0 = inlined_call_operand.hbm [shape: f32[4,2,64], index: 0, kind: input, shape index: {}]
  %s1 = inlined_call_operand.vmem [shape: f32[4,16,16], index: 1, kind: input, shape index: {}]
  %s2 = inlined_call_operand.hbm [shape: f32[16,16], index: 2, kind: input, shape index: {}]
  %s3 = inlined_call_operand.hbm [shape: f32[16,32], index: 3, kind: input, shape index: {}]
  %s4 = inlined_call_operand.vmem [shape: f32[16,2], index: 4, kind: input, shape index: {}]
  %s5 = inlined_call_operand.vmem [shape: f32[64,32], index: 5, kind: input, shape index: {}]
  %s6 = inlined_call_operand.hbm [shape: f32[1,32], index: 6, kind: input, shape index: {}]
  %s7 = inlined_call_operand.vmem [shape: f32[16,512], index: 7, kind: input, shape index: {}]
  %s8 = inlined_call_operand.hbm [shape: f32[1,512], index: 8, kind: input, shape index: {}]
  %s9 = inlined_call_operand.vmem [shape: f32[32,256], index: 9, kind: input, shape index: {}]
  %s10 = inlined_call_operand.hbm [shape: f32[32,256], index: 10, kind: input, shape index: {}]
  %s11 = inlined_call_operand.vmem [shape: f32[16,32], index: 11, kind: input, shape index: {}]
  %s12 = inlined_call_operand.vmem [shape: f32[1,32], index: 12, kind: input, shape index: {}]
  %s13 = inlined_call_operand.vmem [shape: f32[32,64], index: 13, kind: input, shape index: {}]
  %s14 = inlined_call_operand.vmem [shape: f32[1,64], index: 14, kind: input, shape index: {}]
  %s15 = inlined_call_operand.vmem [shape: f32[1,64], index: 15, kind: input, shape index: {}]
  %s16 = inlined_call_operand.vmem [shape: f32[16,1], index: 16, kind: input, shape index: {}]
  %s17 = inlined_call_operand.vmem [shape: f32[64,1], index: 17, kind: input, shape index: {}]
  %s18 = inlined_call_operand.<no memory space> [shape: f32[1,1], index: 18, kind: input, shape index: {}]
  %s19 = inlined_call_operand.vmem [shape: f32[1,16,4], index: 19, kind: output, shape index: {0}]
  %s20 = inlined_call_operand.hbm [shape: f32[4,16,16], index: 20, kind: output, shape index: {1}]
  %21 = xla_tuple %s19, %s20
  %s22 = sld [smem:[#allocation0]]
  $region122: #{tpu_custom_call.1} parent=0
    _
  %s24 = ssub.s32 1, %s22
  %s25 = scalar_select 0, %s24, %s22
  %v26 = vstv %s18
  %27 = vst [vmem:[#allocation4] sm:$0x1] %v26
  $region1: #{tpu_custom_call.1} parent=0
    #allocation5 [shape = 'u8[4096]{0}', space=vmem, size = 0x1000, scoped, tag = 'input window, operand 0, single buffered']
    #allocation6 [shape = 's32[1]{0}', space=sflag, size = 0x4, scoped, tag = 'scoped memory for tpu_custom_call.1']
    #allocation7 [shape = 's32[1]{0}', space=sflag, size = 0x4, scoped, tag = 'scoped memory for tpu_custom_call.1']
    #allocation8 [shape = 'u8[8192]{0}', space=vmem, size = 0x2000, scoped, tag = 'input window, operand 2, single buffered']
    #allocation9 [shape = 's32[1]{0}', space=sflag, size = 0x4, scoped, tag = 'scoped memory for tpu_custom_call.1']
    #allocation10 [shape = 'u8[8192]{0}', space=vmem, size = 0x2000, scoped, tag = 'input window, operand 3, single buffered']
    #allocation11 [shape = 'u8[512]{0}', space=vmem, size = 0x400, scoped, tag = 'input window, operand 6, single buffered']
    #allocation12 [shape = 's32[1]{0}', space=sflag, size = 0x4, scoped, tag = 'scoped memory for tpu_custom_call.1']
    #allocation13 [shape = 'u8[2048]{0}', space=vmem, size = 0x800, scoped, tag = 'input window, operand 8, single buffered']
    #allocation14 [shape = 'u8[32768]{0}', space=vmem, size = 0x8000, scoped, tag = 'input window, operand 10, single buffered']
    #allocation15 [shape = 's32[1]{0}', space=sflag, size = 0x4, scoped, tag = 'scoped memory for tpu_custom_call.1']
    #allocation16 [shape = 'u8[32768]{0}', space=vmem, size = 0x8000, scoped, tag = 'output window, operand 1, single buffered']
    %28 = vsyncpa [#allocation6], 0
    %29 = vsyncpa [#allocation9], 0
    %30 = vsyncpa [#allocation12], 0
    %31 = vsyncpa [#allocation15], 0
    %32 = vsyncpa [#allocation7], 0
    // Predicated region
    $region2: #{tpu_custom_call.1} parent=1 // pred_check
      _
    $region3: #{tpu_custom_call.1} parent=1 // pred_check_branch
      %34 = sbr.rel (0) target = $region5
    $region4: #{tpu_custom_call.1} parent=1 // pred_region
      %s36 = ssub.s32 128, 128
      %37 = vsyncadd [#allocation6], %s36
      %s38 = sshll.u32 [#allocation5], 4
      %s39 = int_to_ptr.vmem [resolvable:$true] %s38
      %44 = dma.hbm_to_vmem [thread:$0]  %s0, 128, %s39, [#allocation6], 32, 32, 2
    $region5: #{tpu_custom_call.1} parent=1 // pred_fallthru
      _
    // Predicated region
    $region6: #{tpu_custom_call.1} parent=1 // pred_check
      _
    $region7: #{tpu_custom_call.1} parent=1 // pred_check_branch
      %46 = sbr.rel (0) target = $region9
    $region8: #{tpu_custom_call.1} parent=1 // pred_region
      _
    $region9: #{tpu_custom_call.1} parent=1 // pred_fallthru
      _
    // Predicated region
    $region10: #{tpu_custom_call.1} parent=1 // pred_check
      _
    $region11: #{tpu_custom_call.1} parent=1 // pred_check_branch
      %48 = sbr.rel (0) target = $region13
    $region12: #{tpu_custom_call.1} parent=1 // pred_region
      %s50 = ssub.s32 256, 256
      %51 = vsyncadd [#allocation9], %s50
      %s52 = sshll.u32 [#allocation8], 4
      %s53 = int_to_ptr.vmem [resolvable:$true] %s52
      %58 = dma.hbm_to_vmem [thread:$0]  %s2, 256, %s53, [#allocation9], 128, 128, 8
    $region13: #{tpu_custom_call.1} parent=1 // pred_fallthru
      _
    // Predicated region
    $region14: #{tpu_custom_call.1} parent=1 // pred_check
      _
    $region15: #{tpu_custom_call.1} parent=1 // pred_check_branch
      %60 = sbr.rel (0) target = $region17
    $region16: #{tpu_custom_call.1} parent=1 // pred_region
      %s62 = ssub.s32 256, 256
      %63 = vsyncadd [#allocation9], %s62
      %s64 = sshll.u32 [#allocation10], 4
      %s65 = int_to_ptr.vmem [resolvable:$true] %s64
      %70 = dma.hbm_to_vmem [thread:$0]  %s3, 256, %s65, [#allocation9], 128, 128, 8
    $region17: #{tpu_custom_call.1} parent=1 // pred_fallthru
      _
    // Predicated region
    $region18: #{tpu_custom_call.1} parent=1 // pred_check
      _
    $region19: #{tpu_custom_call.1} parent=1 // pred_check_branch
      %72 = sbr.rel (0) target = $region21
    $region20: #{tpu_custom_call.1} parent=1 // pred_region
      _
    $region21: #{tpu_custom_call.1} parent=1 // pred_fallthru
      _
    // Predicated region
    $region22: #{tpu_custom_call.1} parent=1 // pred_check
      _
    $region23: #{tpu_custom_call.1} parent=1 // pred_check_branch
      %74 = sbr.rel (0) target = $region25
    $region24: #{tpu_custom_call.1} parent=1 // pred_region
      _
    $region25: #{tpu_custom_call.1} parent=1 // pred_fallthru
      _
    // Predicated region
    $region26: #{tpu_custom_call.1} parent=1 // pred_check
      _
    $region27: #{tpu_custom_call.1} parent=1 // pred_check_branch
      %76 = sbr.rel (0) target = $region29
    $region28: #{tpu_custom_call.1} parent=1 // pred_region
      %s78 = ssub.s32 16, 16
      %79 = vsyncadd [#allocation12], %s78
      %s81 = sshll.u32 [#allocation11], 4
      %s82 = int_to_ptr.vmem [resolvable:$true] %s81
      %84 = dma.hbm_to_vmem [thread:$0]  %s6, 16, %s82, [#allocation12]
    $region29: #{tpu_custom_call.1} parent=1 // pred_fallthru
      _
    // Predicated region
    $region30: #{tpu_custom_call.1} parent=1 // pred_check
      _
    $region31: #{tpu_custom_call.1} parent=1 // pred_check_branch
      %86 = sbr.rel (0) target = $region33
    $region32: #{tpu_custom_call.1} parent=1 // pred_region
      _
    $region33: #{tpu_custom_call.1} parent=1 // pred_fallthru
      _
    // Predicated region
    $region34: #{tpu_custom_call.1} parent=1 // pred_check
      _
    $region35: #{tpu_custom_call.1} parent=1 // pred_check_branch
      %88 = sbr.rel (0) target = $region37
    $region36: #{tpu_custom_call.1} parent=1 // pred_region
      %s90 = ssub.s32 64, 64
      %91 = vsyncadd [#allocation12], %s90
      %s93 = sshll.u32 [#allocation13], 4
      %s94 = int_to_ptr.vmem [resolvable:$true] %s93
      %96 = dma.hbm_to_vmem [thread:$0]  %s8, 64, %s94, [#allocation12]
    $region37: #{tpu_custom_call.1} parent=1 // pred_fallthru
      _
    // Predicated region
    $region38: #{tpu_custom_call.1} parent=1 // pred_check
      _
    $region39: #{tpu_custom_call.1} parent=1 // pred_check_branch
      %98 = sbr.rel (0) target = $region41
    $region40: #{tpu_custom_call.1} parent=1 // pred_region
      _
    $region41: #{tpu_custom_call.1} parent=1 // pred_fallthru
      _
    // Predicated region
    $region42: #{tpu_custom_call.1} parent=1 // pred_check
      _
    $region43: #{tpu_custom_call.1} parent=1 // pred_check_branch
      %100 = sbr.rel (0) target = $region45
    $region44: #{tpu_custom_call.1} parent=1 // pred_region
      %s102 = ssub.s32 1024, 1024
      %103 = vsyncadd [#allocation15], %s102
      %s104 = sshll.u32 [#allocation14], 4
      %s105 = int_to_ptr.vmem [resolvable:$true] %s104
      %110 = dma.hbm_to_vmem [thread:$0]  %s10, 1024, %s105, [#allocation15], 256, 256, 16
    $region45: #{tpu_custom_call.1} parent=1 // pred_fallthru
      _
    // Predicated region
    $region46: #{tpu_custom_call.1} parent=1 // pred_check
      _
    $region47: #{tpu_custom_call.1} parent=1 // pred_check_branch
      %112 = sbr.rel (0) target = $region49
    $region48: #{tpu_custom_call.1} parent=1 // pred_region
      _
    $region49: #{tpu_custom_call.1} parent=1 // pred_fallthru
      _
    // Predicated region
    $region50: #{tpu_custom_call.1} parent=1 // pred_check
      _
    $region51: #{tpu_custom_call.1} parent=1 // pred_check_branch
      %114 = sbr.rel (0) target = $region53
    $region52: #{tpu_custom_call.1} parent=1 // pred_region
      _
    $region53: #{tpu_custom_call.1} parent=1 // pred_fallthru
      _
    // Predicated region
    $region54: #{tpu_custom_call.1} parent=1 // pred_check
      _
    $region55: #{tpu_custom_call.1} parent=1 // pred_check_branch
      %116 = sbr.rel (0) target = $region57
    $region56: #{tpu_custom_call.1} parent=1 // pred_region
      _
    $region57: #{tpu_custom_call.1} parent=1 // pred_fallthru
      _
    // Predicated region
    $region58: #{tpu_custom_call.1} parent=1 // pred_check
      _
    $region59: #{tpu_custom_call.1} parent=1 // pred_check_branch
      %118 = sbr.rel (0) target = $region61
    $region60: #{tpu_custom_call.1} parent=1 // pred_region
      _
    $region61: #{tpu_custom_call.1} parent=1 // pred_fallthru
      _
    // Predicated region
    $region62: #{tpu_custom_call.1} parent=1 // pred_check
      _
    $region63: #{tpu_custom_call.1} parent=1 // pred_check_branch
      %120 = sbr.rel (0) target = $region65
    $region64: #{tpu_custom_call.1} parent=1 // pred_region
      _
    $region65: #{tpu_custom_call.1} parent=1 // pred_fallthru
      _
    // Predicated region
    $region66: #{tpu_custom_call.1} parent=1 // pred_check
      _
    $region67: #{tpu_custom_call.1} parent=1 // pred_check_branch
      %122 = sbr.rel (0) target = $region69
    $region68: #{tpu_custom_call.1} parent=1 // pred_region
      _
    $region69: #{tpu_custom_call.1} parent=1 // pred_fallthru
      _
    // Predicated region
    $region70: #{tpu_custom_call.1} parent=1 // pred_check
      _
    $region71: #{tpu_custom_call.1} parent=1 // pred_check_branch
      %124 = sbr.rel (0) target = $region73
    $region72: #{tpu_custom_call.1} parent=1 // pred_region
      _
    $region73: #{tpu_custom_call.1} parent=1 // pred_fallthru
      _
    // Predicated region
    $region74: #{tpu_custom_call.1} parent=1 // pred_check
      _
    $region75: #{tpu_custom_call.1} parent=1 // pred_check_branch
      %126 = sbr.rel (0) target = $region77
    $region76: #{tpu_custom_call.1} parent=1 // pred_region
      _
    $region77: #{tpu_custom_call.1} parent=1 // pred_fallthru
      _
    // Predicated region
    $region78: #{tpu_custom_call.1} parent=1 // pred_check
      _
    $region79: #{tpu_custom_call.1} parent=1 // pred_check_branch
      %128 = sbr.rel (0) target = $region81
    $region80: #{tpu_custom_call.1} parent=1 // pred_region
      %129 = dma.done [#allocation6], 128
    $region81: #{tpu_custom_call.1} parent=1 // pred_fallthru
      _
    // Predicated region
    $region82: #{tpu_custom_call.1} parent=1 // pred_check
      _
    $region83: #{tpu_custom_call.1} parent=1 // pred_check_branch
      %131 = sbr.rel (0) target = $region85
    $region84: #{tpu_custom_call.1} parent=1 // pred_region
      %132 = dma.done [#allocation9], 256
    $region85: #{tpu_custom_call.1} parent=1 // pred_fallthru
      _
    // Predicated region
    $region86: #{tpu_custom_call.1} parent=1 // pred_check
      _
    $region87: #{tpu_custom_call.1} parent=1 // pred_check_branch
      %134 = sbr.rel (0) target = $region89
    $region88: #{tpu_custom_call.1} parent=1 // pred_region
      %135 = dma.done [#allocation9], 256
    $region89: #{tpu_custom_call.1} parent=1 // pred_fallthru
      _
    // Predicated region
    $region90: #{tpu_custom_call.1} parent=1 // pred_check
      _
    $region91: #{tpu_custom_call.1} parent=1 // pred_check_branch
      %137 = sbr.rel (0) target = $region93
    $region92: #{tpu_custom_call.1} parent=1 // pred_region
      %138 = dma.done [#allocation12], 16
    $region93: #{tpu_custom_call.1} parent=1 // pred_fallthru
      _
    // Predicated region
    $region94: #{tpu_custom_call.1} parent=1 // pred_check
      _
    $region95: #{tpu_custom_call.1} parent=1 // pred_check_branch
      %140 = sbr.rel (0) target = $region97
    $region96: #{tpu_custom_call.1} parent=1 // pred_region
      %141 = dma.done [#allocation12], 64
    $region97: #{tpu_custom_call.1} parent=1 // pred_fallthru
      _
    // Predicated region
    $region98: #{tpu_custom_call.1} parent=1 // pred_check
      _
    $region99: #{tpu_custom_call.1} parent=1 // pred_check_branch
      %143 = sbr.rel (0) target = $region101
    $region100: #{tpu_custom_call.1} parent=1 // pred_region
      %144 = dma.done [#allocation15], 1024
    $region101: #{tpu_custom_call.1} parent=1 // pred_fallthru
      _
    %p145 = scmp.eq.s32.totalorder 0, 0
    // Predicated region
    $region102: #{tpu_custom_call.1} parent=1 // pred_check
      %p146 = pneg %p145
    $region103: #{tpu_custom_call.1} parent=1 // pred_check_branch
      %148 = sbr.rel (%p146) target = $region105
    $region104: #{tpu_custom_call.1} parent=1 // pred_region
      %v149 = vld [vmem:[#allocation8] sm:$0xff]
      %v150 = vld [vmem:[#allocation8 + $0x8] sm:$0xff]
      %vm151 = vcmask 130048
      %152 = vst.msk [vmem:[#allocation2] sm:$0xff] %vm151, %v149
      %153 = vst.msk [vmem:[#allocation2 + $0x8] sm:$0xff] %vm151, %v150
      %v154 = vld [vmem:[#allocation10] sm:$0xff]
      %v155 = vld [vmem:[#allocation10 + $0x8] sm:$0xff]
      %vm156 = vcmask 261120
      %157 = vst.msk [vmem:[#allocation3] sm:$0xff] %vm156, %v154
      %158 = vst.msk [vmem:[#allocation3 + $0x8] sm:$0xff] %vm156, %v155
    $region105: #{tpu_custom_call.1} parent=1 // pred_fallthru
      _
    %v159 = vld [vmem:[%s4] sm:$0xff]
    %v160 = vld [vmem:[%s4 + $0x8] sm:$0xff]
    %v161 = vld [vmem:[#allocation4] sm:$0x1]
    %v162 = vld [vmem:[#allocation2] sm:$0xff]
    %v163 = vld [vmem:[#allocation2 + $0x8] sm:$0xff]
    %v164 = vld [vmem:[#allocation3] sm:$0xff]
    %v165 = vld [vmem:[#allocation3 + $0x8] sm:$0xff]
    %v166 = vld [vmem:[#allocation5] sm:$0x3]
    %v167 = vld [vmem:[%s1] sm:$0xff]
    %v168 = vld [vmem:[%s1 + $0x8] sm:$0xff]
    %v169 = vld [vmem:[%s7] sm:$0xff]
    %v170 = vld [vmem:[%s7 + $0x8] sm:$0xff]
    %v171 = vld [vmem:[%s7 + $0x10] sm:$0xff]
    %v172 = vld [vmem:[%s7 + $0x18] sm:$0xff]
    %v173 = vld [vmem:[%s7 + $0x20] sm:$0xff]
    %v174 = vld [vmem:[%s7 + $0x28] sm:$0xff]
    %v175 = vld [vmem:[%s7 + $0x30] sm:$0xff]
    %v176 = vld [vmem:[%s7 + $0x38] sm:$0xff]
    %v177 = vld [vmem:[#allocation13] sm:$0xf]
    %v179 = vlaneseq
    %v180 = vshrl.u32 %v179, 7
    %v181 = vsub.s32 0, %v180
    %v182 = vrot.slane %v177, %v181
    %v183 = vlaneseq
    %v184 = vshrl.u32 %v183, 7
    %v185 = vsub.s32 1, %v184
    %v186 = vrot.slane %v177, %v185
    %v187 = vlaneseq
    %v188 = vshrl.u32 %v187, 7
    %v189 = vsub.s32 2, %v188
    %v190 = vrot.slane %v177, %v189
    %v191 = vlaneseq
    %v192 = vshrl.u32 %v191, 7
    %v193 = vsub.s32 3, %v192
    %v194 = vrot.slane %v177, %v193
    %vm199 = vcmask 130048
    %v201 = vsel %vm199, %v162, 0
    %v204 = vsel %vm199, %v163, 0
    %206 = vmatprep.subr.mxu0 %v170
    %207 = vmatpush1.msra.mxu0 %v169
    %208 = vmatprep.subr.mxu0 %v174
    %209 = vmatpush1.msra.mxu0 %v173
    %210 = vmatprep.subr.mxu0 0.0
    %211 = vmatpush1.msra.mxu0 0.0
    %212 = vmatprep.subr.mxu0 0.0
    %213 = vmatpush1.msra.mxu0 0.0
    %214 = vmatprep.subr.mxu0 0.0
    %215 = vmatpush1.msra.mxu0 0.0
    %216 = vmatprep.subr.mxu0 0.0
    %217 = vmatpush1.msra.mxu0 0.0
    %218 = vmatprep.subr.mxu0 0.0
    %219 = vmatpush1.msra.mxu0 0.0
    %220 = vmatprep.subr.mxu0 0.0
    %221 = vmatpush1.msra.mxu0 0.0
    %222 = vmatprep.subr.mxu0 0.0
    %223 = vmatpush1.msra.mxu0 0.0
    %224 = vmatprep.subr.mxu0 0.0
    %225 = vmatpush1.msra.mxu0 0.0
    %226 = vmatprep.subr.mxu0 0.0
    %227 = vmatpush1.msra.mxu0 0.0
    %228 = vmatprep.subr.mxu0 0.0
    %229 = vmatpush1.msra.mxu0 0.0
    %230 = vmatprep.subr.mxu0 0.0
    %231 = vmatpush1.msra.mxu0 0.0
    %232 = vmatprep.subr.mxu0 0.0
    %233 = vmatpush1.msra.mxu0 0.0
    %234 = vmatprep.subr.mxu0 0.0
    %235 = vmatpush1.msra.mxu0 0.0
    %236 = vmatprep.subr.mxu0 0.0
    %237 = vmatpush1.msra.mxu0 0.0
    %238 = vmatprep.subr.mxu0 0.0
    %239 = vmatpush1.msra.mxu0 0.0
    %240 = vmatprep.subr.mxu0 0.0
    %241 = vmatpush1.msra.mxu0 0.0
    %242 = vmatprep.subr.mxu0 0.0
    %243 = vmatpush1.msra.mxu0 0.0
    %244 = vmatprep.subr.mxu0 0.0
    %245 = vmatpush1.msra.mxu0 0.0
    %246 = vmatprep.subr.mxu0 0.0
    %247 = vmatpush1.msra.mxu0 0.0
    %248 = vmatprep.subr.mxu0 0.0
    %249 = vmatpush1.msra.mxu0 0.0
    %250 = vmatprep.subr.mxu0 0.0
    %251 = vmatpush1.msra.mxu0 0.0
    %252 = vmatprep.subr.mxu0 0.0
    %253 = vmatpush1.msra.mxu0 0.0
    %254 = vmatprep.subr.mxu0 0.0
    %255 = vmatpush1.msra.mxu0 0.0
    %256 = vmatprep.subr.mxu0 0.0
    %257 = vmatpush1.msra.mxu0 0.0
    %258 = vmatprep.subr.mxu0 0.0
    %259 = vmatpush1.msra.mxu0 0.0
    %260 = vmatprep.subr.mxu0 0.0
    %261 = vmatpush1.msra.mxu0 0.0
    %262 = vmatprep.subr.mxu0 0.0
    %263 = vmatpush1.msra.mxu0 0.0
    %264 = vmatprep.subr.mxu0 0.0
    %265 = vmatpush1.msra.mxu0 0.0
    %266 = vmatprep.subr.mxu0 0.0
    %267 = vmatpush1.msra.mxu0 0.0
    %268 = vmatprep.subr.mxu0 0.0
    %269 = vmatpush1.msra.mxu0 0.0
    %270 = vmatprep.mubr.f32.mxu0 0.0
    %271 = vmatmul.mubr.f32.gmra.mrb[0].mxu0 %v201
    %v272 = vpop.f32.mrb[0].mxu0
    %v273 = vadd.f32 %v182, %v272
    %v274 = vpop.f32.mrb[0].mxu0
    %v275 = vadd.f32 %v186, %v274
    %276 = vmatprep.mubr.f32.mxu0 0.0
    %277 = vmatmul.mubr.f32.gmra.mrb[0].mxu0 %v204
    %v278 = vpop.f32.mrb[0].mxu0
    %v279 = vadd.f32 %v182, %v278
    %v280 = vpop.f32.mrb[0].mxu0
    %v281 = vadd.f32 %v186, %v280
    %282 = vdwg.mxu0
    %283 = vmatprep.subr.mxu0 %v172
    %284 = vmatpush1.msra.mxu0 %v171
    %285 = vmatprep.subr.mxu0 %v176
    %286 = vmatpush1.msra.mxu0 %v175
    %287 = vmatprep.subr.mxu0 0.0
    %288 = vmatpush1.msra.mxu0 0.0
    %289 = vmatprep.subr.mxu0 0.0
    %290 = vmatpush1.msra.mxu0 0.0
    %291 = vmatprep.subr.mxu0 0.0
    %292 = vmatpush1.msra.mxu0 0.0
    %293 = vmatprep.subr.mxu0 0.0
    %294 = vmatpush1.msra.mxu0 0.0
    %295 = vmatprep.subr.mxu0 0.0
    %296 = vmatpush1.msra.mxu0 0.0
    %297 = vmatprep.subr.mxu0 0.0
    %298 = vmatpush1.msra.mxu0 0.0
    %299 = vmatprep.subr.mxu0 0.0
    %300 = vmatpush1.msra.mxu0 0.0
    %301 = vmatprep.subr.mxu0 0.0
    %302 = vmatpush1.msra.mxu0 0.0
    %303 = vmatprep.subr.mxu0 0.0
    %304 = vmatpush1.msra.mxu0 0.0
    %305 = vmatprep.subr.mxu0 0.0
    %306 = vmatpush1.msra.mxu0 0.0
    %307 = vmatprep.subr.mxu0 0.0
    %308 = vmatpush1.msra.mxu0 0.0
    %309 = vmatprep.subr.mxu0 0.0
    %310 = vmatpush1.msra.mxu0 0.0
    %311 = vmatprep.subr.mxu0 0.0
    %312 = vmatpush1.msra.mxu0 0.0
    %313 = vmatprep.subr.mxu0 0.0
    %314 = vmatpush1.msra.mxu0 0.0
    %315 = vmatprep.subr.mxu0 0.0
    %316 = vmatpush1.msra.mxu0 0.0
    %317 = vmatprep.subr.mxu0 0.0
    %318 = vmatpush1.msra.mxu0 0.0
    %319 = vmatprep.subr.mxu0 0.0
    %320 = vmatpush1.msra.mxu0 0.0
    %321 = vmatprep.subr.mxu0 0.0
    %322 = vmatpush1.msra.mxu0 0.0
    %323 = vmatprep.subr.mxu0 0.0
    %324 = vmatpush1.msra.mxu0 0.0
    %325 = vmatprep.subr.mxu0 0.0
    %326 = vmatpush1.msra.mxu0 0.0
    %327 = vmatprep.subr.mxu0 0.0
    %328 = vmatpush1.msra.mxu0 0.0
    %329 = vmatprep.subr.mxu0 0.0
    %330 = vmatpush1.msra.mxu0 0.0
    %331 = vmatprep.subr.mxu0 0.0
    %332 = vmatpush1.msra.mxu0 0.0
    %333 = vmatprep.subr.mxu0 0.0
    %334 = vmatpush1.msra.mxu0 0.0
    %335 = vmatprep.subr.mxu0 0.0
    %336 = vmatpush1.msra.mxu0 0.0
    %337 = vmatprep.subr.mxu0 0.0
    %338 = vmatpush1.msra.mxu0 0.0
    %339 = vmatprep.subr.mxu0 0.0
    %340 = vmatpush1.msra.mxu0 0.0
    %341 = vmatprep.subr.mxu0 0.0
    %342 = vmatpush1.msra.mxu0 0.0
    %343 = vmatprep.subr.mxu0 0.0
    %344 = vmatpush1.msra.mxu0 0.0
    %345 = vmatprep.subr.mxu0 0.0
    %346 = vmatpush1.msra.mxu0 0.0
    %347 = vmatprep.mubr.f32.mxu0 0.0
    %348 = vmatmul.mubr.f32.gmra.mrb[0].mxu0 %v201
    %v349 = vpop.f32.mrb[0].mxu0
    %v350 = vadd.f32 %v190, %v349
    %v351 = vpop.f32.mrb[0].mxu0
    %v352 = vadd.f32 %v194, %v351
    %353 = vmatprep.mubr.f32.mxu0 0.0
    %354 = vmatmul.mubr.f32.gmra.mrb[0].mxu0 %v204
    %v355 = vpop.f32.mrb[0].mxu0
    %v356 = vadd.f32 %v190, %v355
    %v357 = vpop.f32.mrb[0].mxu0
    %v358 = vadd.f32 %v194, %v357
    %359 = vdwg.mxu0
    %v360 = vmax.f32 %v275, 0.0
    %v361 = vmax.f32 %v281, 0.0
    %vm362 = vcmp.ne.f32.partialorder %v275, %v275
    %vm363 = vcmp.ne.f32.partialorder %v281, %v281
    %v364 = vadd.f32 %v275, 0.0
    %v365 = vadd.f32 %v281, 0.0
    %v366 = vand.u32 2147483647, %v275
    %v367 = vand.u32 2147483647, %v281
    %v368 = vsub.f32 0.0, %v366
    %v369 = vsub.f32 0.0, %v367
    %v370 = vmul.f32 %v368, 1.442695
    %v371 = vpow.pop %v370
    %v372 = vmul.f32 %v369, 1.442695
    %v373 = vpow.pop %v372
    %v374 = vadd.f32 %v371, 1.0
    %v375 = vlog2.pop %v374
    %v376 = vmul.f32 %v375, 0.6931472
    %v377 = vmul.f32 -0.5, %v371
    %v378 = vadd.f32 %v377, 1.0
    %v379 = vmul.f32 %v378, %v371
    %v380 = vand.u32 2147483647, %v371
    %vm381 = vcmp.lt.f32.partialorder %v380, 0.0004427343
    %v382 = vsel %vm381, %v379, %v376
    %v383 = vadd.f32 %v373, 1.0
    %v384 = vlog2.pop %v383
    %v385 = vmul.f32 %v384, 0.6931472
    %v386 = vmul.f32 -0.5, %v373
    %v387 = vadd.f32 %v386, 1.0
    %v388 = vmul.f32 %v387, %v373
    %v389 = vand.u32 2147483647, %v373
    %vm390 = vcmp.lt.f32.partialorder %v389, 0.0004427343
    %v391 = vsel %vm390, %v388, %v385
    %v392 = vadd.f32 %v360, %v382
    %v393 = vadd.f32 %v361, %v391
    %v394 = vsel %vm362, %v364, %v392
    %v395 = vsel %vm363, %v365, %v393
    %v396 = vld [vmem:[%s5] sm:$0xff]
    %v397 = vld [vmem:[%s5 + $0x8] sm:$0xff]
    %v398 = vld [vmem:[%s5 + $0x10] sm:$0xff]
    %v399 = vld [vmem:[%s5 + $0x18] sm:$0xff]
    %v400 = vld [vmem:[%s5 + $0x20] sm:$0xff]
    %v401 = vld [vmem:[%s5 + $0x28] sm:$0xff]
    %v402 = vld [vmem:[%s5 + $0x30] sm:$0xff]
    %v403 = vld [vmem:[%s5 + $0x38] sm:$0xff]
    %v404 = vld [vmem:[#allocation11] sm:$0x1]
    %v406 = vlaneseq
    %v407 = vshrl.u32 %v406, 7
    %v408 = vsub.s32 0, %v407
    %v409 = vrot.slane %v404, %v408
    %vm411 = vcmask 523264
    %v413 = vsel %vm411, %v166, 0
    %415 = vmatprep.subr.mxu0 0.0
    %416 = vmatpush1.msra.mxu0 %v396
    %417 = vmatprep.subr.mxu0 0.0
    %418 = vmatpush1.msra.mxu0 %v397
    %419 = vmatprep.subr.mxu0 0.0
    %420 = vmatpush1.msra.mxu0 %v398
    %421 = vmatprep.subr.mxu0 0.0
    %422 = vmatpush1.msra.mxu0 %v399
    %423 = vmatprep.subr.mxu0 0.0
    %424 = vmatpush1.msra.mxu0 %v400
    %425 = vmatprep.subr.mxu0 0.0
    %426 = vmatpush1.msra.mxu0 %v401
    %427 = vmatprep.subr.mxu0 0.0
    %428 = vmatpush1.msra.mxu0 %v402
    %429 = vmatprep.subr.mxu0 0.0
    %430 = vmatpush1.msra.mxu0 %v403
    %431 = vmatprep.subr.mxu0 0.0
    %432 = vmatpush1.msra.mxu0 0.0
    %433 = vmatprep.subr.mxu0 0.0
    %434 = vmatpush1.msra.mxu0 0.0
    %435 = vmatprep.subr.mxu0 0.0
    %436 = vmatpush1.msra.mxu0 0.0
    %437 = vmatprep.subr.mxu0 0.0
    %438 = vmatpush1.msra.mxu0 0.0
    %439 = vmatprep.subr.mxu0 0.0
    %440 = vmatpush1.msra.mxu0 0.0
    %441 = vmatprep.subr.mxu0 0.0
    %442 = vmatpush1.msra.mxu0 0.0
    %443 = vmatprep.subr.mxu0 0.0
    %444 = vmatpush1.msra.mxu0 0.0
    %445 = vmatprep.subr.mxu0 0.0
    %446 = vmatpush1.msra.mxu0 0.0
    %447 = vmatprep.subr.mxu0 0.0
    %448 = vmatpush1.msra.mxu0 0.0
    %449 = vmatprep.subr.mxu0 0.0
    %450 = vmatpush1.msra.mxu0 0.0
    %451 = vmatprep.subr.mxu0 0.0
    %452 = vmatpush1.msra.mxu0 0.0
    %453 = vmatprep.subr.mxu0 0.0
    %454 = vmatpush1.msra.mxu0 0.0
    %455 = vmatprep.subr.mxu0 0.0
    %456 = vmatpush1.msra.mxu0 0.0
    %457 = vmatprep.subr.mxu0 0.0
    %458 = vmatpush1.msra.mxu0 0.0
    %459 = vmatprep.subr.mxu0 0.0
    %460 = vmatpush1.msra.mxu0 0.0
    %461 = vmatprep.subr.mxu0 0.0
    %462 = vmatpush1.msra.mxu0 0.0
    %463 = vmatprep.subr.mxu0 0.0
    %464 = vmatpush1.msra.mxu0 0.0
    %465 = vmatprep.subr.mxu0 0.0
    %466 = vmatpush1.msra.mxu0 0.0
    %467 = vmatprep.subr.mxu0 0.0
    %468 = vmatpush1.msra.mxu0 0.0
    %469 = vmatprep.subr.mxu0 0.0
    %470 = vmatpush1.msra.mxu0 0.0
    %471 = vmatprep.subr.mxu0 0.0
    %472 = vmatpush1.msra.mxu0 0.0
    %473 = vmatprep.subr.mxu0 0.0
    %474 = vmatpush1.msra.mxu0 0.0
    %475 = vmatprep.subr.mxu0 0.0
    %476 = vmatpush1.msra.mxu0 0.0
    %477 = vmatprep.subr.mxu0 0.0
    %478 = vmatpush1.msra.mxu0 0.0
    %479 = vmatprep.mubr.f32.mxu0 0.0
    %480 = vmatmul.mubr.f32.gmra.mrb[0].mxu0 %v413
    %v481 = vpop.f32.mrb[0].mxu0
    %v482 = vadd.f32 %v409, %v481
    %v483 = vpop.f32.mrb[0].mxu0
    %484 = vdwg.mxu0
    %v485 = vmax.f32 %v482, 0.0
    %v486 = vld [vmem:[#allocation14] sm:$0xff]
    %v487 = vld [vmem:[#allocation14 + $0x8] sm:$0xff]
    %v488 = vld [vmem:[#allocation14 + $0x10] sm:$0xff]
    %v489 = vld [vmem:[#allocation14 + $0x18] sm:$0xff]
    %v490 = vld [vmem:[#allocation14 + $0x20] sm:$0xff]
    %v491 = vld [vmem:[#allocation14 + $0x28] sm:$0xff]
    %v492 = vld [vmem:[#allocation14 + $0x30] sm:$0xff]
    %v493 = vld [vmem:[#allocation14 + $0x38] sm:$0xff]
    %vm494 = vcmask 261120
    %v496 = vsel %vm494, %v485, 0
    %498 = vmatprep.subr.mxu0 %v487
    %499 = vmatpush1.msra.mxu0 %v486
    %500 = vmatprep.subr.mxu0 %v489
    %501 = vmatpush1.msra.mxu0 %v488
    %502 = vmatprep.subr.mxu0 %v491
    %503 = vmatpush1.msra.mxu0 %v490
    %504 = vmatprep.subr.mxu0 %v493
    %505 = vmatpush1.msra.mxu0 %v492
    %506 = vmatprep.subr.mxu0 0.0
    %507 = vmatpush1.msra.mxu0 0.0
    %508 = vmatprep.subr.mxu0 0.0
    %509 = vmatpush1.msra.mxu0 0.0
    %510 = vmatprep.subr.mxu0 0.0
    %511 = vmatpush1.msra.mxu0 0.0
    %512 = vmatprep.subr.mxu0 0.0
    %513 = vmatpush1.msra.mxu0 0.0
    %514 = vmatprep.subr.mxu0 0.0
    %515 = vmatpush1.msra.mxu0 0.0
    %516 = vmatprep.subr.mxu0 0.0
    %517 = vmatpush1.msra.mxu0 0.0
    %518 = vmatprep.subr.mxu0 0.0
    %519 = vmatpush1.msra.mxu0 0.0
    %520 = vmatprep.subr.mxu0 0.0
    %521 = vmatpush1.msra.mxu0 0.0
    %522 = vmatprep.subr.mxu0 0.0
    %523 = vmatpush1.msra.mxu0 0.0
    %524 = vmatprep.subr.mxu0 0.0
    %525 = vmatpush1.msra.mxu0 0.0
    %526 = vmatprep.subr.mxu0 0.0
    %527 = vmatpush1.msra.mxu0 0.0
    %528 = vmatprep.subr.mxu0 0.0
    %529 = vmatpush1.msra.mxu0 0.0
    %530 = vmatprep.subr.mxu0 0.0
    %531 = vmatpush1.msra.mxu0 0.0
    %532 = vmatprep.subr.mxu0 0.0
    %533 = vmatpush1.msra.mxu0 0.0
    %534 = vmatprep.subr.mxu0 0.0
    %535 = vmatpush1.msra.mxu0 0.0
    %536 = vmatprep.subr.mxu0 0.0
    %537 = vmatpush1.msra.mxu0 0.0
    %538 = vmatprep.subr.mxu0 0.0
    %539 = vmatpush1.msra.mxu0 0.0
    %540 = vmatprep.subr.mxu0 0.0
    %541 = vmatpush1.msra.mxu0 0.0
    %542 = vmatprep.subr.mxu0 0.0
    %543 = vmatpush1.msra.mxu0 0.0
    %544 = vmatprep.subr.mxu0 0.0
    %545 = vmatpush1.msra.mxu0 0.0
    %546 = vmatprep.subr.mxu0 0.0
    %547 = vmatpush1.msra.mxu0 0.0
    %548 = vmatprep.subr.mxu0 0.0
    %549 = vmatpush1.msra.mxu0 0.0
    %550 = vmatprep.subr.mxu0 0.0
    %551 = vmatpush1.msra.mxu0 0.0
    %552 = vmatprep.subr.mxu0 0.0
    %553 = vmatpush1.msra.mxu0 0.0
    %554 = vmatprep.subr.mxu0 0.0
    %555 = vmatpush1.msra.mxu0 0.0
    %556 = vmatprep.subr.mxu0 0.0
    %557 = vmatpush1.msra.mxu0 0.0
    %558 = vmatprep.subr.mxu0 0.0
    %559 = vmatpush1.msra.mxu0 0.0
    %560 = vmatprep.subr.mxu0 0.0
    %561 = vmatpush1.msra.mxu0 0.0
    %562 = vmatprep.mubr.f32.mxu0 0.0
    %563 = vmatmul.mubr.f32.gmra.mrb[0].mxu0 %v496
    %v564 = vpop.f32.mrb[0].mxu0
    %v565 = vadd.f32 0.0, %v564
    %v566 = vpop.f32.mrb[0].mxu0
    %v567 = vadd.f32 0.0, %v566
    %568 = vdwg.mxu0
    %vm569 = vcmask 15360
    %v571 = vsel %vm569, %v159, 0
    %v574 = vsel %vm569, %v160, 0
    %vm576 = vcmask 1041408
    %v578 = vsel %vm576, %v565, 0
    %v581 = vsel %vm576, %v567, 0
    %v583 = vsel %vm576, %v166, 0
    %585 = vmatprep.subr.mxu0 %v581
    %586 = vmatpush1.msra.mxu0 %v578
    %587 = vmatprep.subr.mxu0 0.0
    %588 = vmatpush1.msra.mxu0 0.0
    %589 = vmatprep.subr.mxu0 0.0
    %590 = vmatpush1.msra.mxu0 0.0
    %591 = vmatprep.subr.mxu0 0.0
    %592 = vmatpush1.msra.mxu0 0.0
    %593 = vmatprep.subr.mxu0 0.0
    %594 = vmatpush1.msra.mxu0 0.0
    %595 = vmatprep.subr.mxu0 0.0
    %596 = vmatpush1.msra.mxu0 0.0
    %597 = vmatprep.subr.mxu0 0.0
    %598 = vmatpush1.msra.mxu0 0.0
    %599 = vmatprep.subr.mxu0 0.0
    %600 = vmatpush1.msra.mxu0 0.0
    %601 = vmatprep.subr.mxu0 0.0
    %602 = vmatpush1.msra.mxu0 0.0
    %603 = vmatprep.subr.mxu0 0.0
    %604 = vmatpush1.msra.mxu0 0.0
    %605 = vmatprep.subr.mxu0 0.0
    %606 = vmatpush1.msra.mxu0 0.0
    %607 = vmatprep.subr.mxu0 0.0
    %608 = vmatpush1.msra.mxu0 0.0
    %609 = vmatprep.subr.mxu0 0.0
    %610 = vmatpush1.msra.mxu0 0.0
    %611 = vmatprep.subr.mxu0 0.0
    %612 = vmatpush1.msra.mxu0 0.0
    %613 = vmatprep.subr.mxu0 0.0
    %614 = vmatpush1.msra.mxu0 0.0
    %615 = vmatprep.subr.mxu0 0.0
    %616 = vmatpush1.msra.mxu0 0.0
    %617 = vmatprep.subr.mxu0 0.0
    %618 = vmatpush1.msra.mxu0 0.0
    %619 = vmatprep.subr.mxu0 0.0
    %620 = vmatpush1.msra.mxu0 0.0
    %621 = vmatprep.subr.mxu0 0.0
    %622 = vmatpush1.msra.mxu0 0.0
    %623 = vmatprep.subr.mxu0 0.0
    %624 = vmatpush1.msra.mxu0 0.0
    %625 = vmatprep.subr.mxu0 0.0
    %626 = vmatpush1.msra.mxu0 0.0
    %627 = vmatprep.subr.mxu0 0.0
    %628 = vmatpush1.msra.mxu0 0.0
    %629 = vmatprep.subr.mxu0 0.0
    %630 = vmatpush1.msra.mxu0 0.0
    %631 = vmatprep.subr.mxu0 0.0
    %632 = vmatpush1.msra.mxu0 0.0
    %633 = vmatprep.subr.mxu0 0.0
    %634 = vmatpush1.msra.mxu0 0.0
    %635 = vmatprep.subr.mxu0 0.0
    %636 = vmatpush1.msra.mxu0 0.0
    %637 = vmatprep.subr.mxu0 0.0
    %638 = vmatpush1.msra.mxu0 0.0
    %639 = vmatprep.subr.mxu0 0.0
    %640 = vmatpush1.msra.mxu0 0.0
    %641 = vmatprep.subr.mxu0 0.0
    %642 = vmatpush1.msra.mxu0 0.0
    %643 = vmatprep.subr.mxu0 0.0
    %644 = vmatpush1.msra.mxu0 0.0
    %645 = vmatprep.subr.mxu0 0.0
    %646 = vmatpush1.msra.mxu0 0.0
    %647 = vmatprep.subr.mxu0 0.0
    %648 = vmatpush1.msra.mxu0 0.0
    %649 = vmatprep.mubr.f32.mxu0 0.0
    %650 = vmatmul.mubr.f32.gmra.mrb[0].mxu0 %v571
    %v651 = vpop.f32.mrb[0].mxu0
    %v652 = vadd.f32 0.0, %v651
    %v653 = vpop.f32.mrb[0].mxu0
    %v654 = vadd.f32 0.0, %v653
    %655 = vmatprep.mubr.f32.mxu0 0.0
    %656 = vmatmul.mubr.f32.gmra.mrb[0].mxu0 %v574
    %v657 = vpop.f32.mrb[0].mxu0
    %v658 = vadd.f32 0.0, %v657
    %v659 = vpop.f32.mrb[0].mxu0
    %v660 = vadd.f32 0.0, %v659
    %661 = vdwg.mxu0
    %662 = vmatprep.subr.mxu0 0.0
    %663 = vmatpush1.msra.mxu0 %v583
    %664 = vmatprep.subr.mxu0 0.0
    %665 = vmatpush1.msra.mxu0 0.0
    %666 = vmatprep.subr.mxu0 0.0
    %667 = vmatpush1.msra.mxu0 0.0
    %668 = vmatprep.subr.mxu0 0.0
    %669 = vmatpush1.msra.mxu0 0.0
    %670 = vmatprep.subr.mxu0 0.0
    %671 = vmatpush1.msra.mxu0 0.0
    %672 = vmatprep.subr.mxu0 0.0
    %673 = vmatpush1.msra.mxu0 0.0
    %674 = vmatprep.subr.mxu0 0.0
    %675 = vmatpush1.msra.mxu0 0.0
    %676 = vmatprep.subr.mxu0 0.0
    %677 = vmatpush1.msra.mxu0 0.0
    %678 = vmatprep.subr.mxu0 0.0
    %679 = vmatpush1.msra.mxu0 0.0
    %680 = vmatprep.subr.mxu0 0.0
    %681 = vmatpush1.msra.mxu0 0.0
    %682 = vmatprep.subr.mxu0 0.0
    %683 = vmatpush1.msra.mxu0 0.0
    %684 = vmatprep.subr.mxu0 0.0
    %685 = vmatpush1.msra.mxu0 0.0
    %686 = vmatprep.subr.mxu0 0.0
    %687 = vmatpush1.msra.mxu0 0.0
    %688 = vmatprep.subr.mxu0 0.0
    %689 = vmatpush1.msra.mxu0 0.0
    %690 = vmatprep.subr.mxu0 0.0
    %691 = vmatpush1.msra.mxu0 0.0
    %692 = vmatprep.subr.mxu0 0.0
    %693 = vmatpush1.msra.mxu0 0.0
    %694 = vmatprep.subr.mxu0 0.0
    %695 = vmatpush1.msra.mxu0 0.0
    %696 = vmatprep.subr.mxu0 0.0
    %697 = vmatpush1.msra.mxu0 0.0
    %698 = vmatprep.subr.mxu0 0.0
    %699 = vmatpush1.msra.mxu0 0.0
    %700 = vmatprep.subr.mxu0 0.0
    %701 = vmatpush1.msra.mxu0 0.0
    %702 = vmatprep.subr.mxu0 0.0
    %703 = vmatpush1.msra.mxu0 0.0
    %704 = vmatprep.subr.mxu0 0.0
    %705 = vmatpush1.msra.mxu0 0.0
    %706 = vmatprep.subr.mxu0 0.0
    %707 = vmatpush1.msra.mxu0 0.0
    %708 = vmatprep.subr.mxu0 0.0
    %709 = vmatpush1.msra.mxu0 0.0
    %710 = vmatprep.subr.mxu0 0.0
    %711 = vmatpush1.msra.mxu0 0.0
    %712 = vmatprep.subr.mxu0 0.0
    %713 = vmatpush1.msra.mxu0 0.0
    %714 = vmatprep.subr.mxu0 0.0
    %715 = vmatpush1.msra.mxu0 0.0
    %716 = vmatprep.subr.mxu0 0.0
    %717 = vmatpush1.msra.mxu0 0.0
    %718 = vmatprep.subr.mxu0 0.0
    %719 = vmatpush1.msra.mxu0 0.0
    %720 = vmatprep.subr.mxu0 0.0
    %721 = vmatpush1.msra.mxu0 0.0
    %722 = vmatprep.subr.mxu0 0.0
    %723 = vmatpush1.msra.mxu0 0.0
    %724 = vmatprep.subr.mxu0 0.0
    %725 = vmatpush1.msra.mxu0 0.0
    %726 = vmatprep.mubr.f32.mxu0 0.0
    %727 = vmatmul.mubr.f32.gmra.mrb[0].mxu0 %v571
    %v728 = vpop.f32.mrb[0].mxu0
    %v729 = vadd.f32 0.0, %v728
    %v730 = vpop.f32.mrb[0].mxu0
    %731 = vmatprep.mubr.f32.mxu0 0.0
    %732 = vmatmul.mubr.f32.gmra.mrb[0].mxu0 %v574
    %v733 = vpop.f32.mrb[0].mxu0
    %v734 = vadd.f32 0.0, %v733
    %v735 = vpop.f32.mrb[0].mxu0
    %736 = vdwg.mxu0
    %v737 = vadd.f32 %v350, %v652
    %v738 = vadd.f32 %v352, %v654
    %v739 = vadd.f32 %v356, %v658
    %v740 = vadd.f32 %v358, %v660
    %v741 = vld [vmem:[%s9] sm:$0xff]
    %v742 = vld [vmem:[%s9 + $0x8] sm:$0xff]
    %v743 = vld [vmem:[%s9 + $0x10] sm:$0xff]
    %v744 = vld [vmem:[%s9 + $0x18] sm:$0xff]
    %v745 = vld [vmem:[%s9 + $0x20] sm:$0xff]
    %v746 = vld [vmem:[%s9 + $0x28] sm:$0xff]
    %v747 = vld [vmem:[%s9 + $0x30] sm:$0xff]
    %v748 = vld [vmem:[%s9 + $0x38] sm:$0xff]
    %v750 = vsel %vm494, %v164, 0
    %v753 = vsel %vm494, %v165, 0
    %755 = vmatprep.subr.mxu0 %v742
    %756 = vmatpush1.msra.mxu0 %v741
    %757 = vmatprep.subr.mxu0 %v744
    %758 = vmatpush1.msra.mxu0 %v743
    %759 = vmatprep.subr.mxu0 %v746
    %760 = vmatpush1.msra.mxu0 %v745
    %761 = vmatprep.subr.mxu0 %v748
    %762 = vmatpush1.msra.mxu0 %v747
    %763 = vmatprep.subr.mxu0 0.0
    %764 = vmatpush1.msra.mxu0 0.0
    %765 = vmatprep.subr.mxu0 0.0
    %766 = vmatpush1.msra.mxu0 0.0
    %767 = vmatprep.subr.mxu0 0.0
    %768 = vmatpush1.msra.mxu0 0.0
    %769 = vmatprep.subr.mxu0 0.0
    %770 = vmatpush1.msra.mxu0 0.0
    %771 = vmatprep.subr.mxu0 0.0
    %772 = vmatpush1.msra.mxu0 0.0
    %773 = vmatprep.subr.mxu0 0.0
    %774 = vmatpush1.msra.mxu0 0.0
    %775 = vmatprep.subr.mxu0 0.0
    %776 = vmatpush1.msra.mxu0 0.0
    %777 = vmatprep.subr.mxu0 0.0
    %778 = vmatpush1.msra.mxu0 0.0
    %779 = vmatprep.subr.mxu0 0.0
    %780 = vmatpush1.msra.mxu0 0.0
    %781 = vmatprep.subr.mxu0 0.0
    %782 = vmatpush1.msra.mxu0 0.0
    %783 = vmatprep.subr.mxu0 0.0
    %784 = vmatpush1.msra.mxu0 0.0
    %785 = vmatprep.subr.mxu0 0.0
    %786 = vmatpush1.msra.mxu0 0.0
    %787 = vmatprep.subr.mxu0 0.0
    %788 = vmatpush1.msra.mxu0 0.0
    %789 = vmatprep.subr.mxu0 0.0
    %790 = vmatpush1.msra.mxu0 0.0
    %791 = vmatprep.subr.mxu0 0.0
    %792 = vmatpush1.msra.mxu0 0.0
    %793 = vmatprep.subr.mxu0 0.0
    %794 = vmatpush1.msra.mxu0 0.0
    %795 = vmatprep.subr.mxu0 0.0
    %796 = vmatpush1.msra.mxu0 0.0
    %797 = vmatprep.subr.mxu0 0.0
    %798 = vmatpush1.msra.mxu0 0.0
    %799 = vmatprep.subr.mxu0 0.0
    %800 = vmatpush1.msra.mxu0 0.0
    %801 = vmatprep.subr.mxu0 0.0
    %802 = vmatpush1.msra.mxu0 0.0
    %803 = vmatprep.subr.mxu0 0.0
    %804 = vmatpush1.msra.mxu0 0.0
    %805 = vmatprep.subr.mxu0 0.0
    %806 = vmatpush1.msra.mxu0 0.0
    %807 = vmatprep.subr.mxu0 0.0
    %808 = vmatpush1.msra.mxu0 0.0
    %809 = vmatprep.subr.mxu0 0.0
    %810 = vmatpush1.msra.mxu0 0.0
    %811 = vmatprep.subr.mxu0 0.0
    %812 = vmatpush1.msra.mxu0 0.0
    %813 = vmatprep.subr.mxu0 0.0
    %814 = vmatpush1.msra.mxu0 0.0
    %815 = vmatprep.subr.mxu0 0.0
    %816 = vmatpush1.msra.mxu0 0.0
    %817 = vmatprep.subr.mxu0 0.0
    %818 = vmatpush1.msra.mxu0 0.0
    %819 = vmatprep.mubr.f32.mxu0 0.0
    %820 = vmatmul.mubr.f32.gmra.mrb[0].mxu0 %v750
    %v821 = vpop.f32.mrb[0].mxu0
    %v822 = vadd.f32 0.0, %v821
    %v823 = vpop.f32.mrb[0].mxu0
    %v824 = vadd.f32 0.0, %v823
    %825 = vmatprep.mubr.f32.mxu0 0.0
    %826 = vmatmul.mubr.f32.gmra.mrb[0].mxu0 %v753
    %v827 = vpop.f32.mrb[0].mxu0
    %v828 = vadd.f32 0.0, %v827
    %v829 = vpop.f32.mrb[0].mxu0
    %v830 = vadd.f32 0.0, %v829
    %831 = vdwg.mxu0
    %v832 = vadd.f32 %v737, %v822
    %v833 = vadd.f32 %v738, %v824
    %v834 = vadd.f32 %v739, %v828
    %v835 = vadd.f32 %v740, %v830
    %v836 = vmax.f32 %v833, 0.0
    %v837 = vmax.f32 %v835, 0.0
    %vm838 = vcmp.ne.f32.partialorder %v833, %v833
    %vm839 = vcmp.ne.f32.partialorder %v835, %v835
    %v840 = vadd.f32 %v833, 0.0
    %v841 = vadd.f32 %v835, 0.0
    %v842 = vand.u32 2147483647, %v833
    %v843 = vand.u32 2147483647, %v835
    %v844 = vsub.f32 0.0, %v842
    %v845 = vsub.f32 0.0, %v843
    %v846 = vmul.f32 %v844, 1.442695
    %v847 = vpow.pop %v846
    %v848 = vmul.f32 %v845, 1.442695
    %v849 = vpow.pop %v848
    %v850 = vadd.f32 %v847, 1.0
    %v851 = vlog2.pop %v850
    %v852 = vmul.f32 %v851, 0.6931472
    %v853 = vmul.f32 -0.5, %v847
    %v854 = vadd.f32 %v853, 1.0
    %v855 = vmul.f32 %v854, %v847
    %v856 = vand.u32 2147483647, %v847
    %vm857 = vcmp.lt.f32.partialorder %v856, 0.0004427343
    %v858 = vsel %vm857, %v855, %v852
    %v859 = vadd.f32 %v849, 1.0
    %v860 = vlog2.pop %v859
    %v861 = vmul.f32 %v860, 0.6931472
    %v862 = vmul.f32 -0.5, %v849
    %v863 = vadd.f32 %v862, 1.0
    %v864 = vmul.f32 %v863, %v849
    %v865 = vand.u32 2147483647, %v849
    %vm866 = vcmp.lt.f32.partialorder %v865, 0.0004427343
    %v867 = vsel %vm866, %v864, %v861
    %v868 = vadd.f32 %v836, %v858
    %v869 = vadd.f32 %v837, %v867
    %v870 = vsel %vm838, %v840, %v868
    %v871 = vsel %vm839, %v841, %v869
    %v872 = vmul.f32 %v870, %v167
    %v873 = vmul.f32 %v871, %v168
    %v874 = vadd.f32 %v832, %v872
    %v875 = vadd.f32 %v834, %v873
    %v876 = vsub.f32 %v874, %v273
    %v877 = vsub.f32 %v875, %v279
    %v878 = vrcp.pop %v394
    %v879 = vrcp.pop %v395
    %v880 = vmul.f32 %v876, %v878
    %v881 = vmul.f32 %v877, %v879
    %v882 = vld [vmem:[%s11] sm:$0xff]
    %v883 = vld [vmem:[%s11 + $0x8] sm:$0xff]
    %v884 = vld [vmem:[%s12] sm:$0x1]
    %v886 = vlaneseq
    %v887 = vshrl.u32 %v886, 7
    %v888 = vsub.s32 0, %v887
    %v889 = vrot.slane %v884, %v888
    %v892 = vsel %vm199, %v874, 0
    %v895 = vsel %vm199, %v875, 0
    %897 = vmatprep.subr.mxu0 0.0
    %898 = vmatpush1.msra.mxu0 %v882
    %899 = vmatprep.subr.mxu0 0.0
    %900 = vmatpush1.msra.mxu0 %v883
    %901 = vmatprep.subr.mxu0 0.0
    %902 = vmatpush1.msra.mxu0 0.0
    %903 = vmatprep.subr.mxu0 0.0
    %904 = vmatpush1.msra.mxu0 0.0
    %905 = vmatprep.subr.mxu0 0.0
    %906 = vmatpush1.msra.mxu0 0.0
    %907 = vmatprep.subr.mxu0 0.0
    %908 = vmatpush1.msra.mxu0 0.0
    %909 = vmatprep.subr.mxu0 0.0
    %910 = vmatpush1.msra.mxu0 0.0
    %911 = vmatprep.subr.mxu0 0.0
    %912 = vmatpush1.msra.mxu0 0.0
    %913 = vmatprep.subr.mxu0 0.0
    %914 = vmatpush1.msra.mxu0 0.0
    %915 = vmatprep.subr.mxu0 0.0
    %916 = vmatpush1.msra.mxu0 0.0
    %917 = vmatprep.subr.mxu0 0.0
    %918 = vmatpush1.msra.mxu0 0.0
    %919 = vmatprep.subr.mxu0 0.0
    %920 = vmatpush1.msra.mxu0 0.0
    %921 = vmatprep.subr.mxu0 0.0
    %922 = vmatpush1.msra.mxu0 0.0
    %923 = vmatprep.subr.mxu0 0.0
    %924 = vmatpush1.msra.mxu0 0.0
    %925 = vmatprep.subr.mxu0 0.0
    %926 = vmatpush1.msra.mxu0 0.0
    %927 = vmatprep.subr.mxu0 0.0
    %928 = vmatpush1.msra.mxu0 0.0
    %929 = vmatprep.subr.mxu0 0.0
    %930 = vmatpush1.msra.mxu0 0.0
    %931 = vmatprep.subr.mxu0 0.0
    %932 = vmatpush1.msra.mxu0 0.0
    %933 = vmatprep.subr.mxu0 0.0
    %934 = vmatpush1.msra.mxu0 0.0
    %935 = vmatprep.subr.mxu0 0.0
    %936 = vmatpush1.msra.mxu0 0.0
    %937 = vmatprep.subr.mxu0 0.0
    %938 = vmatpush1.msra.mxu0 0.0
    %939 = vmatprep.subr.mxu0 0.0
    %940 = vmatpush1.msra.mxu0 0.0
    %941 = vmatprep.subr.mxu0 0.0
    %942 = vmatpush1.msra.mxu0 0.0
    %943 = vmatprep.subr.mxu0 0.0
    %944 = vmatpush1.msra.mxu0 0.0
    %945 = vmatprep.subr.mxu0 0.0
    %946 = vmatpush1.msra.mxu0 0.0
    %947 = vmatprep.subr.mxu0 0.0
    %948 = vmatpush1.msra.mxu0 0.0
    %949 = vmatprep.subr.mxu0 0.0
    %950 = vmatpush1.msra.mxu0 0.0
    %951 = vmatprep.subr.mxu0 0.0
    %952 = vmatpush1.msra.mxu0 0.0
    %953 = vmatprep.subr.mxu0 0.0
    %954 = vmatpush1.msra.mxu0 0.0
    %955 = vmatprep.subr.mxu0 0.0
    %956 = vmatpush1.msra.mxu0 0.0
    %957 = vmatprep.subr.mxu0 0.0
    %958 = vmatpush1.msra.mxu0 0.0
    %959 = vmatprep.subr.mxu0 0.0
    %960 = vmatpush1.msra.mxu0 0.0
    %961 = vmatprep.mubr.f32.mxu0 0.0
    %962 = vmatmul.mubr.f32.gmra.mrb[0].mxu0 %v892
    %v963 = vpop.f32.mrb[0].mxu0
    %v964 = vadd.f32 %v889, %v963
    %v965 = vpop.f32.mrb[0].mxu0
    %966 = vmatprep.mubr.f32.mxu0 0.0
    %967 = vmatmul.mubr.f32.gmra.mrb[0].mxu0 %v895
    %v968 = vpop.f32.mrb[0].mxu0
    %v969 = vadd.f32 %v889, %v968
    %v970 = vpop.f32.mrb[0].mxu0
    %971 = vdwg.mxu0
    %v972 = vmax.f32 %v964, 0.0
    %v973 = vmax.f32 %v969, 0.0
    %v974 = vld [vmem:[%s13] sm:$0xff]
    %v975 = vld [vmem:[%s13 + $0x8] sm:$0xff]
    %v976 = vld [vmem:[%s13 + $0x10] sm:$0xff]
    %v977 = vld [vmem:[%s13 + $0x18] sm:$0xff]
    %v978 = vld [vmem:[%s14] sm:$0x1]
    %v980 = vlaneseq
    %v981 = vshrl.u32 %v980, 7
    %v982 = vsub.s32 0, %v981
    %v983 = vrot.slane %v978, %v982
    %v986 = vsel %vm494, %v972, 0
    %v989 = vsel %vm494, %v973, 0
    %991 = vmatprep.subr.mxu0 0.0
    %992 = vmatpush1.msra.mxu0 %v974
    %993 = vmatprep.subr.mxu0 0.0
    %994 = vmatpush1.msra.mxu0 %v975
    %995 = vmatprep.subr.mxu0 0.0
    %996 = vmatpush1.msra.mxu0 %v976
    %997 = vmatprep.subr.mxu0 0.0
    %998 = vmatpush1.msra.mxu0 %v977
    %999 = vmatprep.subr.mxu0 0.0
    %1000 = vmatpush1.msra.mxu0 0.0
    %1001 = vmatprep.subr.mxu0 0.0
    %1002 = vmatpush1.msra.mxu0 0.0
    %1003 = vmatprep.subr.mxu0 0.0
    %1004 = vmatpush1.msra.mxu0 0.0
    %1005 = vmatprep.subr.mxu0 0.0
    %1006 = vmatpush1.msra.mxu0 0.0
    %1007 = vmatprep.subr.mxu0 0.0
    %1008 = vmatpush1.msra.mxu0 0.0
    %1009 = vmatprep.subr.mxu0 0.0
    %1010 = vmatpush1.msra.mxu0 0.0
    %1011 = vmatprep.subr.mxu0 0.0
    %1012 = vmatpush1.msra.mxu0 0.0
    %1013 = vmatprep.subr.mxu0 0.0
    %1014 = vmatpush1.msra.mxu0 0.0
    %1015 = vmatprep.subr.mxu0 0.0
    %1016 = vmatpush1.msra.mxu0 0.0
    %1017 = vmatprep.subr.mxu0 0.0
    %1018 = vmatpush1.msra.mxu0 0.0
    %1019 = vmatprep.subr.mxu0 0.0
    %1020 = vmatpush1.msra.mxu0 0.0
    %1021 = vmatprep.subr.mxu0 0.0
    %1022 = vmatpush1.msra.mxu0 0.0
    %1023 = vmatprep.subr.mxu0 0.0
    %1024 = vmatpush1.msra.mxu0 0.0
    %1025 = vmatprep.subr.mxu0 0.0
    %1026 = vmatpush1.msra.mxu0 0.0
    %1027 = vmatprep.subr.mxu0 0.0
    %1028 = vmatpush1.msra.mxu0 0.0
    %1029 = vmatprep.subr.mxu0 0.0
    %1030 = vmatpush1.msra.mxu0 0.0
    %1031 = vmatprep.subr.mxu0 0.0
    %1032 = vmatpush1.msra.mxu0 0.0
    %1033 = vmatprep.subr.mxu0 0.0
    %1034 = vmatpush1.msra.mxu0 0.0
    %1035 = vmatprep.subr.mxu0 0.0
    %1036 = vmatpush1.msra.mxu0 0.0
    %1037 = vmatprep.subr.mxu0 0.0
    %1038 = vmatpush1.msra.mxu0 0.0
    %1039 = vmatprep.subr.mxu0 0.0
    %1040 = vmatpush1.msra.mxu0 0.0
    %1041 = vmatprep.subr.mxu0 0.0
    %1042 = vmatpush1.msra.mxu0 0.0
    %1043 = vmatprep.subr.mxu0 0.0
    %1044 = vmatpush1.msra.mxu0 0.0
    %1045 = vmatprep.subr.mxu0 0.0
    %1046 = vmatpush1.msra.mxu0 0.0
    %1047 = vmatprep.subr.mxu0 0.0
    %1048 = vmatpush1.msra.mxu0 0.0
    %1049 = vmatprep.subr.mxu0 0.0
    %1050 = vmatpush1.msra.mxu0 0.0
    %1051 = vmatprep.subr.mxu0 0.0
    %1052 = vmatpush1.msra.mxu0 0.0
    %1053 = vmatprep.subr.mxu0 0.0
    %1054 = vmatpush1.msra.mxu0 0.0
    %1055 = vmatprep.mubr.f32.mxu0 0.0
    %1056 = vmatmul.mubr.f32.gmra.mrb[0].mxu0 %v986
    %v1057 = vpop.f32.mrb[0].mxu0
    %v1058 = vadd.f32 %v983, %v1057
    %v1059 = vpop.f32.mrb[0].mxu0
    %1060 = vmatprep.mubr.f32.mxu0 0.0
    %1061 = vmatmul.mubr.f32.gmra.mrb[0].mxu0 %v989
    %v1062 = vpop.f32.mrb[0].mxu0
    %v1063 = vadd.f32 %v983, %v1062
    %v1064 = vpop.f32.mrb[0].mxu0
    %1065 = vdwg.mxu0
    %v1066 = vsub.f32 %v729, %v1058
    %v1067 = vsub.f32 %v734, %v1063
    %v1068 = vld [vmem:[%s15] sm:$0x1]
    %v1070 = vlaneseq
    %v1071 = vshrl.u32 %v1070, 7
    %v1072 = vsub.s32 0, %v1071
    %v1073 = vrot.slane %v1068, %v1072
    %v1075 = vmul.f32 %v1066, %v1073
    %v1076 = vmul.f32 %v1067, %v1073
    %v1077 = vmul.f32 %v880, -0.5
    %v1078 = vmul.f32 %v881, -0.5
    %v1079 = vmul.f32 %v1077, %v880
    %v1080 = vmul.f32 %v1078, %v881
    %v1081 = vlog2.pop %v394
    %v1082 = vmul.f32 %v1081, 0.6931472
    %v1083 = vlog2.pop %v395
    %v1084 = vmul.f32 %v1083, 0.6931472
    %v1085 = vsub.f32 %v1079, %v1082
    %v1086 = vsub.f32 %v1080, %v1084
    %v1087 = vmul.f32 %v167, 0.5
    %v1088 = vmul.f32 %v168, 0.5
    %v1089 = vmul.f32 %v1087, %v167
    %v1090 = vmul.f32 %v1088, %v168
    %v1091 = vlog2.pop %v870
    %v1092 = vmul.f32 %v1091, 0.6931472
    %v1093 = vlog2.pop %v871
    %v1094 = vmul.f32 %v1093, 0.6931472
    %v1095 = vadd.f32 %v1089, %v1092
    %v1096 = vadd.f32 %v1090, %v1094
    %v1097 = vld [vmem:[%s16] sm:$0xff]
    %v1098 = vld [vmem:[%s16 + $0x8] sm:$0xff]
    %v1100 = vsel %vm199, %v1095, 0
    %v1103 = vsel %vm199, %v1096, 0
    %1105 = vmatprep.subr.mxu0 0.0
    %1106 = vmatpush1.msra.mxu0 1.0
    %1107 = vmatprep.subr.mxu0 0.0
    %1108 = vmatpush1.msra.mxu0 1.0
    %1109 = vmatprep.subr.mxu0 0.0
    %1110 = vmatpush1.msra.mxu0 0.0
    %1111 = vmatprep.subr.mxu0 0.0
    %1112 = vmatpush1.msra.mxu0 0.0
    %1113 = vmatprep.subr.mxu0 0.0
    %1114 = vmatpush1.msra.mxu0 0.0
    %1115 = vmatprep.subr.mxu0 0.0
    %1116 = vmatpush1.msra.mxu0 0.0
    %1117 = vmatprep.subr.mxu0 0.0
    %1118 = vmatpush1.msra.mxu0 0.0
    %1119 = vmatprep.subr.mxu0 0.0
    %1120 = vmatpush1.msra.mxu0 0.0
    %1121 = vmatprep.subr.mxu0 0.0
    %1122 = vmatpush1.msra.mxu0 0.0
    %1123 = vmatprep.subr.mxu0 0.0
    %1124 = vmatpush1.msra.mxu0 0.0
    %1125 = vmatprep.subr.mxu0 0.0
    %1126 = vmatpush1.msra.mxu0 0.0
    %1127 = vmatprep.subr.mxu0 0.0
    %1128 = vmatpush1.msra.mxu0 0.0
    %1129 = vmatprep.subr.mxu0 0.0
    %1130 = vmatpush1.msra.mxu0 0.0
    %1131 = vmatprep.subr.mxu0 0.0
    %1132 = vmatpush1.msra.mxu0 0.0
    %1133 = vmatprep.subr.mxu0 0.0
    %1134 = vmatpush1.msra.mxu0 0.0
    %1135 = vmatprep.subr.mxu0 0.0
    %1136 = vmatpush1.msra.mxu0 0.0
    %1137 = vmatprep.subr.mxu0 0.0
    %1138 = vmatpush1.msra.mxu0 0.0
    %1139 = vmatprep.subr.mxu0 0.0
    %1140 = vmatpush1.msra.mxu0 0.0
    %1141 = vmatprep.subr.mxu0 0.0
    %1142 = vmatpush1.msra.mxu0 0.0
    %1143 = vmatprep.subr.mxu0 0.0
    %1144 = vmatpush1.msra.mxu0 0.0
    %1145 = vmatprep.subr.mxu0 0.0
    %1146 = vmatpush1.msra.mxu0 0.0
    %1147 = vmatprep.subr.mxu0 0.0
    %1148 = vmatpush1.msra.mxu0 0.0
    %1149 = vmatprep.subr.mxu0 0.0
    %1150 = vmatpush1.msra.mxu0 0.0
    %1151 = vmatprep.subr.mxu0 0.0
    %1152 = vmatpush1.msra.mxu0 0.0
    %1153 = vmatprep.subr.mxu0 0.0
    %1154 = vmatpush1.msra.mxu0 0.0
    %1155 = vmatprep.subr.mxu0 0.0
    %1156 = vmatpush1.msra.mxu0 0.0
    %1157 = vmatprep.subr.mxu0 0.0
    %1158 = vmatpush1.msra.mxu0 0.0
    %1159 = vmatprep.subr.mxu0 0.0
    %1160 = vmatpush1.msra.mxu0 0.0
    %1161 = vmatprep.subr.mxu0 0.0
    %1162 = vmatpush1.msra.mxu0 0.0
    %1163 = vmatprep.subr.mxu0 0.0
    %1164 = vmatpush1.msra.mxu0 0.0
    %1165 = vmatprep.subr.mxu0 0.0
    %1166 = vmatpush1.msra.mxu0 0.0
    %1167 = vmatprep.subr.mxu0 0.0
    %1168 = vmatpush1.msra.mxu0 0.0
    %1169 = vmatprep.mubr.f32.mxu0 0.0
    %1170 = vmatmul.mubr.f32.gmra.mrb[0].mxu0 %v1100
    %v1171 = vpop.f32.mrb[0].mxu0
    %v1172 = vadd.f32 0.0, %v1171
    %v1173 = vpop.f32.mrb[0].mxu0
    %1174 = vmatprep.mubr.f32.mxu0 0.0
    %1175 = vmatmul.mubr.f32.gmra.mrb[0].mxu0 %v1103
    %v1176 = vpop.f32.mrb[0].mxu0
    %v1177 = vadd.f32 0.0, %v1176
    %v1178 = vpop.f32.mrb[0].mxu0
    %1179 = vdwg.mxu0
    %v1181 = vsel %vm199, %v1085, 0
    %v1184 = vsel %vm199, %v1086, 0
    %1186 = vmatprep.subr.mxu0 0.0
    %1187 = vmatpush1.msra.mxu0 %v1097
    %1188 = vmatprep.subr.mxu0 0.0
    %1189 = vmatpush1.msra.mxu0 %v1098
    %1190 = vmatprep.subr.mxu0 0.0
    %1191 = vmatpush1.msra.mxu0 0.0
    %1192 = vmatprep.subr.mxu0 0.0
    %1193 = vmatpush1.msra.mxu0 0.0
    %1194 = vmatprep.subr.mxu0 0.0
    %1195 = vmatpush1.msra.mxu0 0.0
    %1196 = vmatprep.subr.mxu0 0.0
    %1197 = vmatpush1.msra.mxu0 0.0
    %1198 = vmatprep.subr.mxu0 0.0
    %1199 = vmatpush1.msra.mxu0 0.0
    %1200 = vmatprep.subr.mxu0 0.0
    %1201 = vmatpush1.msra.mxu0 0.0
    %1202 = vmatprep.subr.mxu0 0.0
    %1203 = vmatpush1.msra.mxu0 0.0
    %1204 = vmatprep.subr.mxu0 0.0
    %1205 = vmatpush1.msra.mxu0 0.0
    %1206 = vmatprep.subr.mxu0 0.0
    %1207 = vmatpush1.msra.mxu0 0.0
    %1208 = vmatprep.subr.mxu0 0.0
    %1209 = vmatpush1.msra.mxu0 0.0
    %1210 = vmatprep.subr.mxu0 0.0
    %1211 = vmatpush1.msra.mxu0 0.0
    %1212 = vmatprep.subr.mxu0 0.0
    %1213 = vmatpush1.msra.mxu0 0.0
    %1214 = vmatprep.subr.mxu0 0.0
    %1215 = vmatpush1.msra.mxu0 0.0
    %1216 = vmatprep.subr.mxu0 0.0
    %1217 = vmatpush1.msra.mxu0 0.0
    %1218 = vmatprep.subr.mxu0 0.0
    %1219 = vmatpush1.msra.mxu0 0.0
    %1220 = vmatprep.subr.mxu0 0.0
    %1221 = vmatpush1.msra.mxu0 0.0
    %1222 = vmatprep.subr.mxu0 0.0
    %1223 = vmatpush1.msra.mxu0 0.0
    %1224 = vmatprep.subr.mxu0 0.0
    %1225 = vmatpush1.msra.mxu0 0.0
    %1226 = vmatprep.subr.mxu0 0.0
    %1227 = vmatpush1.msra.mxu0 0.0
    %1228 = vmatprep.subr.mxu0 0.0
    %1229 = vmatpush1.msra.mxu0 0.0
    %1230 = vmatprep.subr.mxu0 0.0
    %1231 = vmatpush1.msra.mxu0 0.0
    %1232 = vmatprep.subr.mxu0 0.0
    %1233 = vmatpush1.msra.mxu0 0.0
    %1234 = vmatprep.subr.mxu0 0.0
    %1235 = vmatpush1.msra.mxu0 0.0
    %1236 = vmatprep.subr.mxu0 0.0
    %1237 = vmatpush1.msra.mxu0 0.0
    %1238 = vmatprep.subr.mxu0 0.0
    %1239 = vmatpush1.msra.mxu0 0.0
    %1240 = vmatprep.subr.mxu0 0.0
    %1241 = vmatpush1.msra.mxu0 0.0
    %1242 = vmatprep.subr.mxu0 0.0
    %1243 = vmatpush1.msra.mxu0 0.0
    %1244 = vmatprep.subr.mxu0 0.0
    %1245 = vmatpush1.msra.mxu0 0.0
    %1246 = vmatprep.subr.mxu0 0.0
    %1247 = vmatpush1.msra.mxu0 0.0
    %1248 = vmatprep.subr.mxu0 0.0
    %1249 = vmatpush1.msra.mxu0 0.0
    %1250 = vmatprep.mubr.f32.mxu0 0.0
    %1251 = vmatmul.mubr.f32.gmra.mrb[0].mxu0 %v1181
    %v1252 = vpop.f32.mrb[0].mxu0
    %v1253 = vadd.f32 %v1172, %v1252
    %v1254 = vpop.f32.mrb[0].mxu0
    %1255 = vmatprep.mubr.f32.mxu0 0.0
    %1256 = vmatmul.mubr.f32.gmra.mrb[0].mxu0 %v1184
    %v1257 = vpop.f32.mrb[0].mxu0
    %v1258 = vadd.f32 %v1177, %v1257
    %v1259 = vpop.f32.mrb[0].mxu0
    %1260 = vdwg.mxu0
    %v1261 = vmul.f32 %v1075, %v1075
    %v1262 = vmul.f32 %v1076, %v1076
    %v1263 = vld [vmem:[%s17] sm:$0xff]
    %v1264 = vld [vmem:[%s17 + $0x8] sm:$0xff]
    %v1265 = vld [vmem:[%s17 + $0x10] sm:$0xff]
    %v1266 = vld [vmem:[%s17 + $0x18] sm:$0xff]
    %v1267 = vld [vmem:[%s17 + $0x20] sm:$0xff]
    %v1268 = vld [vmem:[%s17 + $0x28] sm:$0xff]
    %v1269 = vld [vmem:[%s17 + $0x30] sm:$0xff]
    %v1270 = vld [vmem:[%s17 + $0x38] sm:$0xff]
    %v1272 = vsel %vm411, %v1261, 0
    %v1275 = vsel %vm411, %v1262, 0
    %1277 = vmatprep.subr.mxu0 0.0
    %1278 = vmatpush1.msra.mxu0 %v1263
    %1279 = vmatprep.subr.mxu0 0.0
    %1280 = vmatpush1.msra.mxu0 %v1264
    %1281 = vmatprep.subr.mxu0 0.0
    %1282 = vmatpush1.msra.mxu0 %v1265
    %1283 = vmatprep.subr.mxu0 0.0
    %1284 = vmatpush1.msra.mxu0 %v1266
    %1285 = vmatprep.subr.mxu0 0.0
    %1286 = vmatpush1.msra.mxu0 %v1267
    %1287 = vmatprep.subr.mxu0 0.0
    %1288 = vmatpush1.msra.mxu0 %v1268
    %1289 = vmatprep.subr.mxu0 0.0
    %1290 = vmatpush1.msra.mxu0 %v1269
    %1291 = vmatprep.subr.mxu0 0.0
    %1292 = vmatpush1.msra.mxu0 %v1270
    %1293 = vmatprep.subr.mxu0 0.0
    %1294 = vmatpush1.msra.mxu0 0.0
    %1295 = vmatprep.subr.mxu0 0.0
    %1296 = vmatpush1.msra.mxu0 0.0
    %1297 = vmatprep.subr.mxu0 0.0
    %1298 = vmatpush1.msra.mxu0 0.0
    %1299 = vmatprep.subr.mxu0 0.0
    %1300 = vmatpush1.msra.mxu0 0.0
    %1301 = vmatprep.subr.mxu0 0.0
    %1302 = vmatpush1.msra.mxu0 0.0
    %1303 = vmatprep.subr.mxu0 0.0
    %1304 = vmatpush1.msra.mxu0 0.0
    %1305 = vmatprep.subr.mxu0 0.0
    %1306 = vmatpush1.msra.mxu0 0.0
    %1307 = vmatprep.subr.mxu0 0.0
    %1308 = vmatpush1.msra.mxu0 0.0
    %1309 = vmatprep.subr.mxu0 0.0
    %1310 = vmatpush1.msra.mxu0 0.0
    %1311 = vmatprep.subr.mxu0 0.0
    %1312 = vmatpush1.msra.mxu0 0.0
    %1313 = vmatprep.subr.mxu0 0.0
    %1314 = vmatpush1.msra.mxu0 0.0
    %1315 = vmatprep.subr.mxu0 0.0
    %1316 = vmatpush1.msra.mxu0 0.0
    %1317 = vmatprep.subr.mxu0 0.0
    %1318 = vmatpush1.msra.mxu0 0.0
    %1319 = vmatprep.subr.mxu0 0.0
    %1320 = vmatpush1.msra.mxu0 0.0
    %1321 = vmatprep.subr.mxu0 0.0
    %1322 = vmatpush1.msra.mxu0 0.0
    %1323 = vmatprep.subr.mxu0 0.0
    %1324 = vmatpush1.msra.mxu0 0.0
    %1325 = vmatprep.subr.mxu0 0.0
    %1326 = vmatpush1.msra.mxu0 0.0
    %1327 = vmatprep.subr.mxu0 0.0
    %1328 = vmatpush1.msra.mxu0 0.0
    %1329 = vmatprep.subr.mxu0 0.0
    %1330 = vmatpush1.msra.mxu0 0.0
    %1331 = vmatprep.subr.mxu0 0.0
    %1332 = vmatpush1.msra.mxu0 0.0
    %1333 = vmatprep.subr.mxu0 0.0
    %1334 = vmatpush1.msra.mxu0 0.0
    %1335 = vmatprep.subr.mxu0 0.0
    %1336 = vmatpush1.msra.mxu0 0.0
    %1337 = vmatprep.subr.mxu0 0.0
    %1338 = vmatpush1.msra.mxu0 0.0
    %1339 = vmatprep.subr.mxu0 0.0
    %1340 = vmatpush1.msra.mxu0 0.0
    %1341 = vmatprep.mubr.f32.mxu0 0.0
    %1342 = vmatmul.mubr.f32.gmra.mrb[0].mxu0 %v1272
    %v1343 = vpop.f32.mrb[0].mxu0
    %v1344 = vadd.f32 0.0, %v1343
    %v1345 = vpop.f32.mrb[0].mxu0
    %1346 = vmatprep.mubr.f32.mxu0 0.0
    %1347 = vmatmul.mubr.f32.gmra.mrb[0].mxu0 %v1275
    %v1348 = vpop.f32.mrb[0].mxu0
    %v1349 = vadd.f32 0.0, %v1348
    %v1350 = vpop.f32.mrb[0].mxu0
    %1351 = vdwg.mxu0
    %v1352 = vadd.f32 %v1253, %v1344
    %v1353 = vadd.f32 %v1258, %v1349
    %v1355 = vlaneseq
    %v1356 = vshrl.u32 %v1355, 7
    %v1357 = vsub.s32 0, %v1356
    %v1358 = vrot.slane %v161, %v1357
    %v1360 = vadd.f32 %v1352, %v1358
    %v1361 = vadd.f32 %v1353, %v1358
    %vm1362 = vcmask 7168
    %1363 = vst.msk [vmem:[%s19] sm:$0xff] %vm1362, %v1360
    %1364 = vst.msk [vmem:[%s19 + $0x8] sm:$0xff] %vm1362, %v1361
    %1365 = vst.msk [vmem:[#allocation16] sm:$0xff] %vm199, %v874
    %1366 = vst.msk [vmem:[#allocation16 + $0x8] sm:$0xff] %vm199, %v875
    %s1367 = scalar_lea.vmem [#allocation5], 2
    %v1368 = vld [vmem:[%s1367] sm:$0x3]
    %s1369 = scalar_lea.vmem %s1, 16
    %v1370 = vld [vmem:[%s1369] sm:$0xff]
    %v1371 = vld [vmem:[%s1369 + $0x8] sm:$0xff]
    %v1372 = vld [vmem:[%s7] sm:$0xff]
    %v1373 = vld [vmem:[%s7 + $0x8] sm:$0xff]
    %v1374 = vld [vmem:[%s7 + $0x10] sm:$0xff]
    %v1375 = vld [vmem:[%s7 + $0x18] sm:$0xff]
    %v1376 = vld [vmem:[%s7 + $0x20] sm:$0xff]
    %v1377 = vld [vmem:[%s7 + $0x28] sm:$0xff]
    %v1378 = vld [vmem:[%s7 + $0x30] sm:$0xff]
    %v1379 = vld [vmem:[%s7 + $0x38] sm:$0xff]
    %v1380 = vld [vmem:[#allocation13] sm:$0xf]
    %v1382 = vlaneseq
    %v1383 = vshrl.u32 %v1382, 7
    %v1384 = vsub.s32 0, %v1383
    %v1385 = vrot.slane %v1380, %v1384
    %v1386 = vlaneseq
    %v1387 = vshrl.u32 %v1386, 7
    %v1388 = vsub.s32 1, %v1387
    %v1389 = vrot.slane %v1380, %v1388
    %v1390 = vlaneseq
    %v1391 = vshrl.u32 %v1390, 7
    %v1392 = vsub.s32 2, %v1391
    %v1393 = vrot.slane %v1380, %v1392
    %v1394 = vlaneseq
    %v1395 = vshrl.u32 %v1394, 7
    %v1396 = vsub.s32 3, %v1395
    %v1397 = vrot.slane %v1380, %v1396
    %1402 = vmatprep.subr.mxu0 %v1373
    %1403 = vmatpush1.msra.mxu0 %v1372
    %1404 = vmatprep.subr.mxu0 %v1377
    %1405 = vmatpush1.msra.mxu0 %v1376
    %1406 = vmatprep.subr.mxu0 0.0
    %1407 = vmatpush1.msra.mxu0 0.0
    %1408 = vmatprep.subr.mxu0 0.0
    %1409 = vmatpush1.msra.mxu0 0.0
    %1410 = vmatprep.subr.mxu0 0.0
    %1411 = vmatpush1.msra.mxu0 0.0
    %1412 = vmatprep.subr.mxu0 0.0
    %1413 = vmatpush1.msra.mxu0 0.0
    %1414 = vmatprep.subr.mxu0 0.0
    %1415 = vmatpush1.msra.mxu0 0.0
    %1416 = vmatprep.subr.mxu0 0.0
    %1417 = vmatpush1.msra.mxu0 0.0
    %1418 = vmatprep.subr.mxu0 0.0
    %1419 = vmatpush1.msra.mxu0 0.0
    %1420 = vmatprep.subr.mxu0 0.0
    %1421 = vmatpush1.msra.mxu0 0.0
    %1422 = vmatprep.subr.mxu0 0.0
    %1423 = vmatpush1.msra.mxu0 0.0
    %1424 = vmatprep.subr.mxu0 0.0
    %1425 = vmatpush1.msra.mxu0 0.0
    %1426 = vmatprep.subr.mxu0 0.0
    %1427 = vmatpush1.msra.mxu0 0.0
    %1428 = vmatprep.subr.mxu0 0.0
    %1429 = vmatpush1.msra.mxu0 0.0
    %1430 = vmatprep.subr.mxu0 0.0
    %1431 = vmatpush1.msra.mxu0 0.0
    %1432 = vmatprep.subr.mxu0 0.0
    %1433 = vmatpush1.msra.mxu0 0.0
    %1434 = vmatprep.subr.mxu0 0.0
    %1435 = vmatpush1.msra.mxu0 0.0
    %1436 = vmatprep.subr.mxu0 0.0
    %1437 = vmatpush1.msra.mxu0 0.0
    %1438 = vmatprep.subr.mxu0 0.0
    %1439 = vmatpush1.msra.mxu0 0.0
    %1440 = vmatprep.subr.mxu0 0.0
    %1441 = vmatpush1.msra.mxu0 0.0
    %1442 = vmatprep.subr.mxu0 0.0
    %1443 = vmatpush1.msra.mxu0 0.0
    %1444 = vmatprep.subr.mxu0 0.0
    %1445 = vmatpush1.msra.mxu0 0.0
    %1446 = vmatprep.subr.mxu0 0.0
    %1447 = vmatpush1.msra.mxu0 0.0
    %1448 = vmatprep.subr.mxu0 0.0
    %1449 = vmatpush1.msra.mxu0 0.0
    %1450 = vmatprep.subr.mxu0 0.0
    %1451 = vmatpush1.msra.mxu0 0.0
    %1452 = vmatprep.subr.mxu0 0.0
    %1453 = vmatpush1.msra.mxu0 0.0
    %1454 = vmatprep.subr.mxu0 0.0
    %1455 = vmatpush1.msra.mxu0 0.0
    %1456 = vmatprep.subr.mxu0 0.0
    %1457 = vmatpush1.msra.mxu0 0.0
    %1458 = vmatprep.subr.mxu0 0.0
    %1459 = vmatpush1.msra.mxu0 0.0
    %1460 = vmatprep.subr.mxu0 0.0
    %1461 = vmatpush1.msra.mxu0 0.0
    %1462 = vmatprep.subr.mxu0 0.0
    %1463 = vmatpush1.msra.mxu0 0.0
    %1464 = vmatprep.subr.mxu0 0.0
    %1465 = vmatpush1.msra.mxu0 0.0
    %1466 = vmatprep.mubr.f32.mxu0 0.0
    %1467 = vmatmul.mubr.f32.gmra.mrb[0].mxu0 %v892
    %v1468 = vpop.f32.mrb[0].mxu0
    %v1469 = vadd.f32 %v1385, %v1468
    %v1470 = vpop.f32.mrb[0].mxu0
    %v1471 = vadd.f32 %v1389, %v1470
    %1472 = vmatprep.mubr.f32.mxu0 0.0
    %1473 = vmatmul.mubr.f32.gmra.mrb[0].mxu0 %v895
    %v1474 = vpop.f32.mrb[0].mxu0
    %v1475 = vadd.f32 %v1385, %v1474
    %v1476 = vpop.f32.mrb[0].mxu0
    %v1477 = vadd.f32 %v1389, %v1476
    %1478 = vdwg.mxu0
    %1479 = vmatprep.subr.mxu0 %v1375
    %1480 = vmatpush1.msra.mxu0 %v1374
    %1481 = vmatprep.subr.mxu0 %v1379
    %1482 = vmatpush1.msra.mxu0 %v1378
    %1483 = vmatprep.subr.mxu0 0.0
    %1484 = vmatpush1.msra.mxu0 0.0
    %1485 = vmatprep.subr.mxu0 0.0
    %1486 = vmatpush1.msra.mxu0 0.0
    %1487 = vmatprep.subr.mxu0 0.0
    %1488 = vmatpush1.msra.mxu0 0.0
    %1489 = vmatprep.subr.mxu0 0.0
    %1490 = vmatpush1.msra.mxu0 0.0
    %1491 = vmatprep.subr.mxu0 0.0
    %1492 = vmatpush1.msra.mxu0 0.0
    %1493 = vmatprep.subr.mxu0 0.0
    %1494 = vmatpush1.msra.mxu0 0.0
    %1495 = vmatprep.subr.mxu0 0.0
    %1496 = vmatpush1.msra.mxu0 0.0
    %1497 = vmatprep.subr.mxu0 0.0
    %1498 = vmatpush1.msra.mxu0 0.0
    %1499 = vmatprep.subr.mxu0 0.0
    %1500 = vmatpush1.msra.mxu0 0.0
    %1501 = vmatprep.subr.mxu0 0.0
    %1502 = vmatpush1.msra.mxu0 0.0
    %1503 = vmatprep.subr.mxu0 0.0
    %1504 = vmatpush1.msra.mxu0 0.0
    %1505 = vmatprep.subr.mxu0 0.0
    %1506 = vmatpush1.msra.mxu0 0.0
    %1507 = vmatprep.subr.mxu0 0.0
    %1508 = vmatpush1.msra.mxu0 0.0
    %1509 = vmatprep.subr.mxu0 0.0
    %1510 = vmatpush1.msra.mxu0 0.0
    %1511 = vmatprep.subr.mxu0 0.0
    %1512 = vmatpush1.msra.mxu0 0.0
    %1513 = vmatprep.subr.mxu0 0.0
    %1514 = vmatpush1.msra.mxu0 0.0
    %1515 = vmatprep.subr.mxu0 0.0
    %1516 = vmatpush1.msra.mxu0 0.0
    %1517 = vmatprep.subr.mxu0 0.0
    %1518 = vmatpush1.msra.mxu0 0.0
    %1519 = vmatprep.subr.mxu0 0.0
    %1520 = vmatpush1.msra.mxu0 0.0
    %1521 = vmatprep.subr.mxu0 0.0
    %1522 = vmatpush1.msra.mxu0 0.0
    %1523 = vmatprep.subr.mxu0 0.0
    %1524 = vmatpush1.msra.mxu0 0.0
    %1525 = vmatprep.subr.mxu0 0.0
    %1526 = vmatpush1.msra.mxu0 0.0
    %1527 = vmatprep.subr.mxu0 0.0
    %1528 = vmatpush1.msra.mxu0 0.0
    %1529 = vmatprep.subr.mxu0 0.0
    %1530 = vmatpush1.msra.mxu0 0.0
    %1531 = vmatprep.subr.mxu0 0.0
    %1532 = vmatpush1.msra.mxu0 0.0
    %1533 = vmatprep.subr.mxu0 0.0
    %1534 = vmatpush1.msra.mxu0 0.0
    %1535 = vmatprep.subr.mxu0 0.0
    %1536 = vmatpush1.msra.mxu0 0.0
    %1537 = vmatprep.subr.mxu0 0.0
    %1538 = vmatpush1.msra.mxu0 0.0
    %1539 = vmatprep.subr.mxu0 0.0
    %1540 = vmatpush1.msra.mxu0 0.0
    %1541 = vmatprep.subr.mxu0 0.0
    %1542 = vmatpush1.msra.mxu0 0.0
    %1543 = vmatprep.mubr.f32.mxu0 0.0
    %1544 = vmatmul.mubr.f32.gmra.mrb[0].mxu0 %v892
    %v1545 = vpop.f32.mrb[0].mxu0
    %v1546 = vadd.f32 %v1393, %v1545
    %v1547 = vpop.f32.mrb[0].mxu0
    %v1548 = vadd.f32 %v1397, %v1547
    %1549 = vmatprep.mubr.f32.mxu0 0.0
    %1550 = vmatmul.mubr.f32.gmra.mrb[0].mxu0 %v895
    %v1551 = vpop.f32.mrb[0].mxu0
    %v1552 = vadd.f32 %v1393, %v1551
    %v1553 = vpop.f32.mrb[0].mxu0
    %v1554 = vadd.f32 %v1397, %v1553
    %1555 = vdwg.mxu0
    %v1556 = vmax.f32 %v1471, 0.0
    %v1557 = vmax.f32 %v1477, 0.0
    %vm1558 = vcmp.ne.f32.partialorder %v1471, %v1471
    %vm1559 = vcmp.ne.f32.partialorder %v1477, %v1477
    %v1560 = vadd.f32 %v1471, 0.0
    %v1561 = vadd.f32 %v1477, 0.0
    %v1562 = vand.u32 2147483647, %v1471
    %v1563 = vand.u32 2147483647, %v1477
    %v1564 = vsub.f32 0.0, %v1562
    %v1565 = vsub.f32 0.0, %v1563
    %v1566 = vmul.f32 %v1564, 1.442695
    %v1567 = vpow.pop %v1566
    %v1568 = vmul.f32 %v1565, 1.442695
    %v1569 = vpow.pop %v1568
    %v1570 = vadd.f32 %v1567, 1.0
    %v1571 = vlog2.pop %v1570
    %v1572 = vmul.f32 %v1571, 0.6931472
    %v1573 = vmul.f32 -0.5, %v1567
    %v1574 = vadd.f32 %v1573, 1.0
    %v1575 = vmul.f32 %v1574, %v1567
    %v1576 = vand.u32 2147483647, %v1567
    %vm1577 = vcmp.lt.f32.partialorder %v1576, 0.0004427343
    %v1578 = vsel %vm1577, %v1575, %v1572
    %v1579 = vadd.f32 %v1569, 1.0
    %v1580 = vlog2.pop %v1579
    %v1581 = vmul.f32 %v1580, 0.6931472
    %v1582 = vmul.f32 -0.5, %v1569
    %v1583 = vadd.f32 %v1582, 1.0
    %v1584 = vmul.f32 %v1583, %v1569
    %v1585 = vand.u32 2147483647, %v1569
    %vm1586 = vcmp.lt.f32.partialorder %v1585, 0.0004427343
    %v1587 = vsel %vm1586, %v1584, %v1581
    %v1588 = vadd.f32 %v1556, %v1578
    %v1589 = vadd.f32 %v1557, %v1587
    %v1590 = vsel %vm1558, %v1560, %v1588
    %v1591 = vsel %vm1559, %v1561, %v1589
    %v1592 = vld [vmem:[%s5] sm:$0xff]
    %v1593 = vld [vmem:[%s5 + $0x8] sm:$0xff]
    %v1594 = vld [vmem:[%s5 + $0x10] sm:$0xff]
    %v1595 = vld [vmem:[%s5 + $0x18] sm:$0xff]
    %v1596 = vld [vmem:[%s5 + $0x20] sm:$0xff]
    %v1597 = vld [vmem:[%s5 + $0x28] sm:$0xff]
    %v1598 = vld [vmem:[%s5 + $0x30] sm:$0xff]
    %v1599 = vld [vmem:[%s5 + $0x38] sm:$0xff]
    %v1600 = vld [vmem:[#allocation11] sm:$0x1]
    %v1602 = vlaneseq
    %v1603 = vshrl.u32 %v1602, 7
    %v1604 = vsub.s32 0, %v1603
    %v1605 = vrot.slane %v1600, %v1604
    %v1608 = vsel %vm411, %v1368, 0
    %1610 = vmatprep.subr.mxu0 0.0
    %1611 = vmatpush1.msra.mxu0 %v1592
    %1612 = vmatprep.subr.mxu0 0.0
    %1613 = vmatpush1.msra.mxu0 %v1593
    %1614 = vmatprep.subr.mxu0 0.0
    %1615 = vmatpush1.msra.mxu0 %v1594
    %1616 = vmatprep.subr.mxu0 0.0
    %1617 = vmatpush1.msra.mxu0 %v1595
    %1618 = vmatprep.subr.mxu0 0.0
    %1619 = vmatpush1.msra.mxu0 %v1596
    %1620 = vmatprep.subr.mxu0 0.0
    %1621 = vmatpush1.msra.mxu0 %v1597
    %1622 = vmatprep.subr.mxu0 0.0
    %1623 = vmatpush1.msra.mxu0 %v1598
    %1624 = vmatprep.subr.mxu0 0.0
    %1625 = vmatpush1.msra.mxu0 %v1599
    %1626 = vmatprep.subr.mxu0 0.0
    %1627 = vmatpush1.msra.mxu0 0.0
    %1628 = vmatprep.subr.mxu0 0.0
    %1629 = vmatpush1.msra.mxu0 0.0
    %1630 = vmatprep.subr.mxu0 0.0
    %1631 = vmatpush1.msra.mxu0 0.0
    %1632 = vmatprep.subr.mxu0 0.0
    %1633 = vmatpush1.msra.mxu0 0.0
    %1634 = vmatprep.subr.mxu0 0.0
    %1635 = vmatpush1.msra.mxu0 0.0
    %1636 = vmatprep.subr.mxu0 0.0
    %1637 = vmatpush1.msra.mxu0 0.0
    %1638 = vmatprep.subr.mxu0 0.0
    %1639 = vmatpush1.msra.mxu0 0.0
    %1640 = vmatprep.subr.mxu0 0.0
    %1641 = vmatpush1.msra.mxu0 0.0
    %1642 = vmatprep.subr.mxu0 0.0
    %1643 = vmatpush1.msra.mxu0 0.0
    %1644 = vmatprep.subr.mxu0 0.0
    %1645 = vmatpush1.msra.mxu0 0.0
    %1646 = vmatprep.subr.mxu0 0.0
    %1647 = vmatpush1.msra.mxu0 0.0
    %1648 = vmatprep.subr.mxu0 0.0
    %1649 = vmatpush1.msra.mxu0 0.0
    %1650 = vmatprep.subr.mxu0 0.0
    %1651 = vmatpush1.msra.mxu0 0.0
    %1652 = vmatprep.subr.mxu0 0.0
    %1653 = vmatpush1.msra.mxu0 0.0
    %1654 = vmatprep.subr.mxu0 0.0
    %1655 = vmatpush1.msra.mxu0 0.0
    %1656 = vmatprep.subr.mxu0 0.0
    %1657 = vmatpush1.msra.mxu0 0.0
    %1658 = vmatprep.subr.mxu0 0.0
    %1659 = vmatpush1.msra.mxu0 0.0
    %1660 = vmatprep.subr.mxu0 0.0
    %1661 = vmatpush1.msra.mxu0 0.0
    %1662 = vmatprep.subr.mxu0 0.0
    %1663 = vmatpush1.msra.mxu0 0.0
    %1664 = vmatprep.subr.mxu0 0.0
    %1665 = vmatpush1.msra.mxu0 0.0
    %1666 = vmatprep.subr.mxu0 0.0
    %1667 = vmatpush1.msra.mxu0 0.0
    %1668 = vmatprep.subr.mxu0 0.0
    %1669 = vmatpush1.msra.mxu0 0.0
    %1670 = vmatprep.subr.mxu0 0.0
    %1671 = vmatpush1.msra.mxu0 0.0
    %1672 = vmatprep.subr.mxu0 0.0
    %1673 = vmatpush1.msra.mxu0 0.0
    %1674 = vmatprep.mubr.f32.mxu0 0.0
    %1675 = vmatmul.mubr.f32.gmra.mrb[0].mxu0 %v1608
    %v1676 = vpop.f32.mrb[0].mxu0
    %v1677 = vadd.f32 %v1605, %v1676
    %v1678 = vpop.f32.mrb[0].mxu0
    %1679 = vdwg.mxu0
    %v1680 = vmax.f32 %v1677, 0.0
    %v1681 = vld [vmem:[#allocation14] sm:$0xff]
    %v1682 = vld [vmem:[#allocation14 + $0x8] sm:$0xff]
    %v1683 = vld [vmem:[#allocation14 + $0x10] sm:$0xff]
    %v1684 = vld [vmem:[#allocation14 + $0x18] sm:$0xff]
    %v1685 = vld [vmem:[#allocation14 + $0x20] sm:$0xff]
    %v1686 = vld [vmem:[#allocation14 + $0x28] sm:$0xff]
    %v1687 = vld [vmem:[#allocation14 + $0x30] sm:$0xff]
    %v1688 = vld [vmem:[#allocation14 + $0x38] sm:$0xff]
    %v1690 = vsel %vm494, %v1680, 0
    %1692 = vmatprep.subr.mxu0 %v1682
    %1693 = vmatpush1.msra.mxu0 %v1681
    %1694 = vmatprep.subr.mxu0 %v1684
    %1695 = vmatpush1.msra.mxu0 %v1683
    %1696 = vmatprep.subr.mxu0 %v1686
    %1697 = vmatpush1.msra.mxu0 %v1685
    %1698 = vmatprep.subr.mxu0 %v1688
    %1699 = vmatpush1.msra.mxu0 %v1687
    %1700 = vmatprep.subr.mxu0 0.0
    %1701 = vmatpush1.msra.mxu0 0.0
    %1702 = vmatprep.subr.mxu0 0.0
    %1703 = vmatpush1.msra.mxu0 0.0
    %1704 = vmatprep.subr.mxu0 0.0
    %1705 = vmatpush1.msra.mxu0 0.0
    %1706 = vmatprep.subr.mxu0 0.0
    %1707 = vmatpush1.msra.mxu0 0.0
    %1708 = vmatprep.subr.mxu0 0.0
    %1709 = vmatpush1.msra.mxu0 0.0
    %1710 = vmatprep.subr.mxu0 0.0
    %1711 = vmatpush1.msra.mxu0 0.0
    %1712 = vmatprep.subr.mxu0 0.0
    %1713 = vmatpush1.msra.mxu0 0.0
    %1714 = vmatprep.subr.mxu0 0.0
    %1715 = vmatpush1.msra.mxu0 0.0
    %1716 = vmatprep.subr.mxu0 0.0
    %1717 = vmatpush1.msra.mxu0 0.0
    %1718 = vmatprep.subr.mxu0 0.0
    %1719 = vmatpush1.msra.mxu0 0.0
    %1720 = vmatprep.subr.mxu0 0.0
    %1721 = vmatpush1.msra.mxu0 0.0
    %1722 = vmatprep.subr.mxu0 0.0
    %1723 = vmatpush1.msra.mxu0 0.0
    %1724 = vmatprep.subr.mxu0 0.0
    %1725 = vmatpush1.msra.mxu0 0.0
    %1726 = vmatprep.subr.mxu0 0.0
    %1727 = vmatpush1.msra.mxu0 0.0
    %1728 = vmatprep.subr.mxu0 0.0
    %1729 = vmatpush1.msra.mxu0 0.0
    %1730 = vmatprep.subr.mxu0 0.0
    %1731 = vmatpush1.msra.mxu0 0.0
    %1732 = vmatprep.subr.mxu0 0.0
    %1733 = vmatpush1.msra.mxu0 0.0
    %1734 = vmatprep.subr.mxu0 0.0
    %1735 = vmatpush1.msra.mxu0 0.0
    %1736 = vmatprep.subr.mxu0 0.0
    %1737 = vmatpush1.msra.mxu0 0.0
    %1738 = vmatprep.subr.mxu0 0.0
    %1739 = vmatpush1.msra.mxu0 0.0
    %1740 = vmatprep.subr.mxu0 0.0
    %1741 = vmatpush1.msra.mxu0 0.0
    %1742 = vmatprep.subr.mxu0 0.0
    %1743 = vmatpush1.msra.mxu0 0.0
    %1744 = vmatprep.subr.mxu0 0.0
    %1745 = vmatpush1.msra.mxu0 0.0
    %1746 = vmatprep.subr.mxu0 0.0
    %1747 = vmatpush1.msra.mxu0 0.0
    %1748 = vmatprep.subr.mxu0 0.0
    %1749 = vmatpush1.msra.mxu0 0.0
    %1750 = vmatprep.subr.mxu0 0.0
    %1751 = vmatpush1.msra.mxu0 0.0
    %1752 = vmatprep.subr.mxu0 0.0
    %1753 = vmatpush1.msra.mxu0 0.0
    %1754 = vmatprep.subr.mxu0 0.0
    %1755 = vmatpush1.msra.mxu0 0.0
    %1756 = vmatprep.mubr.f32.mxu0 0.0
    %1757 = vmatmul.mubr.f32.gmra.mrb[0].mxu0 %v1690
    %v1758 = vpop.f32.mrb[0].mxu0
    %v1759 = vadd.f32 0.0, %v1758
    %v1760 = vpop.f32.mrb[0].mxu0
    %v1761 = vadd.f32 0.0, %v1760
    %1762 = vdwg.mxu0
    %v1764 = vsel %vm576, %v1759, 0
    %v1767 = vsel %vm576, %v1761, 0
    %v1769 = vsel %vm576, %v1368, 0
    %1771 = vmatprep.subr.mxu0 %v1767
    %1772 = vmatpush1.msra.mxu0 %v1764
    %1773 = vmatprep.subr.mxu0 0.0
    %1774 = vmatpush1.msra.mxu0 0.0
    %1775 = vmatprep.subr.mxu0 0.0
    %1776 = vmatpush1.msra.mxu0 0.0
    %1777 = vmatprep.subr.mxu0 0.0
    %1778 = vmatpush1.msra.mxu0 0.0
    %1779 = vmatprep.subr.mxu0 0.0
    %1780 = vmatpush1.msra.mxu0 0.0
    %1781 = vmatprep.subr.mxu0 0.0
    %1782 = vmatpush1.msra.mxu0 0.0
    %1783 = vmatprep.subr.mxu0 0.0
    %1784 = vmatpush1.msra.mxu0 0.0
    %1785 = vmatprep.subr.mxu0 0.0
    %1786 = vmatpush1.msra.mxu0 0.0
    %1787 = vmatprep.subr.mxu0 0.0
    %1788 = vmatpush1.msra.mxu0 0.0
    %1789 = vmatprep.subr.mxu0 0.0
    %1790 = vmatpush1.msra.mxu0 0.0
    %1791 = vmatprep.subr.mxu0 0.0
    %1792 = vmatpush1.msra.mxu0 0.0
    %1793 = vmatprep.subr.mxu0 0.0
    %1794 = vmatpush1.msra.mxu0 0.0
    %1795 = vmatprep.subr.mxu0 0.0
    %1796 = vmatpush1.msra.mxu0 0.0
    %1797 = vmatprep.subr.mxu0 0.0
    %1798 = vmatpush1.msra.mxu0 0.0
    %1799 = vmatprep.subr.mxu0 0.0
    %1800 = vmatpush1.msra.mxu0 0.0
    %1801 = vmatprep.subr.mxu0 0.0
    %1802 = vmatpush1.msra.mxu0 0.0
    %1803 = vmatprep.subr.mxu0 0.0
    %1804 = vmatpush1.msra.mxu0 0.0
    %1805 = vmatprep.subr.mxu0 0.0
    %1806 = vmatpush1.msra.mxu0 0.0
    %1807 = vmatprep.subr.mxu0 0.0
    %1808 = vmatpush1.msra.mxu0 0.0
    %1809 = vmatprep.subr.mxu0 0.0
    %1810 = vmatpush1.msra.mxu0 0.0
    %1811 = vmatprep.subr.mxu0 0.0
    %1812 = vmatpush1.msra.mxu0 0.0
    %1813 = vmatprep.subr.mxu0 0.0
    %1814 = vmatpush1.msra.mxu0 0.0
    %1815 = vmatprep.subr.mxu0 0.0
    %1816 = vmatpush1.msra.mxu0 0.0
    %1817 = vmatprep.subr.mxu0 0.0
    %1818 = vmatpush1.msra.mxu0 0.0
    %1819 = vmatprep.subr.mxu0 0.0
    %1820 = vmatpush1.msra.mxu0 0.0
    %1821 = vmatprep.subr.mxu0 0.0
    %1822 = vmatpush1.msra.mxu0 0.0
    %1823 = vmatprep.subr.mxu0 0.0
    %1824 = vmatpush1.msra.mxu0 0.0
    %1825 = vmatprep.subr.mxu0 0.0
    %1826 = vmatpush1.msra.mxu0 0.0
    %1827 = vmatprep.subr.mxu0 0.0
    %1828 = vmatpush1.msra.mxu0 0.0
    %1829 = vmatprep.subr.mxu0 0.0
    %1830 = vmatpush1.msra.mxu0 0.0
    %1831 = vmatprep.subr.mxu0 0.0
    %1832 = vmatpush1.msra.mxu0 0.0
    %1833 = vmatprep.subr.mxu0 0.0
    %1834 = vmatpush1.msra.mxu0 0.0
    %1835 = vmatprep.mubr.f32.mxu0 0.0
    %1836 = vmatmul.mubr.f32.gmra.mrb[0].mxu0 %v571
    %v1837 = vpop.f32.mrb[0].mxu0
    %v1838 = vadd.f32 0.0, %v1837
    %v1839 = vpop.f32.mrb[0].mxu0
    %v1840 = vadd.f32 0.0, %v1839
    %1841 = vmatprep.mubr.f32.mxu0 0.0
    %1842 = vmatmul.mubr.f32.gmra.mrb[0].mxu0 %v574
    %v1843 = vpop.f32.mrb[0].mxu0
    %v1844 = vadd.f32 0.0, %v1843
    %v1845 = vpop.f32.mrb[0].mxu0
    %v1846 = vadd.f32 0.0, %v1845
    %1847 = vdwg.mxu0
    %1848 = vmatprep.subr.mxu0 0.0
    %1849 = vmatpush1.msra.mxu0 %v1769
    %1850 = vmatprep.subr.mxu0 0.0
    %1851 = vmatpush1.msra.mxu0 0.0
    %1852 = vmatprep.subr.mxu0 0.0
    %1853 = vmatpush1.msra.mxu0 0.0
    %1854 = vmatprep.subr.mxu0 0.0
    %1855 = vmatpush1.msra.mxu0 0.0
    %1856 = vmatprep.subr.mxu0 0.0
    %1857 = vmatpush1.msra.mxu0 0.0
    %1858 = vmatprep.subr.mxu0 0.0
    %1859 = vmatpush1.msra.mxu0 0.0
    %1860 = vmatprep.subr.mxu0 0.0
    %1861 = vmatpush1.msra.mxu0 0.0
    %1862 = vmatprep.subr.mxu0 0.0
    %1863 = vmatpush1.msra.mxu0 0.0
    %1864 = vmatprep.subr.mxu0 0.0
    %1865 = vmatpush1.msra.mxu0 0.0
    %1866 = vmatprep.subr.mxu0 0.0
    %1867 = vmatpush1.msra.mxu0 0.0
    %1868 = vmatprep.subr.mxu0 0.0
    %1869 = vmatpush1.msra.mxu0 0.0
    %1870 = vmatprep.subr.mxu0 0.0
    %1871 = vmatpush1.msra.mxu0 0.0
    %1872 = vmatprep.subr.mxu0 0.0
    %1873 = vmatpush1.msra.mxu0 0.0
    %1874 = vmatprep.subr.mxu0 0.0
    %1875 = vmatpush1.msra.mxu0 0.0
    %1876 = vmatprep.subr.mxu0 0.0
    %1877 = vmatpush1.msra.mxu0 0.0
    %1878 = vmatprep.subr.mxu0 0.0
    %1879 = vmatpush1.msra.mxu0 0.0
    %1880 = vmatprep.subr.mxu0 0.0
    %1881 = vmatpush1.msra.mxu0 0.0
    %1882 = vmatprep.subr.mxu0 0.0
    %1883 = vmatpush1.msra.mxu0 0.0
    %1884 = vmatprep.subr.mxu0 0.0
    %1885 = vmatpush1.msra.mxu0 0.0
    %1886 = vmatprep.subr.mxu0 0.0
    %1887 = vmatpush1.msra.mxu0 0.0
    %1888 = vmatprep.subr.mxu0 0.0
    %1889 = vmatpush1.msra.mxu0 0.0
    %1890 = vmatprep.subr.mxu0 0.0
    %1891 = vmatpush1.msra.mxu0 0.0
    %1892 = vmatprep.subr.mxu0 0.0
    %1893 = vmatpush1.msra.mxu0 0.0
    %1894 = vmatprep.subr.mxu0 0.0
    %1895 = vmatpush1.msra.mxu0 0.0
    %1896 = vmatprep.subr.mxu0 0.0
    %1897 = vmatpush1.msra.mxu0 0.0
    %1898 = vmatprep.subr.mxu0 0.0
    %1899 = vmatpush1.msra.mxu0 0.0
    %1900 = vmatprep.subr.mxu0 0.0
    %1901 = vmatpush1.msra.mxu0 0.0
    %1902 = vmatprep.subr.mxu0 0.0
    %1903 = vmatpush1.msra.mxu0 0.0
    %1904 = vmatprep.subr.mxu0 0.0
    %1905 = vmatpush1.msra.mxu0 0.0
    %1906 = vmatprep.subr.mxu0 0.0
    %1907 = vmatpush1.msra.mxu0 0.0
    %1908 = vmatprep.subr.mxu0 0.0
    %1909 = vmatpush1.msra.mxu0 0.0
    %1910 = vmatprep.subr.mxu0 0.0
    %1911 = vmatpush1.msra.mxu0 0.0
    %1912 = vmatprep.mubr.f32.mxu0 0.0
    %1913 = vmatmul.mubr.f32.gmra.mrb[0].mxu0 %v571
    %v1914 = vpop.f32.mrb[0].mxu0
    %v1915 = vadd.f32 0.0, %v1914
    %v1916 = vpop.f32.mrb[0].mxu0
    %1917 = vmatprep.mubr.f32.mxu0 0.0
    %1918 = vmatmul.mubr.f32.gmra.mrb[0].mxu0 %v574
    %v1919 = vpop.f32.mrb[0].mxu0
    %v1920 = vadd.f32 0.0, %v1919
    %v1921 = vpop.f32.mrb[0].mxu0
    %1922 = vdwg.mxu0
    %v1923 = vadd.f32 %v1546, %v1838
    %v1924 = vadd.f32 %v1548, %v1840
    %v1925 = vadd.f32 %v1552, %v1844
    %v1926 = vadd.f32 %v1554, %v1846
    %v1927 = vld [vmem:[%s9] sm:$0xff]
    %v1928 = vld [vmem:[%s9 + $0x8] sm:$0xff]
    %v1929 = vld [vmem:[%s9 + $0x10] sm:$0xff]
    %v1930 = vld [vmem:[%s9 + $0x18] sm:$0xff]
    %v1931 = vld [vmem:[%s9 + $0x20] sm:$0xff]
    %v1932 = vld [vmem:[%s9 + $0x28] sm:$0xff]
    %v1933 = vld [vmem:[%s9 + $0x30] sm:$0xff]
    %v1934 = vld [vmem:[%s9 + $0x38] sm:$0xff]
    %1935 = vmatprep.subr.mxu0 %v1928
    %1936 = vmatpush1.msra.mxu0 %v1927
    %1937 = vmatprep.subr.mxu0 %v1930
    %1938 = vmatpush1.msra.mxu0 %v1929
    %1939 = vmatprep.subr.mxu0 %v1932
    %1940 = vmatpush1.msra.mxu0 %v1931
    %1941 = vmatprep.subr.mxu0 %v1934
    %1942 = vmatpush1.msra.mxu0 %v1933
    %1943 = vmatprep.subr.mxu0 0.0
    %1944 = vmatpush1.msra.mxu0 0.0
    %1945 = vmatprep.subr.mxu0 0.0
    %1946 = vmatpush1.msra.mxu0 0.0
    %1947 = vmatprep.subr.mxu0 0.0
    %1948 = vmatpush1.msra.mxu0 0.0
    %1949 = vmatprep.subr.mxu0 0.0
    %1950 = vmatpush1.msra.mxu0 0.0
    %1951 = vmatprep.subr.mxu0 0.0
    %1952 = vmatpush1.msra.mxu0 0.0
    %1953 = vmatprep.subr.mxu0 0.0
    %1954 = vmatpush1.msra.mxu0 0.0
    %1955 = vmatprep.subr.mxu0 0.0
    %1956 = vmatpush1.msra.mxu0 0.0
    %1957 = vmatprep.subr.mxu0 0.0
    %1958 = vmatpush1.msra.mxu0 0.0
    %1959 = vmatprep.subr.mxu0 0.0
    %1960 = vmatpush1.msra.mxu0 0.0
    %1961 = vmatprep.subr.mxu0 0.0
    %1962 = vmatpush1.msra.mxu0 0.0
    %1963 = vmatprep.subr.mxu0 0.0
    %1964 = vmatpush1.msra.mxu0 0.0
    %1965 = vmatprep.subr.mxu0 0.0
    %1966 = vmatpush1.msra.mxu0 0.0
    %1967 = vmatprep.subr.mxu0 0.0
    %1968 = vmatpush1.msra.mxu0 0.0
    %1969 = vmatprep.subr.mxu0 0.0
    %1970 = vmatpush1.msra.mxu0 0.0
    %1971 = vmatprep.subr.mxu0 0.0
    %1972 = vmatpush1.msra.mxu0 0.0
    %1973 = vmatprep.subr.mxu0 0.0
    %1974 = vmatpush1.msra.mxu0 0.0
    %1975 = vmatprep.subr.mxu0 0.0
    %1976 = vmatpush1.msra.mxu0 0.0
    %1977 = vmatprep.subr.mxu0 0.0
    %1978 = vmatpush1.msra.mxu0 0.0
    %1979 = vmatprep.subr.mxu0 0.0
    %1980 = vmatpush1.msra.mxu0 0.0
    %1981 = vmatprep.subr.mxu0 0.0
    %1982 = vmatpush1.msra.mxu0 0.0
    %1983 = vmatprep.subr.mxu0 0.0
    %1984 = vmatpush1.msra.mxu0 0.0
    %1985 = vmatprep.subr.mxu0 0.0
    %1986 = vmatpush1.msra.mxu0 0.0
    %1987 = vmatprep.subr.mxu0 0.0
    %1988 = vmatpush1.msra.mxu0 0.0
    %1989 = vmatprep.subr.mxu0 0.0
    %1990 = vmatpush1.msra.mxu0 0.0
    %1991 = vmatprep.subr.mxu0 0.0
    %1992 = vmatpush1.msra.mxu0 0.0
    %1993 = vmatprep.subr.mxu0 0.0
    %1994 = vmatpush1.msra.mxu0 0.0
    %1995 = vmatprep.subr.mxu0 0.0
    %1996 = vmatpush1.msra.mxu0 0.0
    %1997 = vmatprep.subr.mxu0 0.0
    %1998 = vmatpush1.msra.mxu0 0.0
    %1999 = vmatprep.mubr.f32.mxu0 0.0
    %2000 = vmatmul.mubr.f32.gmra.mrb[0].mxu0 %v986
    %v2001 = vpop.f32.mrb[0].mxu0
    %v2002 = vadd.f32 0.0, %v2001
    %v2003 = vpop.f32.mrb[0].mxu0
    %v2004 = vadd.f32 0.0, %v2003
    %2005 = vmatprep.mubr.f32.mxu0 0.0
    %2006 = vmatmul.mubr.f32.gmra.mrb[0].mxu0 %v989
    %v2007 = vpop.f32.mrb[0].mxu0
    %v2008 = vadd.f32 0.0, %v2007
    %v2009 = vpop.f32.mrb[0].mxu0
    %v2010 = vadd.f32 0.0, %v2009
    %2011 = vdwg.mxu0
    %v2012 = vadd.f32 %v1923, %v2002
    %v2013 = vadd.f32 %v1924, %v2004
    %v2014 = vadd.f32 %v1925, %v2008
    %v2015 = vadd.f32 %v1926, %v2010
    %v2016 = vmax.f32 %v2013, 0.0
    %v2017 = vmax.f32 %v2015, 0.0
    %vm2018 = vcmp.ne.f32.partialorder %v2013, %v2013
    %vm2019 = vcmp.ne.f32.partialorder %v2015, %v2015
    %v2020 = vadd.f32 %v2013, 0.0
    %v2021 = vadd.f32 %v2015, 0.0
    %v2022 = vand.u32 2147483647, %v2013
    %v2023 = vand.u32 2147483647, %v2015
    %v2024 = vsub.f32 0.0, %v2022
    %v2025 = vsub.f32 0.0, %v2023
    %v2026 = vmul.f32 %v2024, 1.442695
    %v2027 = vpow.pop %v2026
    %v2028 = vmul.f32 %v2025, 1.442695
    %v2029 = vpow.pop %v2028
    %v2030 = vadd.f32 %v2027, 1.0
    %v2031 = vlog2.pop %v2030
    %v2032 = vmul.f32 %v2031, 0.6931472
    %v2033 = vmul.f32 -0.5, %v2027
    %v2034 = vadd.f32 %v2033, 1.0
    %v2035 = vmul.f32 %v2034, %v2027
    %v2036 = vand.u32 2147483647, %v2027
    %vm2037 = vcmp.lt.f32.partialorder %v2036, 0.0004427343
    %v2038 = vsel %vm2037, %v2035, %v2032
    %v2039 = vadd.f32 %v2029, 1.0
    %v2040 = vlog2.pop %v2039
    %v2041 = vmul.f32 %v2040, 0.6931472
    %v2042 = vmul.f32 -0.5, %v2029
    %v2043 = vadd.f32 %v2042, 1.0
    %v2044 = vmul.f32 %v2043, %v2029
    %v2045 = vand.u32 2147483647, %v2029
    %vm2046 = vcmp.lt.f32.partialorder %v2045, 0.0004427343
    %v2047 = vsel %vm2046, %v2044, %v2041
    %v2048 = vadd.f32 %v2016, %v2038
    %v2049 = vadd.f32 %v2017, %v2047
    %v2050 = vsel %vm2018, %v2020, %v2048
    %v2051 = vsel %vm2019, %v2021, %v2049
    %v2052 = vmul.f32 %v2050, %v1370
    %v2053 = vmul.f32 %v2051, %v1371
    %v2054 = vadd.f32 %v2012, %v2052
    %v2055 = vadd.f32 %v2014, %v2053
    %v2056 = vsub.f32 %v2054, %v1469
    %v2057 = vsub.f32 %v2055, %v1475
    %v2058 = vrcp.pop %v1590
    %v2059 = vrcp.pop %v1591
    %v2060 = vmul.f32 %v2056, %v2058
    %v2061 = vmul.f32 %v2057, %v2059
    %v2062 = vld [vmem:[%s11] sm:$0xff]
    %v2063 = vld [vmem:[%s11 + $0x8] sm:$0xff]
    %v2064 = vld [vmem:[%s12] sm:$0x1]
    %v2066 = vlaneseq
    %v2067 = vshrl.u32 %v2066, 7
    %v2068 = vsub.s32 0, %v2067
    %v2069 = vrot.slane %v2064, %v2068
    %v2072 = vsel %vm199, %v2054, 0
    %v2075 = vsel %vm199, %v2055, 0
    %2077 = vmatprep.subr.mxu0 0.0
    %2078 = vmatpush1.msra.mxu0 %v2062
    %2079 = vmatprep.subr.mxu0 0.0
    %2080 = vmatpush1.msra.mxu0 %v2063
    %2081 = vmatprep.subr.mxu0 0.0
    %2082 = vmatpush1.msra.mxu0 0.0
    %2083 = vmatprep.subr.mxu0 0.0
    %2084 = vmatpush1.msra.mxu0 0.0
    %2085 = vmatprep.subr.mxu0 0.0
    %2086 = vmatpush1.msra.mxu0 0.0
    %2087 = vmatprep.subr.mxu0 0.0
    %2088 = vmatpush1.msra.mxu0 0.0
    %2089 = vmatprep.subr.mxu0 0.0
    %2090 = vmatpush1.msra.mxu0 0.0
    %2091 = vmatprep.subr.mxu0 0.0
    %2092 = vmatpush1.msra.mxu0 0.0
    %2093 = vmatprep.subr.mxu0 0.0
    %2094 = vmatpush1.msra.mxu0 0.0
    %2095 = vmatprep.subr.mxu0 0.0
    %2096 = vmatpush1.msra.mxu0 0.0
    %2097 = vmatprep.subr.mxu0 0.0
    %2098 = vmatpush1.msra.mxu0 0.0
    %2099 = vmatprep.subr.mxu0 0.0
    %2100 = vmatpush1.msra.mxu0 0.0
    %2101 = vmatprep.subr.mxu0 0.0
    %2102 = vmatpush1.msra.mxu0 0.0
    %2103 = vmatprep.subr.mxu0 0.0
    %2104 = vmatpush1.msra.mxu0 0.0
    %2105 = vmatprep.subr.mxu0 0.0
    %2106 = vmatpush1.msra.mxu0 0.0
    %2107 = vmatprep.subr.mxu0 0.0
    %2108 = vmatpush1.msra.mxu0 0.0
    %2109 = vmatprep.subr.mxu0 0.0
    %2110 = vmatpush1.msra.mxu0 0.0
    %2111 = vmatprep.subr.mxu0 0.0
    %2112 = vmatpush1.msra.mxu0 0.0
    %2113 = vmatprep.subr.mxu0 0.0
    %2114 = vmatpush1.msra.mxu0 0.0
    %2115 = vmatprep.subr.mxu0 0.0
    %2116 = vmatpush1.msra.mxu0 0.0
    %2117 = vmatprep.subr.mxu0 0.0
    %2118 = vmatpush1.msra.mxu0 0.0
    %2119 = vmatprep.subr.mxu0 0.0
    %2120 = vmatpush1.msra.mxu0 0.0
    %2121 = vmatprep.subr.mxu0 0.0
    %2122 = vmatpush1.msra.mxu0 0.0
    %2123 = vmatprep.subr.mxu0 0.0
    %2124 = vmatpush1.msra.mxu0 0.0
    %2125 = vmatprep.subr.mxu0 0.0
    %2126 = vmatpush1.msra.mxu0 0.0
    %2127 = vmatprep.subr.mxu0 0.0
    %2128 = vmatpush1.msra.mxu0 0.0
    %2129 = vmatprep.subr.mxu0 0.0
    %2130 = vmatpush1.msra.mxu0 0.0
    %2131 = vmatprep.subr.mxu0 0.0
    %2132 = vmatpush1.msra.mxu0 0.0
    %2133 = vmatprep.subr.mxu0 0.0
    %2134 = vmatpush1.msra.mxu0 0.0
    %2135 = vmatprep.subr.mxu0 0.0
    %2136 = vmatpush1.msra.mxu0 0.0
    %2137 = vmatprep.subr.mxu0 0.0
    %2138 = vmatpush1.msra.mxu0 0.0
    %2139 = vmatprep.subr.mxu0 0.0
    %2140 = vmatpush1.msra.mxu0 0.0
    %2141 = vmatprep.mubr.f32.mxu0 0.0
    %2142 = vmatmul.mubr.f32.gmra.mrb[0].mxu0 %v2072
    %v2143 = vpop.f32.mrb[0].mxu0
    %v2144 = vadd.f32 %v2069, %v2143
    %v2145 = vpop.f32.mrb[0].mxu0
    %2146 = vmatprep.mubr.f32.mxu0 0.0
    %2147 = vmatmul.mubr.f32.gmra.mrb[0].mxu0 %v2075
    %v2148 = vpop.f32.mrb[0].mxu0
    %v2149 = vadd.f32 %v2069, %v2148
    %v2150 = vpop.f32.mrb[0].mxu0
    %2151 = vdwg.mxu0
    %v2152 = vmax.f32 %v2144, 0.0
    %v2153 = vmax.f32 %v2149, 0.0
    %v2154 = vld [vmem:[%s13] sm:$0xff]
    %v2155 = vld [vmem:[%s13 + $0x8] sm:$0xff]
    %v2156 = vld [vmem:[%s13 + $0x10] sm:$0xff]
    %v2157 = vld [vmem:[%s13 + $0x18] sm:$0xff]
    %v2158 = vld [vmem:[%s14] sm:$0x1]
    %v2160 = vlaneseq
    %v2161 = vshrl.u32 %v2160, 7
    %v2162 = vsub.s32 0, %v2161
    %v2163 = vrot.slane %v2158, %v2162
    %v2166 = vsel %vm494, %v2152, 0
    %v2169 = vsel %vm494, %v2153, 0
    %2171 = vmatprep.subr.mxu0 0.0
    %2172 = vmatpush1.msra.mxu0 %v2154
    %2173 = vmatprep.subr.mxu0 0.0
    %2174 = vmatpush1.msra.mxu0 %v2155
    %2175 = vmatprep.subr.mxu0 0.0
    %2176 = vmatpush1.msra.mxu0 %v2156
    %2177 = vmatprep.subr.mxu0 0.0
    %2178 = vmatpush1.msra.mxu0 %v2157
    %2179 = vmatprep.subr.mxu0 0.0
    %2180 = vmatpush1.msra.mxu0 0.0
    %2181 = vmatprep.subr.mxu0 0.0
    %2182 = vmatpush1.msra.mxu0 0.0
    %2183 = vmatprep.subr.mxu0 0.0
    %2184 = vmatpush1.msra.mxu0 0.0
    %2185 = vmatprep.subr.mxu0 0.0
    %2186 = vmatpush1.msra.mxu0 0.0
    %2187 = vmatprep.subr.mxu0 0.0
    %2188 = vmatpush1.msra.mxu0 0.0
    %2189 = vmatprep.subr.mxu0 0.0
    %2190 = vmatpush1.msra.mxu0 0.0
    %2191 = vmatprep.subr.mxu0 0.0
    %2192 = vmatpush1.msra.mxu0 0.0
    %2193 = vmatprep.subr.mxu0 0.0
    %2194 = vmatpush1.msra.mxu0 0.0
    %2195 = vmatprep.subr.mxu0 0.0
    %2196 = vmatpush1.msra.mxu0 0.0
    %2197 = vmatprep.subr.mxu0 0.0
    %2198 = vmatpush1.msra.mxu0 0.0
    %2199 = vmatprep.subr.mxu0 0.0
    %2200 = vmatpush1.msra.mxu0 0.0
    %2201 = vmatprep.subr.mxu0 0.0
    %2202 = vmatpush1.msra.mxu0 0.0
    %2203 = vmatprep.subr.mxu0 0.0
    %2204 = vmatpush1.msra.mxu0 0.0
    %2205 = vmatprep.subr.mxu0 0.0
    %2206 = vmatpush1.msra.mxu0 0.0
    %2207 = vmatprep.subr.mxu0 0.0
    %2208 = vmatpush1.msra.mxu0 0.0
    %2209 = vmatprep.subr.mxu0 0.0
    %2210 = vmatpush1.msra.mxu0 0.0
    %2211 = vmatprep.subr.mxu0 0.0
    %2212 = vmatpush1.msra.mxu0 0.0
    %2213 = vmatprep.subr.mxu0 0.0
    %2214 = vmatpush1.msra.mxu0 0.0
    %2215 = vmatprep.subr.mxu0 0.0
    %2216 = vmatpush1.msra.mxu0 0.0
    %2217 = vmatprep.subr.mxu0 0.0
    %2218 = vmatpush1.msra.mxu0 0.0
    %2219 = vmatprep.subr.mxu0 0.0
    %2220 = vmatpush1.msra.mxu0 0.0
    %2221 = vmatprep.subr.mxu0 0.0
    %2222 = vmatpush1.msra.mxu0 0.0
    %2223 = vmatprep.subr.mxu0 0.0
    %2224 = vmatpush1.msra.mxu0 0.0
    %2225 = vmatprep.subr.mxu0 0.0
    %2226 = vmatpush1.msra.mxu0 0.0
    %2227 = vmatprep.subr.mxu0 0.0
    %2228 = vmatpush1.msra.mxu0 0.0
    %2229 = vmatprep.subr.mxu0 0.0
    %2230 = vmatpush1.msra.mxu0 0.0
    %2231 = vmatprep.subr.mxu0 0.0
    %2232 = vmatpush1.msra.mxu0 0.0
    %2233 = vmatprep.subr.mxu0 0.0
    %2234 = vmatpush1.msra.mxu0 0.0
    %2235 = vmatprep.mubr.f32.mxu0 0.0
    %2236 = vmatmul.mubr.f32.gmra.mrb[0].mxu0 %v2166
    %v2237 = vpop.f32.mrb[0].mxu0
    %v2238 = vadd.f32 %v2163, %v2237
    %v2239 = vpop.f32.mrb[0].mxu0
    %2240 = vmatprep.mubr.f32.mxu0 0.0
    %2241 = vmatmul.mubr.f32.gmra.mrb[0].mxu0 %v2169
    %v2242 = vpop.f32.mrb[0].mxu0
    %v2243 = vadd.f32 %v2163, %v2242
    %v2244 = vpop.f32.mrb[0].mxu0
    %2245 = vdwg.mxu0
    %v2246 = vsub.f32 %v1915, %v2238
    %v2247 = vsub.f32 %v1920, %v2243
    %v2248 = vld [vmem:[%s15] sm:$0x1]
    %v2250 = vlaneseq
    %v2251 = vshrl.u32 %v2250, 7
    %v2252 = vsub.s32 0, %v2251
    %v2253 = vrot.slane %v2248, %v2252
    %v2255 = vmul.f32 %v2246, %v2253
    %v2256 = vmul.f32 %v2247, %v2253
    %v2257 = vmul.f32 %v2060, -0.5
    %v2258 = vmul.f32 %v2061, -0.5
    %v2259 = vmul.f32 %v2257, %v2060
    %v2260 = vmul.f32 %v2258, %v2061
    %v2261 = vlog2.pop %v1590
    %v2262 = vmul.f32 %v2261, 0.6931472
    %v2263 = vlog2.pop %v1591
    %v2264 = vmul.f32 %v2263, 0.6931472
    %v2265 = vsub.f32 %v2259, %v2262
    %v2266 = vsub.f32 %v2260, %v2264
    %v2267 = vmul.f32 %v1370, 0.5
    %v2268 = vmul.f32 %v1371, 0.5
    %v2269 = vmul.f32 %v2267, %v1370
    %v2270 = vmul.f32 %v2268, %v1371
    %v2271 = vlog2.pop %v2050
    %v2272 = vmul.f32 %v2271, 0.6931472
    %v2273 = vlog2.pop %v2051
    %v2274 = vmul.f32 %v2273, 0.6931472
    %v2275 = vadd.f32 %v2269, %v2272
    %v2276 = vadd.f32 %v2270, %v2274
    %v2277 = vld [vmem:[%s16] sm:$0xff]
    %v2278 = vld [vmem:[%s16 + $0x8] sm:$0xff]
    %v2280 = vsel %vm199, %v2275, 0
    %v2283 = vsel %vm199, %v2276, 0
    %2285 = vmatprep.subr.mxu0 0.0
    %2286 = vmatpush1.msra.mxu0 1.0
    %2287 = vmatprep.subr.mxu0 0.0
    %2288 = vmatpush1.msra.mxu0 1.0
    %2289 = vmatprep.subr.mxu0 0.0
    %2290 = vmatpush1.msra.mxu0 0.0
    %2291 = vmatprep.subr.mxu0 0.0
    %2292 = vmatpush1.msra.mxu0 0.0
    %2293 = vmatprep.subr.mxu0 0.0
    %2294 = vmatpush1.msra.mxu0 0.0
    %2295 = vmatprep.subr.mxu0 0.0
    %2296 = vmatpush1.msra.mxu0 0.0
    %2297 = vmatprep.subr.mxu0 0.0
    %2298 = vmatpush1.msra.mxu0 0.0
    %2299 = vmatprep.subr.mxu0 0.0
    %2300 = vmatpush1.msra.mxu0 0.0
    %2301 = vmatprep.subr.mxu0 0.0
    %2302 = vmatpush1.msra.mxu0 0.0
    %2303 = vmatprep.subr.mxu0 0.0
    %2304 = vmatpush1.msra.mxu0 0.0
    %2305 = vmatprep.subr.mxu0 0.0
    %2306 = vmatpush1.msra.mxu0 0.0
    %2307 = vmatprep.subr.mxu0 0.0
    %2308 = vmatpush1.msra.mxu0 0.0
    %2309 = vmatprep.subr.mxu0 0.0
    %2310 = vmatpush1.msra.mxu0 0.0
    %2311 = vmatprep.subr.mxu0 0.0
    %2312 = vmatpush1.msra.mxu0 0.0
    %2313 = vmatprep.subr.mxu0 0.0
    %2314 = vmatpush1.msra.mxu0 0.0
    %2315 = vmatprep.subr.mxu0 0.0
    %2316 = vmatpush1.msra.mxu0 0.0
    %2317 = vmatprep.subr.mxu0 0.0
    %2318 = vmatpush1.msra.mxu0 0.0
    %2319 = vmatprep.subr.mxu0 0.0
    %2320 = vmatpush1.msra.mxu0 0.0
    %2321 = vmatprep.subr.mxu0 0.0
    %2322 = vmatpush1.msra.mxu0 0.0
    %2323 = vmatprep.subr.mxu0 0.0
    %2324 = vmatpush1.msra.mxu0 0.0
    %2325 = vmatprep.subr.mxu0 0.0
    %2326 = vmatpush1.msra.mxu0 0.0
    %2327 = vmatprep.subr.mxu0 0.0
    %2328 = vmatpush1.msra.mxu0 0.0
    %2329 = vmatprep.subr.mxu0 0.0
    %2330 = vmatpush1.msra.mxu0 0.0
    %2331 = vmatprep.subr.mxu0 0.0
    %2332 = vmatpush1.msra.mxu0 0.0
    %2333 = vmatprep.subr.mxu0 0.0
    %2334 = vmatpush1.msra.mxu0 0.0
    %2335 = vmatprep.subr.mxu0 0.0
    %2336 = vmatpush1.msra.mxu0 0.0
    %2337 = vmatprep.subr.mxu0 0.0
    %2338 = vmatpush1.msra.mxu0 0.0
    %2339 = vmatprep.subr.mxu0 0.0
    %2340 = vmatpush1.msra.mxu0 0.0
    %2341 = vmatprep.subr.mxu0 0.0
    %2342 = vmatpush1.msra.mxu0 0.0
    %2343 = vmatprep.subr.mxu0 0.0
    %2344 = vmatpush1.msra.mxu0 0.0
    %2345 = vmatprep.subr.mxu0 0.0
    %2346 = vmatpush1.msra.mxu0 0.0
    %2347 = vmatprep.subr.mxu0 0.0
    %2348 = vmatpush1.msra.mxu0 0.0
    %2349 = vmatprep.mubr.f32.mxu0 0.0
    %2350 = vmatmul.mubr.f32.gmra.mrb[0].mxu0 %v2280
    %v2351 = vpop.f32.mrb[0].mxu0
    %v2352 = vadd.f32 0.0, %v2351
    %v2353 = vpop.f32.mrb[0].mxu0
    %2354 = vmatprep.mubr.f32.mxu0 0.0
    %2355 = vmatmul.mubr.f32.gmra.mrb[0].mxu0 %v2283
    %v2356 = vpop.f32.mrb[0].mxu0
    %v2357 = vadd.f32 0.0, %v2356
    %v2358 = vpop.f32.mrb[0].mxu0
    %2359 = vdwg.mxu0
    %v2361 = vsel %vm199, %v2265, 0
    %v2364 = vsel %vm199, %v2266, 0
    %2366 = vmatprep.subr.mxu0 0.0
    %2367 = vmatpush1.msra.mxu0 %v2277
    %2368 = vmatprep.subr.mxu0 0.0
    %2369 = vmatpush1.msra.mxu0 %v2278
    %2370 = vmatprep.subr.mxu0 0.0
    %2371 = vmatpush1.msra.mxu0 0.0
    %2372 = vmatprep.subr.mxu0 0.0
    %2373 = vmatpush1.msra.mxu0 0.0
    %2374 = vmatprep.subr.mxu0 0.0
    %2375 = vmatpush1.msra.mxu0 0.0
    %2376 = vmatprep.subr.mxu0 0.0
    %2377 = vmatpush1.msra.mxu0 0.0
    %2378 = vmatprep.subr.mxu0 0.0
    %2379 = vmatpush1.msra.mxu0 0.0
    %2380 = vmatprep.subr.mxu0 0.0
    %2381 = vmatpush1.msra.mxu0 0.0
    %2382 = vmatprep.subr.mxu0 0.0
    %2383 = vmatpush1.msra.mxu0 0.0
    %2384 = vmatprep.subr.mxu0 0.0
    %2385 = vmatpush1.msra.mxu0 0.0
    %2386 = vmatprep.subr.mxu0 0.0
    %2387 = vmatpush1.msra.mxu0 0.0
    %2388 = vmatprep.subr.mxu0 0.0
    %2389 = vmatpush1.msra.mxu0 0.0
    %2390 = vmatprep.subr.mxu0 0.0
    %2391 = vmatpush1.msra.mxu0 0.0
    %2392 = vmatprep.subr.mxu0 0.0
    %2393 = vmatpush1.msra.mxu0 0.0
    %2394 = vmatprep.subr.mxu0 0.0
    %2395 = vmatpush1.msra.mxu0 0.0
    %2396 = vmatprep.subr.mxu0 0.0
    %2397 = vmatpush1.msra.mxu0 0.0
    %2398 = vmatprep.subr.mxu0 0.0
    %2399 = vmatpush1.msra.mxu0 0.0
    %2400 = vmatprep.subr.mxu0 0.0
    %2401 = vmatpush1.msra.mxu0 0.0
    %2402 = vmatprep.subr.mxu0 0.0
    %2403 = vmatpush1.msra.mxu0 0.0
    %2404 = vmatprep.subr.mxu0 0.0
    %2405 = vmatpush1.msra.mxu0 0.0
    %2406 = vmatprep.subr.mxu0 0.0
    %2407 = vmatpush1.msra.mxu0 0.0
    %2408 = vmatprep.subr.mxu0 0.0
    %2409 = vmatpush1.msra.mxu0 0.0
    %2410 = vmatprep.subr.mxu0 0.0
    %2411 = vmatpush1.msra.mxu0 0.0
    %2412 = vmatprep.subr.mxu0 0.0
    %2413 = vmatpush1.msra.mxu0 0.0
    %2414 = vmatprep.subr.mxu0 0.0
    %2415 = vmatpush1.msra.mxu0 0.0
    %2416 = vmatprep.subr.mxu0 0.0
    %2417 = vmatpush1.msra.mxu0 0.0
    %2418 = vmatprep.subr.mxu0 0.0
    %2419 = vmatpush1.msra.mxu0 0.0
    %2420 = vmatprep.subr.mxu0 0.0
    %2421 = vmatpush1.msra.mxu0 0.0
    %2422 = vmatprep.subr.mxu0 0.0
    %2423 = vmatpush1.msra.mxu0 0.0
    %2424 = vmatprep.subr.mxu0 0.0
    %2425 = vmatpush1.msra.mxu0 0.0
    %2426 = vmatprep.subr.mxu0 0.0
    %2427 = vmatpush1.msra.mxu0 0.0
    %2428 = vmatprep.subr.mxu0 0.0
    %2429 = vmatpush1.msra.mxu0 0.0
    %2430 = vmatprep.mubr.f32.mxu0 0.0
    %2431 = vmatmul.mubr.f32.gmra.mrb[0].mxu0 %v2361
    %v2432 = vpop.f32.mrb[0].mxu0
    %v2433 = vadd.f32 %v2352, %v2432
    %v2434 = vpop.f32.mrb[0].mxu0
    %2435 = vmatprep.mubr.f32.mxu0 0.0
    %2436 = vmatmul.mubr.f32.gmra.mrb[0].mxu0 %v2364
    %v2437 = vpop.f32.mrb[0].mxu0
    %v2438 = vadd.f32 %v2357, %v2437
    %v2439 = vpop.f32.mrb[0].mxu0
    %2440 = vdwg.mxu0
    %v2441 = vmul.f32 %v2255, %v2255
    %v2442 = vmul.f32 %v2256, %v2256
    %v2443 = vld [vmem:[%s17] sm:$0xff]
    %v2444 = vld [vmem:[%s17 + $0x8] sm:$0xff]
    %v2445 = vld [vmem:[%s17 + $0x10] sm:$0xff]
    %v2446 = vld [vmem:[%s17 + $0x18] sm:$0xff]
    %v2447 = vld [vmem:[%s17 + $0x20] sm:$0xff]
    %v2448 = vld [vmem:[%s17 + $0x28] sm:$0xff]
    %v2449 = vld [vmem:[%s17 + $0x30] sm:$0xff]
    %v2450 = vld [vmem:[%s17 + $0x38] sm:$0xff]
    %v2452 = vsel %vm411, %v2441, 0
    %v2455 = vsel %vm411, %v2442, 0
    %2457 = vmatprep.subr.mxu0 0.0
    %2458 = vmatpush1.msra.mxu0 %v2443
    %2459 = vmatprep.subr.mxu0 0.0
    %2460 = vmatpush1.msra.mxu0 %v2444
    %2461 = vmatprep.subr.mxu0 0.0
    %2462 = vmatpush1.msra.mxu0 %v2445
    %2463 = vmatprep.subr.mxu0 0.0
    %2464 = vmatpush1.msra.mxu0 %v2446
    %2465 = vmatprep.subr.mxu0 0.0
    %2466 = vmatpush1.msra.mxu0 %v2447
    %2467 = vmatprep.subr.mxu0 0.0
    %2468 = vmatpush1.msra.mxu0 %v2448
    %2469 = vmatprep.subr.mxu0 0.0
    %2470 = vmatpush1.msra.mxu0 %v2449
    %2471 = vmatprep.subr.mxu0 0.0
    %2472 = vmatpush1.msra.mxu0 %v2450
    %2473 = vmatprep.subr.mxu0 0.0
    %2474 = vmatpush1.msra.mxu0 0.0
    %2475 = vmatprep.subr.mxu0 0.0
    %2476 = vmatpush1.msra.mxu0 0.0
    %2477 = vmatprep.subr.mxu0 0.0
    %2478 = vmatpush1.msra.mxu0 0.0
    %2479 = vmatprep.subr.mxu0 0.0
    %2480 = vmatpush1.msra.mxu0 0.0
    %2481 = vmatprep.subr.mxu0 0.0
    %2482 = vmatpush1.msra.mxu0 0.0
    %2483 = vmatprep.subr.mxu0 0.0
    %2484 = vmatpush1.msra.mxu0 0.0
    %2485 = vmatprep.subr.mxu0 0.0
    %2486 = vmatpush1.msra.mxu0 0.0
    %2487 = vmatprep.subr.mxu0 0.0
    %2488 = vmatpush1.msra.mxu0 0.0
    %2489 = vmatprep.subr.mxu0 0.0
    %2490 = vmatpush1.msra.mxu0 0.0
    %2491 = vmatprep.subr.mxu0 0.0
    %2492 = vmatpush1.msra.mxu0 0.0
    %2493 = vmatprep.subr.mxu0 0.0
    %2494 = vmatpush1.msra.mxu0 0.0
    %2495 = vmatprep.subr.mxu0 0.0
    %2496 = vmatpush1.msra.mxu0 0.0
    %2497 = vmatprep.subr.mxu0 0.0
    %2498 = vmatpush1.msra.mxu0 0.0
    %2499 = vmatprep.subr.mxu0 0.0
    %2500 = vmatpush1.msra.mxu0 0.0
    %2501 = vmatprep.subr.mxu0 0.0
    %2502 = vmatpush1.msra.mxu0 0.0
    %2503 = vmatprep.subr.mxu0 0.0
    %2504 = vmatpush1.msra.mxu0 0.0
    %2505 = vmatprep.subr.mxu0 0.0
    %2506 = vmatpush1.msra.mxu0 0.0
    %2507 = vmatprep.subr.mxu0 0.0
    %2508 = vmatpush1.msra.mxu0 0.0
    %2509 = vmatprep.subr.mxu0 0.0
    %2510 = vmatpush1.msra.mxu0 0.0
    %2511 = vmatprep.subr.mxu0 0.0
    %2512 = vmatpush1.msra.mxu0 0.0
    %2513 = vmatprep.subr.mxu0 0.0
    %2514 = vmatpush1.msra.mxu0 0.0
    %2515 = vmatprep.subr.mxu0 0.0
    %2516 = vmatpush1.msra.mxu0 0.0
    %2517 = vmatprep.subr.mxu0 0.0
    %2518 = vmatpush1.msra.mxu0 0.0
    %2519 = vmatprep.subr.mxu0 0.0
    %2520 = vmatpush1.msra.mxu0 0.0
    %2521 = vmatprep.mubr.f32.mxu0 0.0
    %2522 = vmatmul.mubr.f32.gmra.mrb[0].mxu0 %v2452
    %v2523 = vpop.f32.mrb[0].mxu0
    %v2524 = vadd.f32 0.0, %v2523
    %v2525 = vpop.f32.mrb[0].mxu0
    %2526 = vmatprep.mubr.f32.mxu0 0.0
    %2527 = vmatmul.mubr.f32.gmra.mrb[0].mxu0 %v2455
    %v2528 = vpop.f32.mrb[0].mxu0
    %v2529 = vadd.f32 0.0, %v2528
    %v2530 = vpop.f32.mrb[0].mxu0
    %2531 = vdwg.mxu0
    %v2532 = vadd.f32 %v2433, %v2524
    %v2533 = vadd.f32 %v2438, %v2529
    %v2534 = vadd.f32 %v2532, %v1358
    %v2535 = vadd.f32 %v2533, %v1358
    %2538 = vrot.lane.b32.xlu0 %v2534, 1
    %v2539 = vpop.permute.xlu0 %2538
    %2540 = vrot.lane.b32.xlu0 %v2535, 1
    %v2541 = vpop.permute.xlu0 %2540
    %vm2544 = vcmask 15368
    %2545 = vst.msk [vmem:[%s19] sm:$0xff] %vm2544, %v2539
    %2546 = vst.msk [vmem:[%s19 + $0x8] sm:$0xff] %vm2544, %v2541
    %s2547 = scalar_lea.vmem [#allocation16], 16
    %2548 = vst.msk [vmem:[%s2547] sm:$0xff] %vm199, %v2054
    %2549 = vst.msk [vmem:[%s2547 + $0x8] sm:$0xff] %vm199, %v2055
    %s2550 = scalar_lea.vmem [#allocation5], 4
    %v2551 = vld [vmem:[%s2550] sm:$0x3]
    %s2552 = scalar_lea.vmem %s1, 32
    %v2553 = vld [vmem:[%s2552] sm:$0xff]
    %v2554 = vld [vmem:[%s2552 + $0x8] sm:$0xff]
    %v2555 = vld [vmem:[%s7] sm:$0xff]
    %v2556 = vld [vmem:[%s7 + $0x8] sm:$0xff]
    %v2557 = vld [vmem:[%s7 + $0x10] sm:$0xff]
    %v2558 = vld [vmem:[%s7 + $0x18] sm:$0xff]
    %v2559 = vld [vmem:[%s7 + $0x20] sm:$0xff]
    %v2560 = vld [vmem:[%s7 + $0x28] sm:$0xff]
    %v2561 = vld [vmem:[%s7 + $0x30] sm:$0xff]
    %v2562 = vld [vmem:[%s7 + $0x38] sm:$0xff]
    %v2563 = vld [vmem:[#allocation13] sm:$0xf]
    %v2565 = vlaneseq
    %v2566 = vshrl.u32 %v2565, 7
    %v2567 = vsub.s32 0, %v2566
    %v2568 = vrot.slane %v2563, %v2567
    %v2569 = vlaneseq
    %v2570 = vshrl.u32 %v2569, 7
    %v2571 = vsub.s32 1, %v2570
    %v2572 = vrot.slane %v2563, %v2571
    %v2573 = vlaneseq
    %v2574 = vshrl.u32 %v2573, 7
    %v2575 = vsub.s32 2, %v2574
    %v2576 = vrot.slane %v2563, %v2575
    %v2577 = vlaneseq
    %v2578 = vshrl.u32 %v2577, 7
    %v2579 = vsub.s32 3, %v2578
    %v2580 = vrot.slane %v2563, %v2579
    %2585 = vmatprep.subr.mxu0 %v2556
    %2586 = vmatpush1.msra.mxu0 %v2555
    %2587 = vmatprep.subr.mxu0 %v2560
    %2588 = vmatpush1.msra.mxu0 %v2559
    %2589 = vmatprep.subr.mxu0 0.0
    %2590 = vmatpush1.msra.mxu0 0.0
    %2591 = vmatprep.subr.mxu0 0.0
    %2592 = vmatpush1.msra.mxu0 0.0
    %2593 = vmatprep.subr.mxu0 0.0
    %2594 = vmatpush1.msra.mxu0 0.0
    %2595 = vmatprep.subr.mxu0 0.0
    %2596 = vmatpush1.msra.mxu0 0.0
    %2597 = vmatprep.subr.mxu0 0.0
    %2598 = vmatpush1.msra.mxu0 0.0
    %2599 = vmatprep.subr.mxu0 0.0
    %2600 = vmatpush1.msra.mxu0 0.0
    %2601 = vmatprep.subr.mxu0 0.0
    %2602 = vmatpush1.msra.mxu0 0.0
    %2603 = vmatprep.subr.mxu0 0.0
    %2604 = vmatpush1.msra.mxu0 0.0
    %2605 = vmatprep.subr.mxu0 0.0
    %2606 = vmatpush1.msra.mxu0 0.0
    %2607 = vmatprep.subr.mxu0 0.0
    %2608 = vmatpush1.msra.mxu0 0.0
    %2609 = vmatprep.subr.mxu0 0.0
    %2610 = vmatpush1.msra.mxu0 0.0
    %2611 = vmatprep.subr.mxu0 0.0
    %2612 = vmatpush1.msra.mxu0 0.0
    %2613 = vmatprep.subr.mxu0 0.0
    %2614 = vmatpush1.msra.mxu0 0.0
    %2615 = vmatprep.subr.mxu0 0.0
    %2616 = vmatpush1.msra.mxu0 0.0
    %2617 = vmatprep.subr.mxu0 0.0
    %2618 = vmatpush1.msra.mxu0 0.0
    %2619 = vmatprep.subr.mxu0 0.0
    %2620 = vmatpush1.msra.mxu0 0.0
    %2621 = vmatprep.subr.mxu0 0.0
    %2622 = vmatpush1.msra.mxu0 0.0
    %2623 = vmatprep.subr.mxu0 0.0
    %2624 = vmatpush1.msra.mxu0 0.0
    %2625 = vmatprep.subr.mxu0 0.0
    %2626 = vmatpush1.msra.mxu0 0.0
    %2627 = vmatprep.subr.mxu0 0.0
    %2628 = vmatpush1.msra.mxu0 0.0
    %2629 = vmatprep.subr.mxu0 0.0
    %2630 = vmatpush1.msra.mxu0 0.0
    %2631 = vmatprep.subr.mxu0 0.0
    %2632 = vmatpush1.msra.mxu0 0.0
    %2633 = vmatprep.subr.mxu0 0.0
    %2634 = vmatpush1.msra.mxu0 0.0
    %2635 = vmatprep.subr.mxu0 0.0
    %2636 = vmatpush1.msra.mxu0 0.0
    %2637 = vmatprep.subr.mxu0 0.0
    %2638 = vmatpush1.msra.mxu0 0.0
    %2639 = vmatprep.subr.mxu0 0.0
    %2640 = vmatpush1.msra.mxu0 0.0
    %2641 = vmatprep.subr.mxu0 0.0
    %2642 = vmatpush1.msra.mxu0 0.0
    %2643 = vmatprep.subr.mxu0 0.0
    %2644 = vmatpush1.msra.mxu0 0.0
    %2645 = vmatprep.subr.mxu0 0.0
    %2646 = vmatpush1.msra.mxu0 0.0
    %2647 = vmatprep.subr.mxu0 0.0
    %2648 = vmatpush1.msra.mxu0 0.0
    %2649 = vmatprep.mubr.f32.mxu0 0.0
    %2650 = vmatmul.mubr.f32.gmra.mrb[0].mxu0 %v2072
    %v2651 = vpop.f32.mrb[0].mxu0
    %v2652 = vadd.f32 %v2568, %v2651
    %v2653 = vpop.f32.mrb[0].mxu0
    %v2654 = vadd.f32 %v2572, %v2653
    %2655 = vmatprep.mubr.f32.mxu0 0.0
    %2656 = vmatmul.mubr.f32.gmra.mrb[0].mxu0 %v2075
    %v2657 = vpop.f32.mrb[0].mxu0
    %v2658 = vadd.f32 %v2568, %v2657
    %v2659 = vpop.f32.mrb[0].mxu0
    %v2660 = vadd.f32 %v2572, %v2659
    %2661 = vdwg.mxu0
    %2662 = vmatprep.subr.mxu0 %v2558
    %2663 = vmatpush1.msra.mxu0 %v2557
    %2664 = vmatprep.subr.mxu0 %v2562
    %2665 = vmatpush1.msra.mxu0 %v2561
    %2666 = vmatprep.subr.mxu0 0.0
    %2667 = vmatpush1.msra.mxu0 0.0
    %2668 = vmatprep.subr.mxu0 0.0
    %2669 = vmatpush1.msra.mxu0 0.0
    %2670 = vmatprep.subr.mxu0 0.0
    %2671 = vmatpush1.msra.mxu0 0.0
    %2672 = vmatprep.subr.mxu0 0.0
    %2673 = vmatpush1.msra.mxu0 0.0
    %2674 = vmatprep.subr.mxu0 0.0
    %2675 = vmatpush1.msra.mxu0 0.0
    %2676 = vmatprep.subr.mxu0 0.0
    %2677 = vmatpush1.msra.mxu0 0.0
    %2678 = vmatprep.subr.mxu0 0.0
    %2679 = vmatpush1.msra.mxu0 0.0
    %2680 = vmatprep.subr.mxu0 0.0
    %2681 = vmatpush1.msra.mxu0 0.0
    %2682 = vmatprep.subr.mxu0 0.0
    %2683 = vmatpush1.msra.mxu0 0.0
    %2684 = vmatprep.subr.mxu0 0.0
    %2685 = vmatpush1.msra.mxu0 0.0
    %2686 = vmatprep.subr.mxu0 0.0
    %2687 = vmatpush1.msra.mxu0 0.0
    %2688 = vmatprep.subr.mxu0 0.0
    %2689 = vmatpush1.msra.mxu0 0.0
    %2690 = vmatprep.subr.mxu0 0.0
    %2691 = vmatpush1.msra.mxu0 0.0
    %2692 = vmatprep.subr.mxu0 0.0
    %2693 = vmatpush1.msra.mxu0 0.0
    %2694 = vmatprep.subr.mxu0 0.0
    %2695 = vmatpush1.msra.mxu0 0.0
    %2696 = vmatprep.subr.mxu0 0.0
    %2697 = vmatpush1.msra.mxu0 0.0
    %2698 = vmatprep.subr.mxu0 0.0
    %2699 = vmatpush1.msra.mxu0 0.0
    %2700 = vmatprep.subr.mxu0 0.0
    %2701 = vmatpush1.msra.mxu0 0.0
    %2702 = vmatprep.subr.mxu0 0.0
    %2703 = vmatpush1.msra.mxu0 0.0
    %2704 = vmatprep.subr.mxu0 0.0
    %2705 = vmatpush1.msra.mxu0 0.0
    %2706 = vmatprep.subr.mxu0 0.0
    %2707 = vmatpush1.msra.mxu0 0.0
    %2708 = vmatprep.subr.mxu0 0.0
    %2709 = vmatpush1.msra.mxu0 0.0
    %2710 = vmatprep.subr.mxu0 0.0
    %2711 = vmatpush1.msra.mxu0 0.0
    %2712 = vmatprep.subr.mxu0 0.0
    %2713 = vmatpush1.msra.mxu0 0.0
    %2714 = vmatprep.subr.mxu0 0.0
    %2715 = vmatpush1.msra.mxu0 0.0
    %2716 = vmatprep.subr.mxu0 0.0
    %2717 = vmatpush1.msra.mxu0 0.0
    %2718 = vmatprep.subr.mxu0 0.0
    %2719 = vmatpush1.msra.mxu0 0.0
    %2720 = vmatprep.subr.mxu0 0.0
    %2721 = vmatpush1.msra.mxu0 0.0
    %2722 = vmatprep.subr.mxu0 0.0
    %2723 = vmatpush1.msra.mxu0 0.0
    %2724 = vmatprep.subr.mxu0 0.0
    %2725 = vmatpush1.msra.mxu0 0.0
    %2726 = vmatprep.mubr.f32.mxu0 0.0
    %2727 = vmatmul.mubr.f32.gmra.mrb[0].mxu0 %v2072
    %v2728 = vpop.f32.mrb[0].mxu0
    %v2729 = vadd.f32 %v2576, %v2728
    %v2730 = vpop.f32.mrb[0].mxu0
    %v2731 = vadd.f32 %v2580, %v2730
    %2732 = vmatprep.mubr.f32.mxu0 0.0
    %2733 = vmatmul.mubr.f32.gmra.mrb[0].mxu0 %v2075
    %v2734 = vpop.f32.mrb[0].mxu0
    %v2735 = vadd.f32 %v2576, %v2734
    %v2736 = vpop.f32.mrb[0].mxu0
    %v2737 = vadd.f32 %v2580, %v2736
    %2738 = vdwg.mxu0
    %v2739 = vmax.f32 %v2654, 0.0
    %v2740 = vmax.f32 %v2660, 0.0
    %vm2741 = vcmp.ne.f32.partialorder %v2654, %v2654
    %vm2742 = vcmp.ne.f32.partialorder %v2660, %v2660
    %v2743 = vadd.f32 %v2654, 0.0
    %v2744 = vadd.f32 %v2660, 0.0
    %v2745 = vand.u32 2147483647, %v2654
    %v2746 = vand.u32 2147483647, %v2660
    %v2747 = vsub.f32 0.0, %v2745
    %v2748 = vsub.f32 0.0, %v2746
    %v2749 = vmul.f32 %v2747, 1.442695
    %v2750 = vpow.pop %v2749
    %v2751 = vmul.f32 %v2748, 1.442695
    %v2752 = vpow.pop %v2751
    %v2753 = vadd.f32 %v2750, 1.0
    %v2754 = vlog2.pop %v2753
    %v2755 = vmul.f32 %v2754, 0.6931472
    %v2756 = vmul.f32 -0.5, %v2750
    %v2757 = vadd.f32 %v2756, 1.0
    %v2758 = vmul.f32 %v2757, %v2750
    %v2759 = vand.u32 2147483647, %v2750
    %vm2760 = vcmp.lt.f32.partialorder %v2759, 0.0004427343
    %v2761 = vsel %vm2760, %v2758, %v2755
    %v2762 = vadd.f32 %v2752, 1.0
    %v2763 = vlog2.pop %v2762
    %v2764 = vmul.f32 %v2763, 0.6931472
    %v2765 = vmul.f32 -0.5, %v2752
    %v2766 = vadd.f32 %v2765, 1.0
    %v2767 = vmul.f32 %v2766, %v2752
    %v2768 = vand.u32 2147483647, %v2752
    %vm2769 = vcmp.lt.f32.partialorder %v2768, 0.0004427343
    %v2770 = vsel %vm2769, %v2767, %v2764
    %v2771 = vadd.f32 %v2739, %v2761
    %v2772 = vadd.f32 %v2740, %v2770
    %v2773 = vsel %vm2741, %v2743, %v2771
    %v2774 = vsel %vm2742, %v2744, %v2772
    %v2775 = vld [vmem:[%s5] sm:$0xff]
    %v2776 = vld [vmem:[%s5 + $0x8] sm:$0xff]
    %v2777 = vld [vmem:[%s5 + $0x10] sm:$0xff]
    %v2778 = vld [vmem:[%s5 + $0x18] sm:$0xff]
    %v2779 = vld [vmem:[%s5 + $0x20] sm:$0xff]
    %v2780 = vld [vmem:[%s5 + $0x28] sm:$0xff]
    %v2781 = vld [vmem:[%s5 + $0x30] sm:$0xff]
    %v2782 = vld [vmem:[%s5 + $0x38] sm:$0xff]
    %v2783 = vld [vmem:[#allocation11] sm:$0x1]
    %v2785 = vlaneseq
    %v2786 = vshrl.u32 %v2785, 7
    %v2787 = vsub.s32 0, %v2786
    %v2788 = vrot.slane %v2783, %v2787
    %v2791 = vsel %vm411, %v2551, 0
    %2793 = vmatprep.subr.mxu0 0.0
    %2794 = vmatpush1.msra.mxu0 %v2775
    %2795 = vmatprep.subr.mxu0 0.0
    %2796 = vmatpush1.msra.mxu0 %v2776
    %2797 = vmatprep.subr.mxu0 0.0
    %2798 = vmatpush1.msra.mxu0 %v2777
    %2799 = vmatprep.subr.mxu0 0.0
    %2800 = vmatpush1.msra.mxu0 %v2778
    %2801 = vmatprep.subr.mxu0 0.0
    %2802 = vmatpush1.msra.mxu0 %v2779
    %2803 = vmatprep.subr.mxu0 0.0
    %2804 = vmatpush1.msra.mxu0 %v2780
    %2805 = vmatprep.subr.mxu0 0.0
    %2806 = vmatpush1.msra.mxu0 %v2781
    %2807 = vmatprep.subr.mxu0 0.0
    %2808 = vmatpush1.msra.mxu0 %v2782
    %2809 = vmatprep.subr.mxu0 0.0
    %2810 = vmatpush1.msra.mxu0 0.0
    %2811 = vmatprep.subr.mxu0 0.0
    %2812 = vmatpush1.msra.mxu0 0.0
    %2813 = vmatprep.subr.mxu0 0.0
    %2814 = vmatpush1.msra.mxu0 0.0
    %2815 = vmatprep.subr.mxu0 0.0
    %2816 = vmatpush1.msra.mxu0 0.0
    %2817 = vmatprep.subr.mxu0 0.0
    %2818 = vmatpush1.msra.mxu0 0.0
    %2819 = vmatprep.subr.mxu0 0.0
    %2820 = vmatpush1.msra.mxu0 0.0
    %2821 = vmatprep.subr.mxu0 0.0
    %2822 = vmatpush1.msra.mxu0 0.0
    %2823 = vmatprep.subr.mxu0 0.0
    %2824 = vmatpush1.msra.mxu0 0.0
    %2825 = vmatprep.subr.mxu0 0.0
    %2826 = vmatpush1.msra.mxu0 0.0
    %2827 = vmatprep.subr.mxu0 0.0
    %2828 = vmatpush1.msra.mxu0 0.0
    %2829 = vmatprep.subr.mxu0 0.0
    %2830 = vmatpush1.msra.mxu0 0.0
    %2831 = vmatprep.subr.mxu0 0.0
    %2832 = vmatpush1.msra.mxu0 0.0
    %2833 = vmatprep.subr.mxu0 0.0
    %2834 = vmatpush1.msra.mxu0 0.0
    %2835 = vmatprep.subr.mxu0 0.0
    %2836 = vmatpush1.msra.mxu0 0.0
    %2837 = vmatprep.subr.mxu0 0.0
    %2838 = vmatpush1.msra.mxu0 0.0
    %2839 = vmatprep.subr.mxu0 0.0
    %2840 = vmatpush1.msra.mxu0 0.0
    %2841 = vmatprep.subr.mxu0 0.0
    %2842 = vmatpush1.msra.mxu0 0.0
    %2843 = vmatprep.subr.mxu0 0.0
    %2844 = vmatpush1.msra.mxu0 0.0
    %2845 = vmatprep.subr.mxu0 0.0
    %2846 = vmatpush1.msra.mxu0 0.0
    %2847 = vmatprep.subr.mxu0 0.0
    %2848 = vmatpush1.msra.mxu0 0.0
    %2849 = vmatprep.subr.mxu0 0.0
    %2850 = vmatpush1.msra.mxu0 0.0
    %2851 = vmatprep.subr.mxu0 0.0
    %2852 = vmatpush1.msra.mxu0 0.0
    %2853 = vmatprep.subr.mxu0 0.0
    %2854 = vmatpush1.msra.mxu0 0.0
    %2855 = vmatprep.subr.mxu0 0.0
    %2856 = vmatpush1.msra.mxu0 0.0
    %2857 = vmatprep.mubr.f32.mxu0 0.0
    %2858 = vmatmul.mubr.f32.gmra.mrb[0].mxu0 %v2791
    %v2859 = vpop.f32.mrb[0].mxu0
    %v2860 = vadd.f32 %v2788, %v2859
    %v2861 = vpop.f32.mrb[0].mxu0
    %2862 = vdwg.mxu0
    %v2863 = vmax.f32 %v2860, 0.0
    %v2864 = vld [vmem:[#allocation14] sm:$0xff]
    %v2865 = vld [vmem:[#allocation14 + $0x8] sm:$0xff]
    %v2866 = vld [vmem:[#allocation14 + $0x10] sm:$0xff]
    %v2867 = vld [vmem:[#allocation14 + $0x18] sm:$0xff]
    %v2868 = vld [vmem:[#allocation14 + $0x20] sm:$0xff]
    %v2869 = vld [vmem:[#allocation14 + $0x28] sm:$0xff]
    %v2870 = vld [vmem:[#allocation14 + $0x30] sm:$0xff]
    %v2871 = vld [vmem:[#allocation14 + $0x38] sm:$0xff]
    %v2873 = vsel %vm494, %v2863, 0
    %2875 = vmatprep.subr.mxu0 %v2865
    %2876 = vmatpush1.msra.mxu0 %v2864
    %2877 = vmatprep.subr.mxu0 %v2867
    %2878 = vmatpush1.msra.mxu0 %v2866
    %2879 = vmatprep.subr.mxu0 %v2869
    %2880 = vmatpush1.msra.mxu0 %v2868
    %2881 = vmatprep.subr.mxu0 %v2871
    %2882 = vmatpush1.msra.mxu0 %v2870
    %2883 = vmatprep.subr.mxu0 0.0
    %2884 = vmatpush1.msra.mxu0 0.0
    %2885 = vmatprep.subr.mxu0 0.0
    %2886 = vmatpush1.msra.mxu0 0.0
    %2887 = vmatprep.subr.mxu0 0.0
    %2888 = vmatpush1.msra.mxu0 0.0
    %2889 = vmatprep.subr.mxu0 0.0
    %2890 = vmatpush1.msra.mxu0 0.0
    %2891 = vmatprep.subr.mxu0 0.0
    %2892 = vmatpush1.msra.mxu0 0.0
    %2893 = vmatprep.subr.mxu0 0.0
    %2894 = vmatpush1.msra.mxu0 0.0
    %2895 = vmatprep.subr.mxu0 0.0
    %2896 = vmatpush1.msra.mxu0 0.0
    %2897 = vmatprep.subr.mxu0 0.0
    %2898 = vmatpush1.msra.mxu0 0.0
    %2899 = vmatprep.subr.mxu0 0.0
    %2900 = vmatpush1.msra.mxu0 0.0
    %2901 = vmatprep.subr.mxu0 0.0
    %2902 = vmatpush1.msra.mxu0 0.0
    %2903 = vmatprep.subr.mxu0 0.0
    %2904 = vmatpush1.msra.mxu0 0.0
    %2905 = vmatprep.subr.mxu0 0.0
    %2906 = vmatpush1.msra.mxu0 0.0
    %2907 = vmatprep.subr.mxu0 0.0
    %2908 = vmatpush1.msra.mxu0 0.0
    %2909 = vmatprep.subr.mxu0 0.0
    %2910 = vmatpush1.msra.mxu0 0.0
    %2911 = vmatprep.subr.mxu0 0.0
    %2912 = vmatpush1.msra.mxu0 0.0
    %2913 = vmatprep.subr.mxu0 0.0
    %2914 = vmatpush1.msra.mxu0 0.0
    %2915 = vmatprep.subr.mxu0 0.0
    %2916 = vmatpush1.msra.mxu0 0.0
    %2917 = vmatprep.subr.mxu0 0.0
    %2918 = vmatpush1.msra.mxu0 0.0
    %2919 = vmatprep.subr.mxu0 0.0
    %2920 = vmatpush1.msra.mxu0 0.0
    %2921 = vmatprep.subr.mxu0 0.0
    %2922 = vmatpush1.msra.mxu0 0.0
    %2923 = vmatprep.subr.mxu0 0.0
    %2924 = vmatpush1.msra.mxu0 0.0
    %2925 = vmatprep.subr.mxu0 0.0
    %2926 = vmatpush1.msra.mxu0 0.0
    %2927 = vmatprep.subr.mxu0 0.0
    %2928 = vmatpush1.msra.mxu0 0.0
    %2929 = vmatprep.subr.mxu0 0.0
    %2930 = vmatpush1.msra.mxu0 0.0
    %2931 = vmatprep.subr.mxu0 0.0
    %2932 = vmatpush1.msra.mxu0 0.0
    %2933 = vmatprep.subr.mxu0 0.0
    %2934 = vmatpush1.msra.mxu0 0.0
    %2935 = vmatprep.subr.mxu0 0.0
    %2936 = vmatpush1.msra.mxu0 0.0
    %2937 = vmatprep.subr.mxu0 0.0
    %2938 = vmatpush1.msra.mxu0 0.0
    %2939 = vmatprep.mubr.f32.mxu0 0.0
    %2940 = vmatmul.mubr.f32.gmra.mrb[0].mxu0 %v2873
    %v2941 = vpop.f32.mrb[0].mxu0
    %v2942 = vadd.f32 0.0, %v2941
    %v2943 = vpop.f32.mrb[0].mxu0
    %v2944 = vadd.f32 0.0, %v2943
    %2945 = vdwg.mxu0
    %v2947 = vsel %vm576, %v2942, 0
    %v2950 = vsel %vm576, %v2944, 0
    %v2952 = vsel %vm576, %v2551, 0
    %2954 = vmatprep.subr.mxu0 %v2950
    %2955 = vmatpush1.msra.mxu0 %v2947
    %2956 = vmatprep.subr.mxu0 0.0
    %2957 = vmatpush1.msra.mxu0 0.0
    %2958 = vmatprep.subr.mxu0 0.0
    %2959 = vmatpush1.msra.mxu0 0.0
    %2960 = vmatprep.subr.mxu0 0.0
    %2961 = vmatpush1.msra.mxu0 0.0
    %2962 = vmatprep.subr.mxu0 0.0
    %2963 = vmatpush1.msra.mxu0 0.0
    %2964 = vmatprep.subr.mxu0 0.0
    %2965 = vmatpush1.msra.mxu0 0.0
    %2966 = vmatprep.subr.mxu0 0.0
    %2967 = vmatpush1.msra.mxu0 0.0
    %2968 = vmatprep.subr.mxu0 0.0
    %2969 = vmatpush1.msra.mxu0 0.0
    %2970 = vmatprep.subr.mxu0 0.0
    %2971 = vmatpush1.msra.mxu0 0.0
    %2972 = vmatprep.subr.mxu0 0.0
    %2973 = vmatpush1.msra.mxu0 0.0
    %2974 = vmatprep.subr.mxu0 0.0
    %2975 = vmatpush1.msra.mxu0 0.0
    %2976 = vmatprep.subr.mxu0 0.0
    %2977 = vmatpush1.msra.mxu0 0.0
    %2978 = vmatprep.subr.mxu0 0.0
    %2979 = vmatpush1.msra.mxu0 0.0
    %2980 = vmatprep.subr.mxu0 0.0
    %2981 = vmatpush1.msra.mxu0 0.0
    %2982 = vmatprep.subr.mxu0 0.0
    %2983 = vmatpush1.msra.mxu0 0.0
    %2984 = vmatprep.subr.mxu0 0.0
    %2985 = vmatpush1.msra.mxu0 0.0
    %2986 = vmatprep.subr.mxu0 0.0
    %2987 = vmatpush1.msra.mxu0 0.0
    %2988 = vmatprep.subr.mxu0 0.0
    %2989 = vmatpush1.msra.mxu0 0.0
    %2990 = vmatprep.subr.mxu0 0.0
    %2991 = vmatpush1.msra.mxu0 0.0
    %2992 = vmatprep.subr.mxu0 0.0
    %2993 = vmatpush1.msra.mxu0 0.0
    %2994 = vmatprep.subr.mxu0 0.0
    %2995 = vmatpush1.msra.mxu0 0.0
    %2996 = vmatprep.subr.mxu0 0.0
    %2997 = vmatpush1.msra.mxu0 0.0
    %2998 = vmatprep.subr.mxu0 0.0
    %2999 = vmatpush1.msra.mxu0 0.0
    %3000 = vmatprep.subr.mxu0 0.0
    %3001 = vmatpush1.msra.mxu0 0.0
    %3002 = vmatprep.subr.mxu0 0.0
    %3003 = vmatpush1.msra.mxu0 0.0
    %3004 = vmatprep.subr.mxu0 0.0
    %3005 = vmatpush1.msra.mxu0 0.0
    %3006 = vmatprep.subr.mxu0 0.0
    %3007 = vmatpush1.msra.mxu0 0.0
    %3008 = vmatprep.subr.mxu0 0.0
    %3009 = vmatpush1.msra.mxu0 0.0
    %3010 = vmatprep.subr.mxu0 0.0
    %3011 = vmatpush1.msra.mxu0 0.0
    %3012 = vmatprep.subr.mxu0 0.0
    %3013 = vmatpush1.msra.mxu0 0.0
    %3014 = vmatprep.subr.mxu0 0.0
    %3015 = vmatpush1.msra.mxu0 0.0
    %3016 = vmatprep.subr.mxu0 0.0
    %3017 = vmatpush1.msra.mxu0 0.0
    %3018 = vmatprep.mubr.f32.mxu0 0.0
    %3019 = vmatmul.mubr.f32.gmra.mrb[0].mxu0 %v571
    %v3020 = vpop.f32.mrb[0].mxu0
    %v3021 = vadd.f32 0.0, %v3020
    %v3022 = vpop.f32.mrb[0].mxu0
    %v3023 = vadd.f32 0.0, %v3022
    %3024 = vmatprep.mubr.f32.mxu0 0.0
    %3025 = vmatmul.mubr.f32.gmra.mrb[0].mxu0 %v574
    %v3026 = vpop.f32.mrb[0].mxu0
    %v3027 = vadd.f32 0.0, %v3026
    %v3028 = vpop.f32.mrb[0].mxu0
    %v3029 = vadd.f32 0.0, %v3028
    %3030 = vdwg.mxu0
    %3031 = vmatprep.subr.mxu0 0.0
    %3032 = vmatpush1.msra.mxu0 %v2952
    %3033 = vmatprep.subr.mxu0 0.0
    %3034 = vmatpush1.msra.mxu0 0.0
    %3035 = vmatprep.subr.mxu0 0.0
    %3036 = vmatpush1.msra.mxu0 0.0
    %3037 = vmatprep.subr.mxu0 0.0
    %3038 = vmatpush1.msra.mxu0 0.0
    %3039 = vmatprep.subr.mxu0 0.0
    %3040 = vmatpush1.msra.mxu0 0.0
    %3041 = vmatprep.subr.mxu0 0.0
    %3042 = vmatpush1.msra.mxu0 0.0
    %3043 = vmatprep.subr.mxu0 0.0
    %3044 = vmatpush1.msra.mxu0 0.0
    %3045 = vmatprep.subr.mxu0 0.0
    %3046 = vmatpush1.msra.mxu0 0.0
    %3047 = vmatprep.subr.mxu0 0.0
    %3048 = vmatpush1.msra.mxu0 0.0
    %3049 = vmatprep.subr.mxu0 0.0
    %3050 = vmatpush1.msra.mxu0 0.0
    %3051 = vmatprep.subr.mxu0 0.0
    %3052 = vmatpush1.msra.mxu0 0.0
    %3053 = vmatprep.subr.mxu0 0.0
    %3054 = vmatpush1.msra.mxu0 0.0
    %3055 = vmatprep.subr.mxu0 0.0
    %3056 = vmatpush1.msra.mxu0 0.0
    %3057 = vmatprep.subr.mxu0 0.0
    %3058 = vmatpush1.msra.mxu0 0.0
    %3059 = vmatprep.subr.mxu0 0.0
    %3060 = vmatpush1.msra.mxu0 0.0
    %3061 = vmatprep.subr.mxu0 0.0
    %3062 = vmatpush1.msra.mxu0 0.0
    %3063 = vmatprep.subr.mxu0 0.0
    %3064 = vmatpush1.msra.mxu0 0.0
    %3065 = vmatprep.subr.mxu0 0.0
    %3066 = vmatpush1.msra.mxu0 0.0
    %3067 = vmatprep.subr.mxu0 0.0
    %3068 = vmatpush1.msra.mxu0 0.0
    %3069 = vmatprep.subr.mxu0 0.0
    %3070 = vmatpush1.msra.mxu0 0.0
    %3071 = vmatprep.subr.mxu0 0.0
    %3072 = vmatpush1.msra.mxu0 0.0
    %3073 = vmatprep.subr.mxu0 0.0
    %3074 = vmatpush1.msra.mxu0 0.0
    %3075 = vmatprep.subr.mxu0 0.0
    %3076 = vmatpush1.msra.mxu0 0.0
    %3077 = vmatprep.subr.mxu0 0.0
    %3078 = vmatpush1.msra.mxu0 0.0
    %3079 = vmatprep.subr.mxu0 0.0
    %3080 = vmatpush1.msra.mxu0 0.0
    %3081 = vmatprep.subr.mxu0 0.0
    %3082 = vmatpush1.msra.mxu0 0.0
    %3083 = vmatprep.subr.mxu0 0.0
    %3084 = vmatpush1.msra.mxu0 0.0
    %3085 = vmatprep.subr.mxu0 0.0
    %3086 = vmatpush1.msra.mxu0 0.0
    %3087 = vmatprep.subr.mxu0 0.0
    %3088 = vmatpush1.msra.mxu0 0.0
    %3089 = vmatprep.subr.mxu0 0.0
    %3090 = vmatpush1.msra.mxu0 0.0
    %3091 = vmatprep.subr.mxu0 0.0
    %3092 = vmatpush1.msra.mxu0 0.0
    %3093 = vmatprep.subr.mxu0 0.0
    %3094 = vmatpush1.msra.mxu0 0.0
    %3095 = vmatprep.mubr.f32.mxu0 0.0
    %3096 = vmatmul.mubr.f32.gmra.mrb[0].mxu0 %v571
    %v3097 = vpop.f32.mrb[0].mxu0
    %v3098 = vadd.f32 0.0, %v3097
    %v3099 = vpop.f32.mrb[0].mxu0
    %3100 = vmatprep.mubr.f32.mxu0 0.0
    %3101 = vmatmul.mubr.f32.gmra.mrb[0].mxu0 %v574
    %v3102 = vpop.f32.mrb[0].mxu0
    %v3103 = vadd.f32 0.0, %v3102
    %v3104 = vpop.f32.mrb[0].mxu0
    %3105 = vdwg.mxu0
    %v3106 = vadd.f32 %v2729, %v3021
    %v3107 = vadd.f32 %v2731, %v3023
    %v3108 = vadd.f32 %v2735, %v3027
    %v3109 = vadd.f32 %v2737, %v3029
    %v3110 = vld [vmem:[%s9] sm:$0xff]
    %v3111 = vld [vmem:[%s9 + $0x8] sm:$0xff]
    %v3112 = vld [vmem:[%s9 + $0x10] sm:$0xff]
    %v3113 = vld [vmem:[%s9 + $0x18] sm:$0xff]
    %v3114 = vld [vmem:[%s9 + $0x20] sm:$0xff]
    %v3115 = vld [vmem:[%s9 + $0x28] sm:$0xff]
    %v3116 = vld [vmem:[%s9 + $0x30] sm:$0xff]
    %v3117 = vld [vmem:[%s9 + $0x38] sm:$0xff]
    %3118 = vmatprep.subr.mxu0 %v3111
    %3119 = vmatpush1.msra.mxu0 %v3110
    %3120 = vmatprep.subr.mxu0 %v3113
    %3121 = vmatpush1.msra.mxu0 %v3112
    %3122 = vmatprep.subr.mxu0 %v3115
    %3123 = vmatpush1.msra.mxu0 %v3114
    %3124 = vmatprep.subr.mxu0 %v3117
    %3125 = vmatpush1.msra.mxu0 %v3116
    %3126 = vmatprep.subr.mxu0 0.0
    %3127 = vmatpush1.msra.mxu0 0.0
    %3128 = vmatprep.subr.mxu0 0.0
    %3129 = vmatpush1.msra.mxu0 0.0
    %3130 = vmatprep.subr.mxu0 0.0
    %3131 = vmatpush1.msra.mxu0 0.0
    %3132 = vmatprep.subr.mxu0 0.0
    %3133 = vmatpush1.msra.mxu0 0.0
    %3134 = vmatprep.subr.mxu0 0.0
    %3135 = vmatpush1.msra.mxu0 0.0
    %3136 = vmatprep.subr.mxu0 0.0
    %3137 = vmatpush1.msra.mxu0 0.0
    %3138 = vmatprep.subr.mxu0 0.0
    %3139 = vmatpush1.msra.mxu0 0.0
    %3140 = vmatprep.subr.mxu0 0.0
    %3141 = vmatpush1.msra.mxu0 0.0
    %3142 = vmatprep.subr.mxu0 0.0
    %3143 = vmatpush1.msra.mxu0 0.0
    %3144 = vmatprep.subr.mxu0 0.0
    %3145 = vmatpush1.msra.mxu0 0.0
    %3146 = vmatprep.subr.mxu0 0.0
    %3147 = vmatpush1.msra.mxu0 0.0
    %3148 = vmatprep.subr.mxu0 0.0
    %3149 = vmatpush1.msra.mxu0 0.0
    %3150 = vmatprep.subr.mxu0 0.0
    %3151 = vmatpush1.msra.mxu0 0.0
    %3152 = vmatprep.subr.mxu0 0.0
    %3153 = vmatpush1.msra.mxu0 0.0
    %3154 = vmatprep.subr.mxu0 0.0
    %3155 = vmatpush1.msra.mxu0 0.0
    %3156 = vmatprep.subr.mxu0 0.0
    %3157 = vmatpush1.msra.mxu0 0.0
    %3158 = vmatprep.subr.mxu0 0.0
    %3159 = vmatpush1.msra.mxu0 0.0
    %3160 = vmatprep.subr.mxu0 0.0
    %3161 = vmatpush1.msra.mxu0 0.0
    %3162 = vmatprep.subr.mxu0 0.0
    %3163 = vmatpush1.msra.mxu0 0.0
    %3164 = vmatprep.subr.mxu0 0.0
    %3165 = vmatpush1.msra.mxu0 0.0
    %3166 = vmatprep.subr.mxu0 0.0
    %3167 = vmatpush1.msra.mxu0 0.0
    %3168 = vmatprep.subr.mxu0 0.0
    %3169 = vmatpush1.msra.mxu0 0.0
    %3170 = vmatprep.subr.mxu0 0.0
    %3171 = vmatpush1.msra.mxu0 0.0
    %3172 = vmatprep.subr.mxu0 0.0
    %3173 = vmatpush1.msra.mxu0 0.0
    %3174 = vmatprep.subr.mxu0 0.0
    %3175 = vmatpush1.msra.mxu0 0.0
    %3176 = vmatprep.subr.mxu0 0.0
    %3177 = vmatpush1.msra.mxu0 0.0
    %3178 = vmatprep.subr.mxu0 0.0
    %3179 = vmatpush1.msra.mxu0 0.0
    %3180 = vmatprep.subr.mxu0 0.0
    %3181 = vmatpush1.msra.mxu0 0.0
    %3182 = vmatprep.mubr.f32.mxu0 0.0
    %3183 = vmatmul.mubr.f32.gmra.mrb[0].mxu0 %v2166
    %v3184 = vpop.f32.mrb[0].mxu0
    %v3185 = vadd.f32 0.0, %v3184
    %v3186 = vpop.f32.mrb[0].mxu0
    %v3187 = vadd.f32 0.0, %v3186
    %3188 = vmatprep.mubr.f32.mxu0 0.0
    %3189 = vmatmul.mubr.f32.gmra.mrb[0].mxu0 %v2169
    %v3190 = vpop.f32.mrb[0].mxu0
    %v3191 = vadd.f32 0.0, %v3190
    %v3192 = vpop.f32.mrb[0].mxu0
    %v3193 = vadd.f32 0.0, %v3192
    %3194 = vdwg.mxu0
    %v3195 = vadd.f32 %v3106, %v3185
    %v3196 = vadd.f32 %v3107, %v3187
    %v3197 = vadd.f32 %v3108, %v3191
    %v3198 = vadd.f32 %v3109, %v3193
    %v3199 = vmax.f32 %v3196, 0.0
    %v3200 = vmax.f32 %v3198, 0.0
    %vm3201 = vcmp.ne.f32.partialorder %v3196, %v3196
    %vm3202 = vcmp.ne.f32.partialorder %v3198, %v3198
    %v3203 = vadd.f32 %v3196, 0.0
    %v3204 = vadd.f32 %v3198, 0.0
    %v3205 = vand.u32 2147483647, %v3196
    %v3206 = vand.u32 2147483647, %v3198
    %v3207 = vsub.f32 0.0, %v3205
    %v3208 = vsub.f32 0.0, %v3206
    %v3209 = vmul.f32 %v3207, 1.442695
    %v3210 = vpow.pop %v3209
    %v3211 = vmul.f32 %v3208, 1.442695
    %v3212 = vpow.pop %v3211
    %v3213 = vadd.f32 %v3210, 1.0
    %v3214 = vlog2.pop %v3213
    %v3215 = vmul.f32 %v3214, 0.6931472
    %v3216 = vmul.f32 -0.5, %v3210
    %v3217 = vadd.f32 %v3216, 1.0
    %v3218 = vmul.f32 %v3217, %v3210
    %v3219 = vand.u32 2147483647, %v3210
    %vm3220 = vcmp.lt.f32.partialorder %v3219, 0.0004427343
    %v3221 = vsel %vm3220, %v3218, %v3215
    %v3222 = vadd.f32 %v3212, 1.0
    %v3223 = vlog2.pop %v3222
    %v3224 = vmul.f32 %v3223, 0.6931472
    %v3225 = vmul.f32 -0.5, %v3212
    %v3226 = vadd.f32 %v3225, 1.0
    %v3227 = vmul.f32 %v3226, %v3212
    %v3228 = vand.u32 2147483647, %v3212
    %vm3229 = vcmp.lt.f32.partialorder %v3228, 0.0004427343
    %v3230 = vsel %vm3229, %v3227, %v3224
    %v3231 = vadd.f32 %v3199, %v3221
    %v3232 = vadd.f32 %v3200, %v3230
    %v3233 = vsel %vm3201, %v3203, %v3231
    %v3234 = vsel %vm3202, %v3204, %v3232
    %v3235 = vmul.f32 %v3233, %v2553
    %v3236 = vmul.f32 %v3234, %v2554
    %v3237 = vadd.f32 %v3195, %v3235
    %v3238 = vadd.f32 %v3197, %v3236
    %v3239 = vsub.f32 %v3237, %v2652
    %v3240 = vsub.f32 %v3238, %v2658
    %v3241 = vrcp.pop %v2773
    %v3242 = vrcp.pop %v2774
    %v3243 = vmul.f32 %v3239, %v3241
    %v3244 = vmul.f32 %v3240, %v3242
    %v3245 = vld [vmem:[%s11] sm:$0xff]
    %v3246 = vld [vmem:[%s11 + $0x8] sm:$0xff]
    %v3247 = vld [vmem:[%s12] sm:$0x1]
    %v3249 = vlaneseq
    %v3250 = vshrl.u32 %v3249, 7
    %v3251 = vsub.s32 0, %v3250
    %v3252 = vrot.slane %v3247, %v3251
    %v3255 = vsel %vm199, %v3237, 0
    %v3258 = vsel %vm199, %v3238, 0
    %3260 = vmatprep.subr.mxu0 0.0
    %3261 = vmatpush1.msra.mxu0 %v3245
    %3262 = vmatprep.subr.mxu0 0.0
    %3263 = vmatpush1.msra.mxu0 %v3246
    %3264 = vmatprep.subr.mxu0 0.0
    %3265 = vmatpush1.msra.mxu0 0.0
    %3266 = vmatprep.subr.mxu0 0.0
    %3267 = vmatpush1.msra.mxu0 0.0
    %3268 = vmatprep.subr.mxu0 0.0
    %3269 = vmatpush1.msra.mxu0 0.0
    %3270 = vmatprep.subr.mxu0 0.0
    %3271 = vmatpush1.msra.mxu0 0.0
    %3272 = vmatprep.subr.mxu0 0.0
    %3273 = vmatpush1.msra.mxu0 0.0
    %3274 = vmatprep.subr.mxu0 0.0
    %3275 = vmatpush1.msra.mxu0 0.0
    %3276 = vmatprep.subr.mxu0 0.0
    %3277 = vmatpush1.msra.mxu0 0.0
    %3278 = vmatprep.subr.mxu0 0.0
    %3279 = vmatpush1.msra.mxu0 0.0
    %3280 = vmatprep.subr.mxu0 0.0
    %3281 = vmatpush1.msra.mxu0 0.0
    %3282 = vmatprep.subr.mxu0 0.0
    %3283 = vmatpush1.msra.mxu0 0.0
    %3284 = vmatprep.subr.mxu0 0.0
    %3285 = vmatpush1.msra.mxu0 0.0
    %3286 = vmatprep.subr.mxu0 0.0
    %3287 = vmatpush1.msra.mxu0 0.0
    %3288 = vmatprep.subr.mxu0 0.0
    %3289 = vmatpush1.msra.mxu0 0.0
    %3290 = vmatprep.subr.mxu0 0.0
    %3291 = vmatpush1.msra.mxu0 0.0
    %3292 = vmatprep.subr.mxu0 0.0
    %3293 = vmatpush1.msra.mxu0 0.0
    %3294 = vmatprep.subr.mxu0 0.0
    %3295 = vmatpush1.msra.mxu0 0.0
    %3296 = vmatprep.subr.mxu0 0.0
    %3297 = vmatpush1.msra.mxu0 0.0
    %3298 = vmatprep.subr.mxu0 0.0
    %3299 = vmatpush1.msra.mxu0 0.0
    %3300 = vmatprep.subr.mxu0 0.0
    %3301 = vmatpush1.msra.mxu0 0.0
    %3302 = vmatprep.subr.mxu0 0.0
    %3303 = vmatpush1.msra.mxu0 0.0
    %3304 = vmatprep.subr.mxu0 0.0
    %3305 = vmatpush1.msra.mxu0 0.0
    %3306 = vmatprep.subr.mxu0 0.0
    %3307 = vmatpush1.msra.mxu0 0.0
    %3308 = vmatprep.subr.mxu0 0.0
    %3309 = vmatpush1.msra.mxu0 0.0
    %3310 = vmatprep.subr.mxu0 0.0
    %3311 = vmatpush1.msra.mxu0 0.0
    %3312 = vmatprep.subr.mxu0 0.0
    %3313 = vmatpush1.msra.mxu0 0.0
    %3314 = vmatprep.subr.mxu0 0.0
    %3315 = vmatpush1.msra.mxu0 0.0
    %3316 = vmatprep.subr.mxu0 0.0
    %3317 = vmatpush1.msra.mxu0 0.0
    %3318 = vmatprep.subr.mxu0 0.0
    %3319 = vmatpush1.msra.mxu0 0.0
    %3320 = vmatprep.subr.mxu0 0.0
    %3321 = vmatpush1.msra.mxu0 0.0
    %3322 = vmatprep.subr.mxu0 0.0
    %3323 = vmatpush1.msra.mxu0 0.0
    %3324 = vmatprep.mubr.f32.mxu0 0.0
    %3325 = vmatmul.mubr.f32.gmra.mrb[0].mxu0 %v3255
    %v3326 = vpop.f32.mrb[0].mxu0
    %v3327 = vadd.f32 %v3252, %v3326
    %v3328 = vpop.f32.mrb[0].mxu0
    %3329 = vmatprep.mubr.f32.mxu0 0.0
    %3330 = vmatmul.mubr.f32.gmra.mrb[0].mxu0 %v3258
    %v3331 = vpop.f32.mrb[0].mxu0
    %v3332 = vadd.f32 %v3252, %v3331
    %v3333 = vpop.f32.mrb[0].mxu0
    %3334 = vdwg.mxu0
    %v3335 = vmax.f32 %v3327, 0.0
    %v3336 = vmax.f32 %v3332, 0.0
    %v3337 = vld [vmem:[%s13] sm:$0xff]
    %v3338 = vld [vmem:[%s13 + $0x8] sm:$0xff]
    %v3339 = vld [vmem:[%s13 + $0x10] sm:$0xff]
    %v3340 = vld [vmem:[%s13 + $0x18] sm:$0xff]
    %v3341 = vld [vmem:[%s14] sm:$0x1]
    %v3343 = vlaneseq
    %v3344 = vshrl.u32 %v3343, 7
    %v3345 = vsub.s32 0, %v3344
    %v3346 = vrot.slane %v3341, %v3345
    %v3349 = vsel %vm494, %v3335, 0
    %v3352 = vsel %vm494, %v3336, 0
    %3354 = vmatprep.subr.mxu0 0.0
    %3355 = vmatpush1.msra.mxu0 %v3337
    %3356 = vmatprep.subr.mxu0 0.0
    %3357 = vmatpush1.msra.mxu0 %v3338
    %3358 = vmatprep.subr.mxu0 0.0
    %3359 = vmatpush1.msra.mxu0 %v3339
    %3360 = vmatprep.subr.mxu0 0.0
    %3361 = vmatpush1.msra.mxu0 %v3340
    %3362 = vmatprep.subr.mxu0 0.0
    %3363 = vmatpush1.msra.mxu0 0.0
    %3364 = vmatprep.subr.mxu0 0.0
    %3365 = vmatpush1.msra.mxu0 0.0
    %3366 = vmatprep.subr.mxu0 0.0
    %3367 = vmatpush1.msra.mxu0 0.0
    %3368 = vmatprep.subr.mxu0 0.0
    %3369 = vmatpush1.msra.mxu0 0.0
    %3370 = vmatprep.subr.mxu0 0.0
    %3371 = vmatpush1.msra.mxu0 0.0
    %3372 = vmatprep.subr.mxu0 0.0
    %3373 = vmatpush1.msra.mxu0 0.0
    %3374 = vmatprep.subr.mxu0 0.0
    %3375 = vmatpush1.msra.mxu0 0.0
    %3376 = vmatprep.subr.mxu0 0.0
    %3377 = vmatpush1.msra.mxu0 0.0
    %3378 = vmatprep.subr.mxu0 0.0
    %3379 = vmatpush1.msra.mxu0 0.0
    %3380 = vmatprep.subr.mxu0 0.0
    %3381 = vmatpush1.msra.mxu0 0.0
    %3382 = vmatprep.subr.mxu0 0.0
    %3383 = vmatpush1.msra.mxu0 0.0
    %3384 = vmatprep.subr.mxu0 0.0
    %3385 = vmatpush1.msra.mxu0 0.0
    %3386 = vmatprep.subr.mxu0 0.0
    %3387 = vmatpush1.msra.mxu0 0.0
    %3388 = vmatprep.subr.mxu0 0.0
    %3389 = vmatpush1.msra.mxu0 0.0
    %3390 = vmatprep.subr.mxu0 0.0
    %3391 = vmatpush1.msra.mxu0 0.0
    %3392 = vmatprep.subr.mxu0 0.0
    %3393 = vmatpush1.msra.mxu0 0.0
    %3394 = vmatprep.subr.mxu0 0.0
    %3395 = vmatpush1.msra.mxu0 0.0
    %3396 = vmatprep.subr.mxu0 0.0
    %3397 = vmatpush1.msra.mxu0 0.0
    %3398 = vmatprep.subr.mxu0 0.0
    %3399 = vmatpush1.msra.mxu0 0.0
    %3400 = vmatprep.subr.mxu0 0.0
    %3401 = vmatpush1.msra.mxu0 0.0
    %3402 = vmatprep.subr.mxu0 0.0
    %3403 = vmatpush1.msra.mxu0 0.0
    %3404 = vmatprep.subr.mxu0 0.0
    %3405 = vmatpush1.msra.mxu0 0.0
    %3406 = vmatprep.subr.mxu0 0.0
    %3407 = vmatpush1.msra.mxu0 0.0
    %3408 = vmatprep.subr.mxu0 0.0
    %3409 = vmatpush1.msra.mxu0 0.0
    %3410 = vmatprep.subr.mxu0 0.0
    %3411 = vmatpush1.msra.mxu0 0.0
    %3412 = vmatprep.subr.mxu0 0.0
    %3413 = vmatpush1.msra.mxu0 0.0
    %3414 = vmatprep.subr.mxu0 0.0
    %3415 = vmatpush1.msra.mxu0 0.0
    %3416 = vmatprep.subr.mxu0 0.0
    %3417 = vmatpush1.msra.mxu0 0.0
    %3418 = vmatprep.mubr.f32.mxu0 0.0
    %3419 = vmatmul.mubr.f32.gmra.mrb[0].mxu0 %v3349
    %v3420 = vpop.f32.mrb[0].mxu0
    %v3421 = vadd.f32 %v3346, %v3420
    %v3422 = vpop.f32.mrb[0].mxu0
    %3423 = vmatprep.mubr.f32.mxu0 0.0
    %3424 = vmatmul.mubr.f32.gmra.mrb[0].mxu0 %v3352
    %v3425 = vpop.f32.mrb[0].mxu0
    %v3426 = vadd.f32 %v3346, %v3425
    %v3427 = vpop.f32.mrb[0].mxu0
    %3428 = vdwg.mxu0
    %v3429 = vsub.f32 %v3098, %v3421
    %v3430 = vsub.f32 %v3103, %v3426
    %v3431 = vld [vmem:[%s15] sm:$0x1]
    %v3433 = vlaneseq
    %v3434 = vshrl.u32 %v3433, 7
    %v3435 = vsub.s32 0, %v3434
    %v3436 = vrot.slane %v3431, %v3435
    %v3438 = vmul.f32 %v3429, %v3436
    %v3439 = vmul.f32 %v3430, %v3436
    %v3440 = vmul.f32 %v3243, -0.5
    %v3441 = vmul.f32 %v3244, -0.5
    %v3442 = vmul.f32 %v3440, %v3243
    %v3443 = vmul.f32 %v3441, %v3244
    %v3444 = vlog2.pop %v2773
    %v3445 = vmul.f32 %v3444, 0.6931472
    %v3446 = vlog2.pop %v2774
    %v3447 = vmul.f32 %v3446, 0.6931472
    %v3448 = vsub.f32 %v3442, %v3445
    %v3449 = vsub.f32 %v3443, %v3447
    %v3450 = vmul.f32 %v2553, 0.5
    %v3451 = vmul.f32 %v2554, 0.5
    %v3452 = vmul.f32 %v3450, %v2553
    %v3453 = vmul.f32 %v3451, %v2554
    %v3454 = vlog2.pop %v3233
    %v3455 = vmul.f32 %v3454, 0.6931472
    %v3456 = vlog2.pop %v3234
    %v3457 = vmul.f32 %v3456, 0.6931472
    %v3458 = vadd.f32 %v3452, %v3455
    %v3459 = vadd.f32 %v3453, %v3457
    %v3460 = vld [vmem:[%s16] sm:$0xff]
    %v3461 = vld [vmem:[%s16 + $0x8] sm:$0xff]
    %v3463 = vsel %vm199, %v3458, 0
    %v3466 = vsel %vm199, %v3459, 0
    %3468 = vmatprep.subr.mxu0 0.0
    %3469 = vmatpush1.msra.mxu0 1.0
    %3470 = vmatprep.subr.mxu0 0.0
    %3471 = vmatpush1.msra.mxu0 1.0
    %3472 = vmatprep.subr.mxu0 0.0
    %3473 = vmatpush1.msra.mxu0 0.0
    %3474 = vmatprep.subr.mxu0 0.0
    %3475 = vmatpush1.msra.mxu0 0.0
    %3476 = vmatprep.subr.mxu0 0.0
    %3477 = vmatpush1.msra.mxu0 0.0
    %3478 = vmatprep.subr.mxu0 0.0
    %3479 = vmatpush1.msra.mxu0 0.0
    %3480 = vmatprep.subr.mxu0 0.0
    %3481 = vmatpush1.msra.mxu0 0.0
    %3482 = vmatprep.subr.mxu0 0.0
    %3483 = vmatpush1.msra.mxu0 0.0
    %3484 = vmatprep.subr.mxu0 0.0
    %3485 = vmatpush1.msra.mxu0 0.0
    %3486 = vmatprep.subr.mxu0 0.0
    %3487 = vmatpush1.msra.mxu0 0.0
    %3488 = vmatprep.subr.mxu0 0.0
    %3489 = vmatpush1.msra.mxu0 0.0
    %3490 = vmatprep.subr.mxu0 0.0
    %3491 = vmatpush1.msra.mxu0 0.0
    %3492 = vmatprep.subr.mxu0 0.0
    %3493 = vmatpush1.msra.mxu0 0.0
    %3494 = vmatprep.subr.mxu0 0.0
    %3495 = vmatpush1.msra.mxu0 0.0
    %3496 = vmatprep.subr.mxu0 0.0
    %3497 = vmatpush1.msra.mxu0 0.0
    %3498 = vmatprep.subr.mxu0 0.0
    %3499 = vmatpush1.msra.mxu0 0.0
    %3500 = vmatprep.subr.mxu0 0.0
    %3501 = vmatpush1.msra.mxu0 0.0
    %3502 = vmatprep.subr.mxu0 0.0
    %3503 = vmatpush1.msra.mxu0 0.0
    %3504 = vmatprep.subr.mxu0 0.0
    %3505 = vmatpush1.msra.mxu0 0.0
    %3506 = vmatprep.subr.mxu0 0.0
    %3507 = vmatpush1.msra.mxu0 0.0
    %3508 = vmatprep.subr.mxu0 0.0
    %3509 = vmatpush1.msra.mxu0 0.0
    %3510 = vmatprep.subr.mxu0 0.0
    %3511 = vmatpush1.msra.mxu0 0.0
    %3512 = vmatprep.subr.mxu0 0.0
    %3513 = vmatpush1.msra.mxu0 0.0
    %3514 = vmatprep.subr.mxu0 0.0
    %3515 = vmatpush1.msra.mxu0 0.0
    %3516 = vmatprep.subr.mxu0 0.0
    %3517 = vmatpush1.msra.mxu0 0.0
    %3518 = vmatprep.subr.mxu0 0.0
    %3519 = vmatpush1.msra.mxu0 0.0
    %3520 = vmatprep.subr.mxu0 0.0
    %3521 = vmatpush1.msra.mxu0 0.0
    %3522 = vmatprep.subr.mxu0 0.0
    %3523 = vmatpush1.msra.mxu0 0.0
    %3524 = vmatprep.subr.mxu0 0.0
    %3525 = vmatpush1.msra.mxu0 0.0
    %3526 = vmatprep.subr.mxu0 0.0
    %3527 = vmatpush1.msra.mxu0 0.0
    %3528 = vmatprep.subr.mxu0 0.0
    %3529 = vmatpush1.msra.mxu0 0.0
    %3530 = vmatprep.subr.mxu0 0.0
    %3531 = vmatpush1.msra.mxu0 0.0
    %3532 = vmatprep.mubr.f32.mxu0 0.0
    %3533 = vmatmul.mubr.f32.gmra.mrb[0].mxu0 %v3463
    %v3534 = vpop.f32.mrb[0].mxu0
    %v3535 = vadd.f32 0.0, %v3534
    %v3536 = vpop.f32.mrb[0].mxu0
    %3537 = vmatprep.mubr.f32.mxu0 0.0
    %3538 = vmatmul.mubr.f32.gmra.mrb[0].mxu0 %v3466
    %v3539 = vpop.f32.mrb[0].mxu0
    %v3540 = vadd.f32 0.0, %v3539
    %v3541 = vpop.f32.mrb[0].mxu0
    %3542 = vdwg.mxu0
    %v3544 = vsel %vm199, %v3448, 0
    %v3547 = vsel %vm199, %v3449, 0
    %3549 = vmatprep.subr.mxu0 0.0
    %3550 = vmatpush1.msra.mxu0 %v3460
    %3551 = vmatprep.subr.mxu0 0.0
    %3552 = vmatpush1.msra.mxu0 %v3461
    %3553 = vmatprep.subr.mxu0 0.0
    %3554 = vmatpush1.msra.mxu0 0.0
    %3555 = vmatprep.subr.mxu0 0.0
    %3556 = vmatpush1.msra.mxu0 0.0
    %3557 = vmatprep.subr.mxu0 0.0
    %3558 = vmatpush1.msra.mxu0 0.0
    %3559 = vmatprep.subr.mxu0 0.0
    %3560 = vmatpush1.msra.mxu0 0.0
    %3561 = vmatprep.subr.mxu0 0.0
    %3562 = vmatpush1.msra.mxu0 0.0
    %3563 = vmatprep.subr.mxu0 0.0
    %3564 = vmatpush1.msra.mxu0 0.0
    %3565 = vmatprep.subr.mxu0 0.0
    %3566 = vmatpush1.msra.mxu0 0.0
    %3567 = vmatprep.subr.mxu0 0.0
    %3568 = vmatpush1.msra.mxu0 0.0
    %3569 = vmatprep.subr.mxu0 0.0
    %3570 = vmatpush1.msra.mxu0 0.0
    %3571 = vmatprep.subr.mxu0 0.0
    %3572 = vmatpush1.msra.mxu0 0.0
    %3573 = vmatprep.subr.mxu0 0.0
    %3574 = vmatpush1.msra.mxu0 0.0
    %3575 = vmatprep.subr.mxu0 0.0
    %3576 = vmatpush1.msra.mxu0 0.0
    %3577 = vmatprep.subr.mxu0 0.0
    %3578 = vmatpush1.msra.mxu0 0.0
    %3579 = vmatprep.subr.mxu0 0.0
    %3580 = vmatpush1.msra.mxu0 0.0
    %3581 = vmatprep.subr.mxu0 0.0
    %3582 = vmatpush1.msra.mxu0 0.0
    %3583 = vmatprep.subr.mxu0 0.0
    %3584 = vmatpush1.msra.mxu0 0.0
    %3585 = vmatprep.subr.mxu0 0.0
    %3586 = vmatpush1.msra.mxu0 0.0
    %3587 = vmatprep.subr.mxu0 0.0
    %3588 = vmatpush1.msra.mxu0 0.0
    %3589 = vmatprep.subr.mxu0 0.0
    %3590 = vmatpush1.msra.mxu0 0.0
    %3591 = vmatprep.subr.mxu0 0.0
    %3592 = vmatpush1.msra.mxu0 0.0
    %3593 = vmatprep.subr.mxu0 0.0
    %3594 = vmatpush1.msra.mxu0 0.0
    %3595 = vmatprep.subr.mxu0 0.0
    %3596 = vmatpush1.msra.mxu0 0.0
    %3597 = vmatprep.subr.mxu0 0.0
    %3598 = vmatpush1.msra.mxu0 0.0
    %3599 = vmatprep.subr.mxu0 0.0
    %3600 = vmatpush1.msra.mxu0 0.0
    %3601 = vmatprep.subr.mxu0 0.0
    %3602 = vmatpush1.msra.mxu0 0.0
    %3603 = vmatprep.subr.mxu0 0.0
    %3604 = vmatpush1.msra.mxu0 0.0
    %3605 = vmatprep.subr.mxu0 0.0
    %3606 = vmatpush1.msra.mxu0 0.0
    %3607 = vmatprep.subr.mxu0 0.0
    %3608 = vmatpush1.msra.mxu0 0.0
    %3609 = vmatprep.subr.mxu0 0.0
    %3610 = vmatpush1.msra.mxu0 0.0
    %3611 = vmatprep.subr.mxu0 0.0
    %3612 = vmatpush1.msra.mxu0 0.0
    %3613 = vmatprep.mubr.f32.mxu0 0.0
    %3614 = vmatmul.mubr.f32.gmra.mrb[0].mxu0 %v3544
    %v3615 = vpop.f32.mrb[0].mxu0
    %v3616 = vadd.f32 %v3535, %v3615
    %v3617 = vpop.f32.mrb[0].mxu0
    %3618 = vmatprep.mubr.f32.mxu0 0.0
    %3619 = vmatmul.mubr.f32.gmra.mrb[0].mxu0 %v3547
    %v3620 = vpop.f32.mrb[0].mxu0
    %v3621 = vadd.f32 %v3540, %v3620
    %v3622 = vpop.f32.mrb[0].mxu0
    %3623 = vdwg.mxu0
    %v3624 = vmul.f32 %v3438, %v3438
    %v3625 = vmul.f32 %v3439, %v3439
    %v3626 = vld [vmem:[%s17] sm:$0xff]
    %v3627 = vld [vmem:[%s17 + $0x8] sm:$0xff]
    %v3628 = vld [vmem:[%s17 + $0x10] sm:$0xff]
    %v3629 = vld [vmem:[%s17 + $0x18] sm:$0xff]
    %v3630 = vld [vmem:[%s17 + $0x20] sm:$0xff]
    %v3631 = vld [vmem:[%s17 + $0x28] sm:$0xff]
    %v3632 = vld [vmem:[%s17 + $0x30] sm:$0xff]
    %v3633 = vld [vmem:[%s17 + $0x38] sm:$0xff]
    %v3635 = vsel %vm411, %v3624, 0
    %v3638 = vsel %vm411, %v3625, 0
    %3640 = vmatprep.subr.mxu0 0.0
    %3641 = vmatpush1.msra.mxu0 %v3626
    %3642 = vmatprep.subr.mxu0 0.0
    %3643 = vmatpush1.msra.mxu0 %v3627
    %3644 = vmatprep.subr.mxu0 0.0
    %3645 = vmatpush1.msra.mxu0 %v3628
    %3646 = vmatprep.subr.mxu0 0.0
    %3647 = vmatpush1.msra.mxu0 %v3629
    %3648 = vmatprep.subr.mxu0 0.0
    %3649 = vmatpush1.msra.mxu0 %v3630
    %3650 = vmatprep.subr.mxu0 0.0
    %3651 = vmatpush1.msra.mxu0 %v3631
    %3652 = vmatprep.subr.mxu0 0.0
    %3653 = vmatpush1.msra.mxu0 %v3632
    %3654 = vmatprep.subr.mxu0 0.0
    %3655 = vmatpush1.msra.mxu0 %v3633
    %3656 = vmatprep.subr.mxu0 0.0
    %3657 = vmatpush1.msra.mxu0 0.0
    %3658 = vmatprep.subr.mxu0 0.0
    %3659 = vmatpush1.msra.mxu0 0.0
    %3660 = vmatprep.subr.mxu0 0.0
    %3661 = vmatpush1.msra.mxu0 0.0
    %3662 = vmatprep.subr.mxu0 0.0
    %3663 = vmatpush1.msra.mxu0 0.0
    %3664 = vmatprep.subr.mxu0 0.0
    %3665 = vmatpush1.msra.mxu0 0.0
    %3666 = vmatprep.subr.mxu0 0.0
    %3667 = vmatpush1.msra.mxu0 0.0
    %3668 = vmatprep.subr.mxu0 0.0
    %3669 = vmatpush1.msra.mxu0 0.0
    %3670 = vmatprep.subr.mxu0 0.0
    %3671 = vmatpush1.msra.mxu0 0.0
    %3672 = vmatprep.subr.mxu0 0.0
    %3673 = vmatpush1.msra.mxu0 0.0
    %3674 = vmatprep.subr.mxu0 0.0
    %3675 = vmatpush1.msra.mxu0 0.0
    %3676 = vmatprep.subr.mxu0 0.0
    %3677 = vmatpush1.msra.mxu0 0.0
    %3678 = vmatprep.subr.mxu0 0.0
    %3679 = vmatpush1.msra.mxu0 0.0
    %3680 = vmatprep.subr.mxu0 0.0
    %3681 = vmatpush1.msra.mxu0 0.0
    %3682 = vmatprep.subr.mxu0 0.0
    %3683 = vmatpush1.msra.mxu0 0.0
    %3684 = vmatprep.subr.mxu0 0.0
    %3685 = vmatpush1.msra.mxu0 0.0
    %3686 = vmatprep.subr.mxu0 0.0
    %3687 = vmatpush1.msra.mxu0 0.0
    %3688 = vmatprep.subr.mxu0 0.0
    %3689 = vmatpush1.msra.mxu0 0.0
    %3690 = vmatprep.subr.mxu0 0.0
    %3691 = vmatpush1.msra.mxu0 0.0
    %3692 = vmatprep.subr.mxu0 0.0
    %3693 = vmatpush1.msra.mxu0 0.0
    %3694 = vmatprep.subr.mxu0 0.0
    %3695 = vmatpush1.msra.mxu0 0.0
    %3696 = vmatprep.subr.mxu0 0.0
    %3697 = vmatpush1.msra.mxu0 0.0
    %3698 = vmatprep.subr.mxu0 0.0
    %3699 = vmatpush1.msra.mxu0 0.0
    %3700 = vmatprep.subr.mxu0 0.0
    %3701 = vmatpush1.msra.mxu0 0.0
    %3702 = vmatprep.subr.mxu0 0.0
    %3703 = vmatpush1.msra.mxu0 0.0
    %3704 = vmatprep.mubr.f32.mxu0 0.0
    %3705 = vmatmul.mubr.f32.gmra.mrb[0].mxu0 %v3635
    %v3706 = vpop.f32.mrb[0].mxu0
    %v3707 = vadd.f32 0.0, %v3706
    %v3708 = vpop.f32.mrb[0].mxu0
    %3709 = vmatprep.mubr.f32.mxu0 0.0
    %3710 = vmatmul.mubr.f32.gmra.mrb[0].mxu0 %v3638
    %v3711 = vpop.f32.mrb[0].mxu0
    %v3712 = vadd.f32 0.0, %v3711
    %v3713 = vpop.f32.mrb[0].mxu0
    %3714 = vdwg.mxu0
    %v3715 = vadd.f32 %v3616, %v3707
    %v3716 = vadd.f32 %v3621, %v3712
    %v3717 = vadd.f32 %v3715, %v1358
    %v3718 = vadd.f32 %v3716, %v1358
    %3721 = vrot.lane.b32.xlu0 %v3717, 2
    %v3722 = vpop.permute.xlu0 %3721
    %3723 = vrot.lane.b32.xlu0 %v3718, 2
    %v3724 = vpop.permute.xlu0 %3723
    %vm3727 = vcmask 23568
    %3728 = vst.msk [vmem:[%s19] sm:$0xff] %vm3727, %v3722
    %3729 = vst.msk [vmem:[%s19 + $0x8] sm:$0xff] %vm3727, %v3724
    %s3730 = scalar_lea.vmem [#allocation16], 32
    %3731 = vst.msk [vmem:[%s3730] sm:$0xff] %vm199, %v3237
    %3732 = vst.msk [vmem:[%s3730 + $0x8] sm:$0xff] %vm199, %v3238
    %s3733 = scalar_lea.vmem [#allocation5], 6
    %v3734 = vld [vmem:[%s3733] sm:$0x3]
    %s3735 = scalar_lea.vmem %s1, 48
    %v3736 = vld [vmem:[%s3735] sm:$0xff]
    %v3737 = vld [vmem:[%s3735 + $0x8] sm:$0xff]
    %v3738 = vld [vmem:[%s7] sm:$0xff]
    %v3739 = vld [vmem:[%s7 + $0x8] sm:$0xff]
    %v3740 = vld [vmem:[%s7 + $0x10] sm:$0xff]
    %v3741 = vld [vmem:[%s7 + $0x18] sm:$0xff]
    %v3742 = vld [vmem:[%s7 + $0x20] sm:$0xff]
    %v3743 = vld [vmem:[%s7 + $0x28] sm:$0xff]
    %v3744 = vld [vmem:[%s7 + $0x30] sm:$0xff]
    %v3745 = vld [vmem:[%s7 + $0x38] sm:$0xff]
    %v3746 = vld [vmem:[#allocation13] sm:$0xf]
    %v3748 = vlaneseq
    %v3749 = vshrl.u32 %v3748, 7
    %v3750 = vsub.s32 0, %v3749
    %v3751 = vrot.slane %v3746, %v3750
    %v3752 = vlaneseq
    %v3753 = vshrl.u32 %v3752, 7
    %v3754 = vsub.s32 1, %v3753
    %v3755 = vrot.slane %v3746, %v3754
    %v3756 = vlaneseq
    %v3757 = vshrl.u32 %v3756, 7
    %v3758 = vsub.s32 2, %v3757
    %v3759 = vrot.slane %v3746, %v3758
    %v3760 = vlaneseq
    %v3761 = vshrl.u32 %v3760, 7
    %v3762 = vsub.s32 3, %v3761
    %v3763 = vrot.slane %v3746, %v3762
    %3768 = vmatprep.subr.mxu0 %v3739
    %3769 = vmatpush1.msra.mxu0 %v3738
    %3770 = vmatprep.subr.mxu0 %v3743
    %3771 = vmatpush1.msra.mxu0 %v3742
    %3772 = vmatprep.subr.mxu0 0.0
    %3773 = vmatpush1.msra.mxu0 0.0
    %3774 = vmatprep.subr.mxu0 0.0
    %3775 = vmatpush1.msra.mxu0 0.0
    %3776 = vmatprep.subr.mxu0 0.0
    %3777 = vmatpush1.msra.mxu0 0.0
    %3778 = vmatprep.subr.mxu0 0.0
    %3779 = vmatpush1.msra.mxu0 0.0
    %3780 = vmatprep.subr.mxu0 0.0
    %3781 = vmatpush1.msra.mxu0 0.0
    %3782 = vmatprep.subr.mxu0 0.0
    %3783 = vmatpush1.msra.mxu0 0.0
    %3784 = vmatprep.subr.mxu0 0.0
    %3785 = vmatpush1.msra.mxu0 0.0
    %3786 = vmatprep.subr.mxu0 0.0
    %3787 = vmatpush1.msra.mxu0 0.0
    %3788 = vmatprep.subr.mxu0 0.0
    %3789 = vmatpush1.msra.mxu0 0.0
    %3790 = vmatprep.subr.mxu0 0.0
    %3791 = vmatpush1.msra.mxu0 0.0
    %3792 = vmatprep.subr.mxu0 0.0
    %3793 = vmatpush1.msra.mxu0 0.0
    %3794 = vmatprep.subr.mxu0 0.0
    %3795 = vmatpush1.msra.mxu0 0.0
    %3796 = vmatprep.subr.mxu0 0.0
    %3797 = vmatpush1.msra.mxu0 0.0
    %3798 = vmatprep.subr.mxu0 0.0
    %3799 = vmatpush1.msra.mxu0 0.0
    %3800 = vmatprep.subr.mxu0 0.0
    %3801 = vmatpush1.msra.mxu0 0.0
    %3802 = vmatprep.subr.mxu0 0.0
    %3803 = vmatpush1.msra.mxu0 0.0
    %3804 = vmatprep.subr.mxu0 0.0
    %3805 = vmatpush1.msra.mxu0 0.0
    %3806 = vmatprep.subr.mxu0 0.0
    %3807 = vmatpush1.msra.mxu0 0.0
    %3808 = vmatprep.subr.mxu0 0.0
    %3809 = vmatpush1.msra.mxu0 0.0
    %3810 = vmatprep.subr.mxu0 0.0
    %3811 = vmatpush1.msra.mxu0 0.0
    %3812 = vmatprep.subr.mxu0 0.0
    %3813 = vmatpush1.msra.mxu0 0.0
    %3814 = vmatprep.subr.mxu0 0.0
    %3815 = vmatpush1.msra.mxu0 0.0
    %3816 = vmatprep.subr.mxu0 0.0
    %3817 = vmatpush1.msra.mxu0 0.0
    %3818 = vmatprep.subr.mxu0 0.0
    %3819 = vmatpush1.msra.mxu0 0.0
    %3820 = vmatprep.subr.mxu0 0.0
    %3821 = vmatpush1.msra.mxu0 0.0
    %3822 = vmatprep.subr.mxu0 0.0
    %3823 = vmatpush1.msra.mxu0 0.0
    %3824 = vmatprep.subr.mxu0 0.0
    %3825 = vmatpush1.msra.mxu0 0.0
    %3826 = vmatprep.subr.mxu0 0.0
    %3827 = vmatpush1.msra.mxu0 0.0
    %3828 = vmatprep.subr.mxu0 0.0
    %3829 = vmatpush1.msra.mxu0 0.0
    %3830 = vmatprep.subr.mxu0 0.0
    %3831 = vmatpush1.msra.mxu0 0.0
    %3832 = vmatprep.mubr.f32.mxu0 0.0
    %3833 = vmatmul.mubr.f32.gmra.mrb[0].mxu0 %v3255
    %v3834 = vpop.f32.mrb[0].mxu0
    %v3835 = vadd.f32 %v3751, %v3834
    %v3836 = vpop.f32.mrb[0].mxu0
    %v3837 = vadd.f32 %v3755, %v3836
    %3838 = vmatprep.mubr.f32.mxu0 0.0
    %3839 = vmatmul.mubr.f32.gmra.mrb[0].mxu0 %v3258
    %v3840 = vpop.f32.mrb[0].mxu0
    %v3841 = vadd.f32 %v3751, %v3840
    %v3842 = vpop.f32.mrb[0].mxu0
    %v3843 = vadd.f32 %v3755, %v3842
    %3844 = vdwg.mxu0
    %3845 = vmatprep.subr.mxu0 %v3741
    %3846 = vmatpush1.msra.mxu0 %v3740
    %3847 = vmatprep.subr.mxu0 %v3745
    %3848 = vmatpush1.msra.mxu0 %v3744
    %3849 = vmatprep.subr.mxu0 0.0
    %3850 = vmatpush1.msra.mxu0 0.0
    %3851 = vmatprep.subr.mxu0 0.0
    %3852 = vmatpush1.msra.mxu0 0.0
    %3853 = vmatprep.subr.mxu0 0.0
    %3854 = vmatpush1.msra.mxu0 0.0
    %3855 = vmatprep.subr.mxu0 0.0
    %3856 = vmatpush1.msra.mxu0 0.0
    %3857 = vmatprep.subr.mxu0 0.0
    %3858 = vmatpush1.msra.mxu0 0.0
    %3859 = vmatprep.subr.mxu0 0.0
    %3860 = vmatpush1.msra.mxu0 0.0
    %3861 = vmatprep.subr.mxu0 0.0
    %3862 = vmatpush1.msra.mxu0 0.0
    %3863 = vmatprep.subr.mxu0 0.0
    %3864 = vmatpush1.msra.mxu0 0.0
    %3865 = vmatprep.subr.mxu0 0.0
    %3866 = vmatpush1.msra.mxu0 0.0
    %3867 = vmatprep.subr.mxu0 0.0
    %3868 = vmatpush1.msra.mxu0 0.0
    %3869 = vmatprep.subr.mxu0 0.0
    %3870 = vmatpush1.msra.mxu0 0.0
    %3871 = vmatprep.subr.mxu0 0.0
    %3872 = vmatpush1.msra.mxu0 0.0
    %3873 = vmatprep.subr.mxu0 0.0
    %3874 = vmatpush1.msra.mxu0 0.0
    %3875 = vmatprep.subr.mxu0 0.0
    %3876 = vmatpush1.msra.mxu0 0.0
    %3877 = vmatprep.subr.mxu0 0.0
    %3878 = vmatpush1.msra.mxu0 0.0
    %3879 = vmatprep.subr.mxu0 0.0
    %3880 = vmatpush1.msra.mxu0 0.0
    %3881 = vmatprep.subr.mxu0 0.0
    %3882 = vmatpush1.msra.mxu0 0.0
    %3883 = vmatprep.subr.mxu0 0.0
    %3884 = vmatpush1.msra.mxu0 0.0
    %3885 = vmatprep.subr.mxu0 0.0
    %3886 = vmatpush1.msra.mxu0 0.0
    %3887 = vmatprep.subr.mxu0 0.0
    %3888 = vmatpush1.msra.mxu0 0.0
    %3889 = vmatprep.subr.mxu0 0.0
    %3890 = vmatpush1.msra.mxu0 0.0
    %3891 = vmatprep.subr.mxu0 0.0
    %3892 = vmatpush1.msra.mxu0 0.0
    %3893 = vmatprep.subr.mxu0 0.0
    %3894 = vmatpush1.msra.mxu0 0.0
    %3895 = vmatprep.subr.mxu0 0.0
    %3896 = vmatpush1.msra.mxu0 0.0
    %3897 = vmatprep.subr.mxu0 0.0
    %3898 = vmatpush1.msra.mxu0 0.0
    %3899 = vmatprep.subr.mxu0 0.0
    %3900 = vmatpush1.msra.mxu0 0.0
    %3901 = vmatprep.subr.mxu0 0.0
    %3902 = vmatpush1.msra.mxu0 0.0
    %3903 = vmatprep.subr.mxu0 0.0
    %3904 = vmatpush1.msra.mxu0 0.0
    %3905 = vmatprep.subr.mxu0 0.0
    %3906 = vmatpush1.msra.mxu0 0.0
    %3907 = vmatprep.subr.mxu0 0.0
    %3908 = vmatpush1.msra.mxu0 0.0
    %3909 = vmatprep.mubr.f32.mxu0 0.0
    %3910 = vmatmul.mubr.f32.gmra.mrb[0].mxu0 %v3255
    %v3911 = vpop.f32.mrb[0].mxu0
    %v3912 = vadd.f32 %v3759, %v3911
    %v3913 = vpop.f32.mrb[0].mxu0
    %v3914 = vadd.f32 %v3763, %v3913
    %3915 = vmatprep.mubr.f32.mxu0 0.0
    %3916 = vmatmul.mubr.f32.gmra.mrb[0].mxu0 %v3258
    %v3917 = vpop.f32.mrb[0].mxu0
    %v3918 = vadd.f32 %v3759, %v3917
    %v3919 = vpop.f32.mrb[0].mxu0
    %v3920 = vadd.f32 %v3763, %v3919
    %3921 = vdwg.mxu0
    %v3922 = vmax.f32 %v3837, 0.0
    %v3923 = vmax.f32 %v3843, 0.0
    %vm3924 = vcmp.ne.f32.partialorder %v3837, %v3837
    %vm3925 = vcmp.ne.f32.partialorder %v3843, %v3843
    %v3926 = vadd.f32 %v3837, 0.0
    %v3927 = vadd.f32 %v3843, 0.0
    %v3928 = vand.u32 2147483647, %v3837
    %v3929 = vand.u32 2147483647, %v3843
    %v3930 = vsub.f32 0.0, %v3928
    %v3931 = vsub.f32 0.0, %v3929
    %v3932 = vmul.f32 %v3930, 1.442695
    %v3933 = vpow.pop %v3932
    %v3934 = vmul.f32 %v3931, 1.442695
    %v3935 = vpow.pop %v3934
    %v3936 = vadd.f32 %v3933, 1.0
    %v3937 = vlog2.pop %v3936
    %v3938 = vmul.f32 %v3937, 0.6931472
    %v3939 = vmul.f32 -0.5, %v3933
    %v3940 = vadd.f32 %v3939, 1.0
    %v3941 = vmul.f32 %v3940, %v3933
    %v3942 = vand.u32 2147483647, %v3933
    %vm3943 = vcmp.lt.f32.partialorder %v3942, 0.0004427343
    %v3944 = vsel %vm3943, %v3941, %v3938
    %v3945 = vadd.f32 %v3935, 1.0
    %v3946 = vlog2.pop %v3945
    %v3947 = vmul.f32 %v3946, 0.6931472
    %v3948 = vmul.f32 -0.5, %v3935
    %v3949 = vadd.f32 %v3948, 1.0
    %v3950 = vmul.f32 %v3949, %v3935
    %v3951 = vand.u32 2147483647, %v3935
    %vm3952 = vcmp.lt.f32.partialorder %v3951, 0.0004427343
    %v3953 = vsel %vm3952, %v3950, %v3947
    %v3954 = vadd.f32 %v3922, %v3944
    %v3955 = vadd.f32 %v3923, %v3953
    %v3956 = vsel %vm3924, %v3926, %v3954
    %v3957 = vsel %vm3925, %v3927, %v3955
    %v3958 = vld [vmem:[%s5] sm:$0xff]
    %v3959 = vld [vmem:[%s5 + $0x8] sm:$0xff]
    %v3960 = vld [vmem:[%s5 + $0x10] sm:$0xff]
    %v3961 = vld [vmem:[%s5 + $0x18] sm:$0xff]
    %v3962 = vld [vmem:[%s5 + $0x20] sm:$0xff]
    %v3963 = vld [vmem:[%s5 + $0x28] sm:$0xff]
    %v3964 = vld [vmem:[%s5 + $0x30] sm:$0xff]
    %v3965 = vld [vmem:[%s5 + $0x38] sm:$0xff]
    %v3966 = vld [vmem:[#allocation11] sm:$0x1]
    %v3968 = vlaneseq
    %v3969 = vshrl.u32 %v3968, 7
    %v3970 = vsub.s32 0, %v3969
    %v3971 = vrot.slane %v3966, %v3970
    %v3974 = vsel %vm411, %v3734, 0
    %3976 = vmatprep.subr.mxu0 0.0
    %3977 = vmatpush1.msra.mxu0 %v3958
    %3978 = vmatprep.subr.mxu0 0.0
    %3979 = vmatpush1.msra.mxu0 %v3959
    %3980 = vmatprep.subr.mxu0 0.0
    %3981 = vmatpush1.msra.mxu0 %v3960
    %3982 = vmatprep.subr.mxu0 0.0
    %3983 = vmatpush1.msra.mxu0 %v3961
    %3984 = vmatprep.subr.mxu0 0.0
    %3985 = vmatpush1.msra.mxu0 %v3962
    %3986 = vmatprep.subr.mxu0 0.0
    %3987 = vmatpush1.msra.mxu0 %v3963
    %3988 = vmatprep.subr.mxu0 0.0
    %3989 = vmatpush1.msra.mxu0 %v3964
    %3990 = vmatprep.subr.mxu0 0.0
    %3991 = vmatpush1.msra.mxu0 %v3965
    %3992 = vmatprep.subr.mxu0 0.0
    %3993 = vmatpush1.msra.mxu0 0.0
    %3994 = vmatprep.subr.mxu0 0.0
    %3995 = vmatpush1.msra.mxu0 0.0
    %3996 = vmatprep.subr.mxu0 0.0
    %3997 = vmatpush1.msra.mxu0 0.0
    %3998 = vmatprep.subr.mxu0 0.0
    %3999 = vmatpush1.msra.mxu0 0.0
    %4000 = vmatprep.subr.mxu0 0.0
    %4001 = vmatpush1.msra.mxu0 0.0
    %4002 = vmatprep.subr.mxu0 0.0
    %4003 = vmatpush1.msra.mxu0 0.0
    %4004 = vmatprep.subr.mxu0 0.0
    %4005 = vmatpush1.msra.mxu0 0.0
    %4006 = vmatprep.subr.mxu0 0.0
    %4007 = vmatpush1.msra.mxu0 0.0
    %4008 = vmatprep.subr.mxu0 0.0
    %4009 = vmatpush1.msra.mxu0 0.0
    %4010 = vmatprep.subr.mxu0 0.0
    %4011 = vmatpush1.msra.mxu0 0.0
    %4012 = vmatprep.subr.mxu0 0.0
    %4013 = vmatpush1.msra.mxu0 0.0
    %4014 = vmatprep.subr.mxu0 0.0
    %4015 = vmatpush1.msra.mxu0 0.0
    %4016 = vmatprep.subr.mxu0 0.0
    %4017 = vmatpush1.msra.mxu0 0.0
    %4018 = vmatprep.subr.mxu0 0.0
    %4019 = vmatpush1.msra.mxu0 0.0
    %4020 = vmatprep.subr.mxu0 0.0
    %4021 = vmatpush1.msra.mxu0 0.0
    %4022 = vmatprep.subr.mxu0 0.0
    %4023 = vmatpush1.msra.mxu0 0.0
    %4024 = vmatprep.subr.mxu0 0.0
    %4025 = vmatpush1.msra.mxu0 0.0
    %4026 = vmatprep.subr.mxu0 0.0
    %4027 = vmatpush1.msra.mxu0 0.0
    %4028 = vmatprep.subr.mxu0 0.0
    %4029 = vmatpush1.msra.mxu0 0.0
    %4030 = vmatprep.subr.mxu0 0.0
    %4031 = vmatpush1.msra.mxu0 0.0
    %4032 = vmatprep.subr.mxu0 0.0
    %4033 = vmatpush1.msra.mxu0 0.0
    %4034 = vmatprep.subr.mxu0 0.0
    %4035 = vmatpush1.msra.mxu0 0.0
    %4036 = vmatprep.subr.mxu0 0.0
    %4037 = vmatpush1.msra.mxu0 0.0
    %4038 = vmatprep.subr.mxu0 0.0
    %4039 = vmatpush1.msra.mxu0 0.0
    %4040 = vmatprep.mubr.f32.mxu0 0.0
    %4041 = vmatmul.mubr.f32.gmra.mrb[0].mxu0 %v3974
    %v4042 = vpop.f32.mrb[0].mxu0
    %v4043 = vadd.f32 %v3971, %v4042
    %v4044 = vpop.f32.mrb[0].mxu0
    %4045 = vdwg.mxu0
    %v4046 = vmax.f32 %v4043, 0.0
    %v4047 = vld [vmem:[#allocation14] sm:$0xff]
    %v4048 = vld [vmem:[#allocation14 + $0x8] sm:$0xff]
    %v4049 = vld [vmem:[#allocation14 + $0x10] sm:$0xff]
    %v4050 = vld [vmem:[#allocation14 + $0x18] sm:$0xff]
    %v4051 = vld [vmem:[#allocation14 + $0x20] sm:$0xff]
    %v4052 = vld [vmem:[#allocation14 + $0x28] sm:$0xff]
    %v4053 = vld [vmem:[#allocation14 + $0x30] sm:$0xff]
    %v4054 = vld [vmem:[#allocation14 + $0x38] sm:$0xff]
    %v4056 = vsel %vm494, %v4046, 0
    %4058 = vmatprep.subr.mxu0 %v4048
    %4059 = vmatpush1.msra.mxu0 %v4047
    %4060 = vmatprep.subr.mxu0 %v4050
    %4061 = vmatpush1.msra.mxu0 %v4049
    %4062 = vmatprep.subr.mxu0 %v4052
    %4063 = vmatpush1.msra.mxu0 %v4051
    %4064 = vmatprep.subr.mxu0 %v4054
    %4065 = vmatpush1.msra.mxu0 %v4053
    %4066 = vmatprep.subr.mxu0 0.0
    %4067 = vmatpush1.msra.mxu0 0.0
    %4068 = vmatprep.subr.mxu0 0.0
    %4069 = vmatpush1.msra.mxu0 0.0
    %4070 = vmatprep.subr.mxu0 0.0
    %4071 = vmatpush1.msra.mxu0 0.0
    %4072 = vmatprep.subr.mxu0 0.0
    %4073 = vmatpush1.msra.mxu0 0.0
    %4074 = vmatprep.subr.mxu0 0.0
    %4075 = vmatpush1.msra.mxu0 0.0
    %4076 = vmatprep.subr.mxu0 0.0
    %4077 = vmatpush1.msra.mxu0 0.0
    %4078 = vmatprep.subr.mxu0 0.0
    %4079 = vmatpush1.msra.mxu0 0.0
    %4080 = vmatprep.subr.mxu0 0.0
    %4081 = vmatpush1.msra.mxu0 0.0
    %4082 = vmatprep.subr.mxu0 0.0
    %4083 = vmatpush1.msra.mxu0 0.0
    %4084 = vmatprep.subr.mxu0 0.0
    %4085 = vmatpush1.msra.mxu0 0.0
    %4086 = vmatprep.subr.mxu0 0.0
    %4087 = vmatpush1.msra.mxu0 0.0
    %4088 = vmatprep.subr.mxu0 0.0
    %4089 = vmatpush1.msra.mxu0 0.0
    %4090 = vmatprep.subr.mxu0 0.0
    %4091 = vmatpush1.msra.mxu0 0.0
    %4092 = vmatprep.subr.mxu0 0.0
    %4093 = vmatpush1.msra.mxu0 0.0
    %4094 = vmatprep.subr.mxu0 0.0
    %4095 = vmatpush1.msra.mxu0 0.0
    %4096 = vmatprep.subr.mxu0 0.0
    %4097 = vmatpush1.msra.mxu0 0.0
    %4098 = vmatprep.subr.mxu0 0.0
    %4099 = vmatpush1.msra.mxu0 0.0
    %4100 = vmatprep.subr.mxu0 0.0
    %4101 = vmatpush1.msra.mxu0 0.0
    %4102 = vmatprep.subr.mxu0 0.0
    %4103 = vmatpush1.msra.mxu0 0.0
    %4104 = vmatprep.subr.mxu0 0.0
    %4105 = vmatpush1.msra.mxu0 0.0
    %4106 = vmatprep.subr.mxu0 0.0
    %4107 = vmatpush1.msra.mxu0 0.0
    %4108 = vmatprep.subr.mxu0 0.0
    %4109 = vmatpush1.msra.mxu0 0.0
    %4110 = vmatprep.subr.mxu0 0.0
    %4111 = vmatpush1.msra.mxu0 0.0
    %4112 = vmatprep.subr.mxu0 0.0
    %4113 = vmatpush1.msra.mxu0 0.0
    %4114 = vmatprep.subr.mxu0 0.0
    %4115 = vmatpush1.msra.mxu0 0.0
    %4116 = vmatprep.subr.mxu0 0.0
    %4117 = vmatpush1.msra.mxu0 0.0
    %4118 = vmatprep.subr.mxu0 0.0
    %4119 = vmatpush1.msra.mxu0 0.0
    %4120 = vmatprep.subr.mxu0 0.0
    %4121 = vmatpush1.msra.mxu0 0.0
    %4122 = vmatprep.mubr.f32.mxu0 0.0
    %4123 = vmatmul.mubr.f32.gmra.mrb[0].mxu0 %v4056
    %v4124 = vpop.f32.mrb[0].mxu0
    %v4125 = vadd.f32 0.0, %v4124
    %v4126 = vpop.f32.mrb[0].mxu0
    %v4127 = vadd.f32 0.0, %v4126
    %4128 = vdwg.mxu0
    %v4130 = vsel %vm576, %v4125, 0
    %v4133 = vsel %vm576, %v4127, 0
    %v4135 = vsel %vm576, %v3734, 0
    %4137 = vmatprep.subr.mxu0 %v4133
    %4138 = vmatpush1.msra.mxu0 %v4130
    %4139 = vmatprep.subr.mxu0 0.0
    %4140 = vmatpush1.msra.mxu0 0.0
    %4141 = vmatprep.subr.mxu0 0.0
    %4142 = vmatpush1.msra.mxu0 0.0
    %4143 = vmatprep.subr.mxu0 0.0
    %4144 = vmatpush1.msra.mxu0 0.0
    %4145 = vmatprep.subr.mxu0 0.0
    %4146 = vmatpush1.msra.mxu0 0.0
    %4147 = vmatprep.subr.mxu0 0.0
    %4148 = vmatpush1.msra.mxu0 0.0
    %4149 = vmatprep.subr.mxu0 0.0
    %4150 = vmatpush1.msra.mxu0 0.0
    %4151 = vmatprep.subr.mxu0 0.0
    %4152 = vmatpush1.msra.mxu0 0.0
    %4153 = vmatprep.subr.mxu0 0.0
    %4154 = vmatpush1.msra.mxu0 0.0
    %4155 = vmatprep.subr.mxu0 0.0
    %4156 = vmatpush1.msra.mxu0 0.0
    %4157 = vmatprep.subr.mxu0 0.0
    %4158 = vmatpush1.msra.mxu0 0.0
    %4159 = vmatprep.subr.mxu0 0.0
    %4160 = vmatpush1.msra.mxu0 0.0
    %4161 = vmatprep.subr.mxu0 0.0
    %4162 = vmatpush1.msra.mxu0 0.0
    %4163 = vmatprep.subr.mxu0 0.0
    %4164 = vmatpush1.msra.mxu0 0.0
    %4165 = vmatprep.subr.mxu0 0.0
    %4166 = vmatpush1.msra.mxu0 0.0
    %4167 = vmatprep.subr.mxu0 0.0
    %4168 = vmatpush1.msra.mxu0 0.0
    %4169 = vmatprep.subr.mxu0 0.0
    %4170 = vmatpush1.msra.mxu0 0.0
    %4171 = vmatprep.subr.mxu0 0.0
    %4172 = vmatpush1.msra.mxu0 0.0
    %4173 = vmatprep.subr.mxu0 0.0
    %4174 = vmatpush1.msra.mxu0 0.0
    %4175 = vmatprep.subr.mxu0 0.0
    %4176 = vmatpush1.msra.mxu0 0.0
    %4177 = vmatprep.subr.mxu0 0.0
    %4178 = vmatpush1.msra.mxu0 0.0
    %4179 = vmatprep.subr.mxu0 0.0
    %4180 = vmatpush1.msra.mxu0 0.0
    %4181 = vmatprep.subr.mxu0 0.0
    %4182 = vmatpush1.msra.mxu0 0.0
    %4183 = vmatprep.subr.mxu0 0.0
    %4184 = vmatpush1.msra.mxu0 0.0
    %4185 = vmatprep.subr.mxu0 0.0
    %4186 = vmatpush1.msra.mxu0 0.0
    %4187 = vmatprep.subr.mxu0 0.0
    %4188 = vmatpush1.msra.mxu0 0.0
    %4189 = vmatprep.subr.mxu0 0.0
    %4190 = vmatpush1.msra.mxu0 0.0
    %4191 = vmatprep.subr.mxu0 0.0
    %4192 = vmatpush1.msra.mxu0 0.0
    %4193 = vmatprep.subr.mxu0 0.0
    %4194 = vmatpush1.msra.mxu0 0.0
    %4195 = vmatprep.subr.mxu0 0.0
    %4196 = vmatpush1.msra.mxu0 0.0
    %4197 = vmatprep.subr.mxu0 0.0
    %4198 = vmatpush1.msra.mxu0 0.0
    %4199 = vmatprep.subr.mxu0 0.0
    %4200 = vmatpush1.msra.mxu0 0.0
    %4201 = vmatprep.mubr.f32.mxu0 0.0
    %4202 = vmatmul.mubr.f32.gmra.mrb[0].mxu0 %v571
    %v4203 = vpop.f32.mrb[0].mxu0
    %v4204 = vadd.f32 0.0, %v4203
    %v4205 = vpop.f32.mrb[0].mxu0
    %v4206 = vadd.f32 0.0, %v4205
    %4207 = vmatprep.mubr.f32.mxu0 0.0
    %4208 = vmatmul.mubr.f32.gmra.mrb[0].mxu0 %v574
    %v4209 = vpop.f32.mrb[0].mxu0
    %v4210 = vadd.f32 0.0, %v4209
    %v4211 = vpop.f32.mrb[0].mxu0
    %v4212 = vadd.f32 0.0, %v4211
    %4213 = vdwg.mxu0
    %4214 = vmatprep.subr.mxu0 0.0
    %4215 = vmatpush1.msra.mxu0 %v4135
    %4216 = vmatprep.subr.mxu0 0.0
    %4217 = vmatpush1.msra.mxu0 0.0
    %4218 = vmatprep.subr.mxu0 0.0
    %4219 = vmatpush1.msra.mxu0 0.0
    %4220 = vmatprep.subr.mxu0 0.0
    %4221 = vmatpush1.msra.mxu0 0.0
    %4222 = vmatprep.subr.mxu0 0.0
    %4223 = vmatpush1.msra.mxu0 0.0
    %4224 = vmatprep.subr.mxu0 0.0
    %4225 = vmatpush1.msra.mxu0 0.0
    %4226 = vmatprep.subr.mxu0 0.0
    %4227 = vmatpush1.msra.mxu0 0.0
    %4228 = vmatprep.subr.mxu0 0.0
    %4229 = vmatpush1.msra.mxu0 0.0
    %4230 = vmatprep.subr.mxu0 0.0
    %4231 = vmatpush1.msra.mxu0 0.0
    %4232 = vmatprep.subr.mxu0 0.0
    %4233 = vmatpush1.msra.mxu0 0.0
    %4234 = vmatprep.subr.mxu0 0.0
    %4235 = vmatpush1.msra.mxu0 0.0
    %4236 = vmatprep.subr.mxu0 0.0
    %4237 = vmatpush1.msra.mxu0 0.0
    %4238 = vmatprep.subr.mxu0 0.0
    %4239 = vmatpush1.msra.mxu0 0.0
    %4240 = vmatprep.subr.mxu0 0.0
    %4241 = vmatpush1.msra.mxu0 0.0
    %4242 = vmatprep.subr.mxu0 0.0
    %4243 = vmatpush1.msra.mxu0 0.0
    %4244 = vmatprep.subr.mxu0 0.0
    %4245 = vmatpush1.msra.mxu0 0.0
    %4246 = vmatprep.subr.mxu0 0.0
    %4247 = vmatpush1.msra.mxu0 0.0
    %4248 = vmatprep.subr.mxu0 0.0
    %4249 = vmatpush1.msra.mxu0 0.0
    %4250 = vmatprep.subr.mxu0 0.0
    %4251 = vmatpush1.msra.mxu0 0.0
    %4252 = vmatprep.subr.mxu0 0.0
    %4253 = vmatpush1.msra.mxu0 0.0
    %4254 = vmatprep.subr.mxu0 0.0
    %4255 = vmatpush1.msra.mxu0 0.0
    %4256 = vmatprep.subr.mxu0 0.0
    %4257 = vmatpush1.msra.mxu0 0.0
    %4258 = vmatprep.subr.mxu0 0.0
    %4259 = vmatpush1.msra.mxu0 0.0
    %4260 = vmatprep.subr.mxu0 0.0
    %4261 = vmatpush1.msra.mxu0 0.0
    %4262 = vmatprep.subr.mxu0 0.0
    %4263 = vmatpush1.msra.mxu0 0.0
    %4264 = vmatprep.subr.mxu0 0.0
    %4265 = vmatpush1.msra.mxu0 0.0
    %4266 = vmatprep.subr.mxu0 0.0
    %4267 = vmatpush1.msra.mxu0 0.0
    %4268 = vmatprep.subr.mxu0 0.0
    %4269 = vmatpush1.msra.mxu0 0.0
    %4270 = vmatprep.subr.mxu0 0.0
    %4271 = vmatpush1.msra.mxu0 0.0
    %4272 = vmatprep.subr.mxu0 0.0
    %4273 = vmatpush1.msra.mxu0 0.0
    %4274 = vmatprep.subr.mxu0 0.0
    %4275 = vmatpush1.msra.mxu0 0.0
    %4276 = vmatprep.subr.mxu0 0.0
    %4277 = vmatpush1.msra.mxu0 0.0
    %4278 = vmatprep.mubr.f32.mxu0 0.0
    %4279 = vmatmul.mubr.f32.gmra.mrb[0].mxu0 %v571
    %v4280 = vpop.f32.mrb[0].mxu0
    %v4281 = vadd.f32 0.0, %v4280
    %v4282 = vpop.f32.mrb[0].mxu0
    %4283 = vmatprep.mubr.f32.mxu0 0.0
    %4284 = vmatmul.mubr.f32.gmra.mrb[0].mxu0 %v574
    %v4285 = vpop.f32.mrb[0].mxu0
    %v4286 = vadd.f32 0.0, %v4285
    %v4287 = vpop.f32.mrb[0].mxu0
    %4288 = vdwg.mxu0
    %v4289 = vadd.f32 %v3912, %v4204
    %v4290 = vadd.f32 %v3914, %v4206
    %v4291 = vadd.f32 %v3918, %v4210
    %v4292 = vadd.f32 %v3920, %v4212
    %v4293 = vld [vmem:[%s9] sm:$0xff]
    %v4294 = vld [vmem:[%s9 + $0x8] sm:$0xff]
    %v4295 = vld [vmem:[%s9 + $0x10] sm:$0xff]
    %v4296 = vld [vmem:[%s9 + $0x18] sm:$0xff]
    %v4297 = vld [vmem:[%s9 + $0x20] sm:$0xff]
    %v4298 = vld [vmem:[%s9 + $0x28] sm:$0xff]
    %v4299 = vld [vmem:[%s9 + $0x30] sm:$0xff]
    %v4300 = vld [vmem:[%s9 + $0x38] sm:$0xff]
    %4301 = vmatprep.subr.mxu0 %v4294
    %4302 = vmatpush1.msra.mxu0 %v4293
    %4303 = vmatprep.subr.mxu0 %v4296
    %4304 = vmatpush1.msra.mxu0 %v4295
    %4305 = vmatprep.subr.mxu0 %v4298
    %4306 = vmatpush1.msra.mxu0 %v4297
    %4307 = vmatprep.subr.mxu0 %v4300
    %4308 = vmatpush1.msra.mxu0 %v4299
    %4309 = vmatprep.subr.mxu0 0.0
    %4310 = vmatpush1.msra.mxu0 0.0
    %4311 = vmatprep.subr.mxu0 0.0
    %4312 = vmatpush1.msra.mxu0 0.0
    %4313 = vmatprep.subr.mxu0 0.0
    %4314 = vmatpush1.msra.mxu0 0.0
    %4315 = vmatprep.subr.mxu0 0.0
    %4316 = vmatpush1.msra.mxu0 0.0
    %4317 = vmatprep.subr.mxu0 0.0
    %4318 = vmatpush1.msra.mxu0 0.0
    %4319 = vmatprep.subr.mxu0 0.0
    %4320 = vmatpush1.msra.mxu0 0.0
    %4321 = vmatprep.subr.mxu0 0.0
    %4322 = vmatpush1.msra.mxu0 0.0
    %4323 = vmatprep.subr.mxu0 0.0
    %4324 = vmatpush1.msra.mxu0 0.0
    %4325 = vmatprep.subr.mxu0 0.0
    %4326 = vmatpush1.msra.mxu0 0.0
    %4327 = vmatprep.subr.mxu0 0.0
    %4328 = vmatpush1.msra.mxu0 0.0
    %4329 = vmatprep.subr.mxu0 0.0
    %4330 = vmatpush1.msra.mxu0 0.0
    %4331 = vmatprep.subr.mxu0 0.0
    %4332 = vmatpush1.msra.mxu0 0.0
    %4333 = vmatprep.subr.mxu0 0.0
    %4334 = vmatpush1.msra.mxu0 0.0
    %4335 = vmatprep.subr.mxu0 0.0
    %4336 = vmatpush1.msra.mxu0 0.0
    %4337 = vmatprep.subr.mxu0 0.0
    %4338 = vmatpush1.msra.mxu0 0.0
    %4339 = vmatprep.subr.mxu0 0.0
    %4340 = vmatpush1.msra.mxu0 0.0
    %4341 = vmatprep.subr.mxu0 0.0
    %4342 = vmatpush1.msra.mxu0 0.0
    %4343 = vmatprep.subr.mxu0 0.0
    %4344 = vmatpush1.msra.mxu0 0.0
    %4345 = vmatprep.subr.mxu0 0.0
    %4346 = vmatpush1.msra.mxu0 0.0
    %4347 = vmatprep.subr.mxu0 0.0
    %4348 = vmatpush1.msra.mxu0 0.0
    %4349 = vmatprep.subr.mxu0 0.0
    %4350 = vmatpush1.msra.mxu0 0.0
    %4351 = vmatprep.subr.mxu0 0.0
    %4352 = vmatpush1.msra.mxu0 0.0
    %4353 = vmatprep.subr.mxu0 0.0
    %4354 = vmatpush1.msra.mxu0 0.0
    %4355 = vmatprep.subr.mxu0 0.0
    %4356 = vmatpush1.msra.mxu0 0.0
    %4357 = vmatprep.subr.mxu0 0.0
    %4358 = vmatpush1.msra.mxu0 0.0
    %4359 = vmatprep.subr.mxu0 0.0
    %4360 = vmatpush1.msra.mxu0 0.0
    %4361 = vmatprep.subr.mxu0 0.0
    %4362 = vmatpush1.msra.mxu0 0.0
    %4363 = vmatprep.subr.mxu0 0.0
    %4364 = vmatpush1.msra.mxu0 0.0
    %4365 = vmatprep.mubr.f32.mxu0 0.0
    %4366 = vmatmul.mubr.f32.gmra.mrb[0].mxu0 %v3349
    %v4367 = vpop.f32.mrb[0].mxu0
    %v4368 = vadd.f32 0.0, %v4367
    %v4369 = vpop.f32.mrb[0].mxu0
    %v4370 = vadd.f32 0.0, %v4369
    %4371 = vmatprep.mubr.f32.mxu0 0.0
    %4372 = vmatmul.mubr.f32.gmra.mrb[0].mxu0 %v3352
    %v4373 = vpop.f32.mrb[0].mxu0
    %v4374 = vadd.f32 0.0, %v4373
    %v4375 = vpop.f32.mrb[0].mxu0
    %v4376 = vadd.f32 0.0, %v4375
    %4377 = vdwg.mxu0
    %v4378 = vadd.f32 %v4289, %v4368
    %v4379 = vadd.f32 %v4290, %v4370
    %v4380 = vadd.f32 %v4291, %v4374
    %v4381 = vadd.f32 %v4292, %v4376
    %v4382 = vmax.f32 %v4379, 0.0
    %v4383 = vmax.f32 %v4381, 0.0
    %vm4384 = vcmp.ne.f32.partialorder %v4379, %v4379
    %vm4385 = vcmp.ne.f32.partialorder %v4381, %v4381
    %v4386 = vadd.f32 %v4379, 0.0
    %v4387 = vadd.f32 %v4381, 0.0
    %v4388 = vand.u32 2147483647, %v4379
    %v4389 = vand.u32 2147483647, %v4381
    %v4390 = vsub.f32 0.0, %v4388
    %v4391 = vsub.f32 0.0, %v4389
    %v4392 = vmul.f32 %v4390, 1.442695
    %v4393 = vpow.pop %v4392
    %v4394 = vmul.f32 %v4391, 1.442695
    %v4395 = vpow.pop %v4394
    %v4396 = vadd.f32 %v4393, 1.0
    %v4397 = vlog2.pop %v4396
    %v4398 = vmul.f32 %v4397, 0.6931472
    %v4399 = vmul.f32 -0.5, %v4393
    %v4400 = vadd.f32 %v4399, 1.0
    %v4401 = vmul.f32 %v4400, %v4393
    %v4402 = vand.u32 2147483647, %v4393
    %vm4403 = vcmp.lt.f32.partialorder %v4402, 0.0004427343
    %v4404 = vsel %vm4403, %v4401, %v4398
    %v4405 = vadd.f32 %v4395, 1.0
    %v4406 = vlog2.pop %v4405
    %v4407 = vmul.f32 %v4406, 0.6931472
    %v4408 = vmul.f32 -0.5, %v4395
    %v4409 = vadd.f32 %v4408, 1.0
    %v4410 = vmul.f32 %v4409, %v4395
    %v4411 = vand.u32 2147483647, %v4395
    %vm4412 = vcmp.lt.f32.partialorder %v4411, 0.0004427343
    %v4413 = vsel %vm4412, %v4410, %v4407
    %v4414 = vadd.f32 %v4382, %v4404
    %v4415 = vadd.f32 %v4383, %v4413
    %v4416 = vsel %vm4384, %v4386, %v4414
    %v4417 = vsel %vm4385, %v4387, %v4415
    %v4418 = vmul.f32 %v4416, %v3736
    %v4419 = vmul.f32 %v4417, %v3737
    %v4420 = vadd.f32 %v4378, %v4418
    %v4421 = vadd.f32 %v4380, %v4419
    %v4422 = vsub.f32 %v4420, %v3835
    %v4423 = vsub.f32 %v4421, %v3841
    %v4424 = vrcp.pop %v3956
    %v4425 = vrcp.pop %v3957
    %v4426 = vmul.f32 %v4422, %v4424
    %v4427 = vmul.f32 %v4423, %v4425
    %v4428 = vld [vmem:[%s11] sm:$0xff]
    %v4429 = vld [vmem:[%s11 + $0x8] sm:$0xff]
    %v4430 = vld [vmem:[%s12] sm:$0x1]
    %v4432 = vlaneseq
    %v4433 = vshrl.u32 %v4432, 7
    %v4434 = vsub.s32 0, %v4433
    %v4435 = vrot.slane %v4430, %v4434
    %v4438 = vsel %vm199, %v4420, 0
    %v4441 = vsel %vm199, %v4421, 0
    %4443 = vmatprep.subr.mxu0 0.0
    %4444 = vmatpush1.msra.mxu0 %v4428
    %4445 = vmatprep.subr.mxu0 0.0
    %4446 = vmatpush1.msra.mxu0 %v4429
    %4447 = vmatprep.subr.mxu0 0.0
    %4448 = vmatpush1.msra.mxu0 0.0
    %4449 = vmatprep.subr.mxu0 0.0
    %4450 = vmatpush1.msra.mxu0 0.0
    %4451 = vmatprep.subr.mxu0 0.0
    %4452 = vmatpush1.msra.mxu0 0.0
    %4453 = vmatprep.subr.mxu0 0.0
    %4454 = vmatpush1.msra.mxu0 0.0
    %4455 = vmatprep.subr.mxu0 0.0
    %4456 = vmatpush1.msra.mxu0 0.0
    %4457 = vmatprep.subr.mxu0 0.0
    %4458 = vmatpush1.msra.mxu0 0.0
    %4459 = vmatprep.subr.mxu0 0.0
    %4460 = vmatpush1.msra.mxu0 0.0
    %4461 = vmatprep.subr.mxu0 0.0
    %4462 = vmatpush1.msra.mxu0 0.0
    %4463 = vmatprep.subr.mxu0 0.0
    %4464 = vmatpush1.msra.mxu0 0.0
    %4465 = vmatprep.subr.mxu0 0.0
    %4466 = vmatpush1.msra.mxu0 0.0
    %4467 = vmatprep.subr.mxu0 0.0
    %4468 = vmatpush1.msra.mxu0 0.0
    %4469 = vmatprep.subr.mxu0 0.0
    %4470 = vmatpush1.msra.mxu0 0.0
    %4471 = vmatprep.subr.mxu0 0.0
    %4472 = vmatpush1.msra.mxu0 0.0
    %4473 = vmatprep.subr.mxu0 0.0
    %4474 = vmatpush1.msra.mxu0 0.0
    %4475 = vmatprep.subr.mxu0 0.0
    %4476 = vmatpush1.msra.mxu0 0.0
    %4477 = vmatprep.subr.mxu0 0.0
    %4478 = vmatpush1.msra.mxu0 0.0
    %4479 = vmatprep.subr.mxu0 0.0
    %4480 = vmatpush1.msra.mxu0 0.0
    %4481 = vmatprep.subr.mxu0 0.0
    %4482 = vmatpush1.msra.mxu0 0.0
    %4483 = vmatprep.subr.mxu0 0.0
    %4484 = vmatpush1.msra.mxu0 0.0
    %4485 = vmatprep.subr.mxu0 0.0
    %4486 = vmatpush1.msra.mxu0 0.0
    %4487 = vmatprep.subr.mxu0 0.0
    %4488 = vmatpush1.msra.mxu0 0.0
    %4489 = vmatprep.subr.mxu0 0.0
    %4490 = vmatpush1.msra.mxu0 0.0
    %4491 = vmatprep.subr.mxu0 0.0
    %4492 = vmatpush1.msra.mxu0 0.0
    %4493 = vmatprep.subr.mxu0 0.0
    %4494 = vmatpush1.msra.mxu0 0.0
    %4495 = vmatprep.subr.mxu0 0.0
    %4496 = vmatpush1.msra.mxu0 0.0
    %4497 = vmatprep.subr.mxu0 0.0
    %4498 = vmatpush1.msra.mxu0 0.0
    %4499 = vmatprep.subr.mxu0 0.0
    %4500 = vmatpush1.msra.mxu0 0.0
    %4501 = vmatprep.subr.mxu0 0.0
    %4502 = vmatpush1.msra.mxu0 0.0
    %4503 = vmatprep.subr.mxu0 0.0
    %4504 = vmatpush1.msra.mxu0 0.0
    %4505 = vmatprep.subr.mxu0 0.0
    %4506 = vmatpush1.msra.mxu0 0.0
    %4507 = vmatprep.mubr.f32.mxu0 0.0
    %4508 = vmatmul.mubr.f32.gmra.mrb[0].mxu0 %v4438
    %v4509 = vpop.f32.mrb[0].mxu0
    %v4510 = vadd.f32 %v4435, %v4509
    %v4511 = vpop.f32.mrb[0].mxu0
    %4512 = vmatprep.mubr.f32.mxu0 0.0
    %4513 = vmatmul.mubr.f32.gmra.mrb[0].mxu0 %v4441
    %v4514 = vpop.f32.mrb[0].mxu0
    %v4515 = vadd.f32 %v4435, %v4514
    %v4516 = vpop.f32.mrb[0].mxu0
    %4517 = vdwg.mxu0
    %v4518 = vmax.f32 %v4510, 0.0
    %v4519 = vmax.f32 %v4515, 0.0
    %v4520 = vld [vmem:[%s13] sm:$0xff]
    %v4521 = vld [vmem:[%s13 + $0x8] sm:$0xff]
    %v4522 = vld [vmem:[%s13 + $0x10] sm:$0xff]
    %v4523 = vld [vmem:[%s13 + $0x18] sm:$0xff]
    %v4524 = vld [vmem:[%s14] sm:$0x1]
    %v4526 = vlaneseq
    %v4527 = vshrl.u32 %v4526, 7
    %v4528 = vsub.s32 0, %v4527
    %v4529 = vrot.slane %v4524, %v4528
    %v4532 = vsel %vm494, %v4518, 0
    %v4535 = vsel %vm494, %v4519, 0
    %4537 = vmatprep.subr.mxu0 0.0
    %4538 = vmatpush1.msra.mxu0 %v4520
    %4539 = vmatprep.subr.mxu0 0.0
    %4540 = vmatpush1.msra.mxu0 %v4521
    %4541 = vmatprep.subr.mxu0 0.0
    %4542 = vmatpush1.msra.mxu0 %v4522
    %4543 = vmatprep.subr.mxu0 0.0
    %4544 = vmatpush1.msra.mxu0 %v4523
    %4545 = vmatprep.subr.mxu0 0.0
    %4546 = vmatpush1.msra.mxu0 0.0
    %4547 = vmatprep.subr.mxu0 0.0
    %4548 = vmatpush1.msra.mxu0 0.0
    %4549 = vmatprep.subr.mxu0 0.0
    %4550 = vmatpush1.msra.mxu0 0.0
    %4551 = vmatprep.subr.mxu0 0.0
    %4552 = vmatpush1.msra.mxu0 0.0
    %4553 = vmatprep.subr.mxu0 0.0
    %4554 = vmatpush1.msra.mxu0 0.0
    %4555 = vmatprep.subr.mxu0 0.0
    %4556 = vmatpush1.msra.mxu0 0.0
    %4557 = vmatprep.subr.mxu0 0.0
    %4558 = vmatpush1.msra.mxu0 0.0
    %4559 = vmatprep.subr.mxu0 0.0
    %4560 = vmatpush1.msra.mxu0 0.0
    %4561 = vmatprep.subr.mxu0 0.0
    %4562 = vmatpush1.msra.mxu0 0.0
    %4563 = vmatprep.subr.mxu0 0.0
    %4564 = vmatpush1.msra.mxu0 0.0
    %4565 = vmatprep.subr.mxu0 0.0
    %4566 = vmatpush1.msra.mxu0 0.0
    %4567 = vmatprep.subr.mxu0 0.0
    %4568 = vmatpush1.msra.mxu0 0.0
    %4569 = vmatprep.subr.mxu0 0.0
    %4570 = vmatpush1.msra.mxu0 0.0
    %4571 = vmatprep.subr.mxu0 0.0
    %4572 = vmatpush1.msra.mxu0 0.0
    %4573 = vmatprep.subr.mxu0 0.0
    %4574 = vmatpush1.msra.mxu0 0.0
    %4575 = vmatprep.subr.mxu0 0.0
    %4576 = vmatpush1.msra.mxu0 0.0
    %4577 = vmatprep.subr.mxu0 0.0
    %4578 = vmatpush1.msra.mxu0 0.0
    %4579 = vmatprep.subr.mxu0 0.0
    %4580 = vmatpush1.msra.mxu0 0.0
    %4581 = vmatprep.subr.mxu0 0.0
    %4582 = vmatpush1.msra.mxu0 0.0
    %4583 = vmatprep.subr.mxu0 0.0
    %4584 = vmatpush1.msra.mxu0 0.0
    %4585 = vmatprep.subr.mxu0 0.0
    %4586 = vmatpush1.msra.mxu0 0.0
    %4587 = vmatprep.subr.mxu0 0.0
    %4588 = vmatpush1.msra.mxu0 0.0
    %4589 = vmatprep.subr.mxu0 0.0
    %4590 = vmatpush1.msra.mxu0 0.0
    %4591 = vmatprep.subr.mxu0 0.0
    %4592 = vmatpush1.msra.mxu0 0.0
    %4593 = vmatprep.subr.mxu0 0.0
    %4594 = vmatpush1.msra.mxu0 0.0
    %4595 = vmatprep.subr.mxu0 0.0
    %4596 = vmatpush1.msra.mxu0 0.0
    %4597 = vmatprep.subr.mxu0 0.0
    %4598 = vmatpush1.msra.mxu0 0.0
    %4599 = vmatprep.subr.mxu0 0.0
    %4600 = vmatpush1.msra.mxu0 0.0
    %4601 = vmatprep.mubr.f32.mxu0 0.0
    %4602 = vmatmul.mubr.f32.gmra.mrb[0].mxu0 %v4532
    %v4603 = vpop.f32.mrb[0].mxu0
    %v4604 = vadd.f32 %v4529, %v4603
    %v4605 = vpop.f32.mrb[0].mxu0
    %4606 = vmatprep.mubr.f32.mxu0 0.0
    %4607 = vmatmul.mubr.f32.gmra.mrb[0].mxu0 %v4535
    %v4608 = vpop.f32.mrb[0].mxu0
    %v4609 = vadd.f32 %v4529, %v4608
    %v4610 = vpop.f32.mrb[0].mxu0
    %4611 = vdwg.mxu0
    %v4612 = vsub.f32 %v4281, %v4604
    %v4613 = vsub.f32 %v4286, %v4609
    %v4614 = vld [vmem:[%s15] sm:$0x1]
    %v4616 = vlaneseq
    %v4617 = vshrl.u32 %v4616, 7
    %v4618 = vsub.s32 0, %v4617
    %v4619 = vrot.slane %v4614, %v4618
    %v4621 = vmul.f32 %v4612, %v4619
    %v4622 = vmul.f32 %v4613, %v4619
    %v4623 = vmul.f32 %v4426, -0.5
    %v4624 = vmul.f32 %v4427, -0.5
    %v4625 = vmul.f32 %v4623, %v4426
    %v4626 = vmul.f32 %v4624, %v4427
    %v4627 = vlog2.pop %v3956
    %v4628 = vmul.f32 %v4627, 0.6931472
    %v4629 = vlog2.pop %v3957
    %v4630 = vmul.f32 %v4629, 0.6931472
    %v4631 = vsub.f32 %v4625, %v4628
    %v4632 = vsub.f32 %v4626, %v4630
    %v4633 = vmul.f32 %v3736, 0.5
    %v4634 = vmul.f32 %v3737, 0.5
    %v4635 = vmul.f32 %v4633, %v3736
    %v4636 = vmul.f32 %v4634, %v3737
    %v4637 = vlog2.pop %v4416
    %v4638 = vmul.f32 %v4637, 0.6931472
    %v4639 = vlog2.pop %v4417
    %v4640 = vmul.f32 %v4639, 0.6931472
    %v4641 = vadd.f32 %v4635, %v4638
    %v4642 = vadd.f32 %v4636, %v4640
    %v4643 = vld [vmem:[%s16] sm:$0xff]
    %v4644 = vld [vmem:[%s16 + $0x8] sm:$0xff]
    %v4646 = vsel %vm199, %v4641, 0
    %v4649 = vsel %vm199, %v4642, 0
    %4651 = vmatprep.subr.mxu0 0.0
    %4652 = vmatpush1.msra.mxu0 1.0
    %4653 = vmatprep.subr.mxu0 0.0
    %4654 = vmatpush1.msra.mxu0 1.0
    %4655 = vmatprep.subr.mxu0 0.0
    %4656 = vmatpush1.msra.mxu0 0.0
    %4657 = vmatprep.subr.mxu0 0.0
    %4658 = vmatpush1.msra.mxu0 0.0
    %4659 = vmatprep.subr.mxu0 0.0
    %4660 = vmatpush1.msra.mxu0 0.0
    %4661 = vmatprep.subr.mxu0 0.0
    %4662 = vmatpush1.msra.mxu0 0.0
    %4663 = vmatprep.subr.mxu0 0.0
    %4664 = vmatpush1.msra.mxu0 0.0
    %4665 = vmatprep.subr.mxu0 0.0
    %4666 = vmatpush1.msra.mxu0 0.0
    %4667 = vmatprep.subr.mxu0 0.0
    %4668 = vmatpush1.msra.mxu0 0.0
    %4669 = vmatprep.subr.mxu0 0.0
    %4670 = vmatpush1.msra.mxu0 0.0
    %4671 = vmatprep.subr.mxu0 0.0
    %4672 = vmatpush1.msra.mxu0 0.0
    %4673 = vmatprep.subr.mxu0 0.0
    %4674 = vmatpush1.msra.mxu0 0.0
    %4675 = vmatprep.subr.mxu0 0.0
    %4676 = vmatpush1.msra.mxu0 0.0
    %4677 = vmatprep.subr.mxu0 0.0
    %4678 = vmatpush1.msra.mxu0 0.0
    %4679 = vmatprep.subr.mxu0 0.0
    %4680 = vmatpush1.msra.mxu0 0.0
    %4681 = vmatprep.subr.mxu0 0.0
    %4682 = vmatpush1.msra.mxu0 0.0
    %4683 = vmatprep.subr.mxu0 0.0
    %4684 = vmatpush1.msra.mxu0 0.0
    %4685 = vmatprep.subr.mxu0 0.0
    %4686 = vmatpush1.msra.mxu0 0.0
    %4687 = vmatprep.subr.mxu0 0.0
    %4688 = vmatpush1.msra.mxu0 0.0
    %4689 = vmatprep.subr.mxu0 0.0
    %4690 = vmatpush1.msra.mxu0 0.0
    %4691 = vmatprep.subr.mxu0 0.0
    %4692 = vmatpush1.msra.mxu0 0.0
    %4693 = vmatprep.subr.mxu0 0.0
    %4694 = vmatpush1.msra.mxu0 0.0
    %4695 = vmatprep.subr.mxu0 0.0
    %4696 = vmatpush1.msra.mxu0 0.0
    %4697 = vmatprep.subr.mxu0 0.0
    %4698 = vmatpush1.msra.mxu0 0.0
    %4699 = vmatprep.subr.mxu0 0.0
    %4700 = vmatpush1.msra.mxu0 0.0
    %4701 = vmatprep.subr.mxu0 0.0
    %4702 = vmatpush1.msra.mxu0 0.0
    %4703 = vmatprep.subr.mxu0 0.0
    %4704 = vmatpush1.msra.mxu0 0.0
    %4705 = vmatprep.subr.mxu0 0.0
    %4706 = vmatpush1.msra.mxu0 0.0
    %4707 = vmatprep.subr.mxu0 0.0
    %4708 = vmatpush1.msra.mxu0 0.0
    %4709 = vmatprep.subr.mxu0 0.0
    %4710 = vmatpush1.msra.mxu0 0.0
    %4711 = vmatprep.subr.mxu0 0.0
    %4712 = vmatpush1.msra.mxu0 0.0
    %4713 = vmatprep.subr.mxu0 0.0
    %4714 = vmatpush1.msra.mxu0 0.0
    %4715 = vmatprep.mubr.f32.mxu0 0.0
    %4716 = vmatmul.mubr.f32.gmra.mrb[0].mxu0 %v4646
    %v4717 = vpop.f32.mrb[0].mxu0
    %v4718 = vadd.f32 0.0, %v4717
    %v4719 = vpop.f32.mrb[0].mxu0
    %4720 = vmatprep.mubr.f32.mxu0 0.0
    %4721 = vmatmul.mubr.f32.gmra.mrb[0].mxu0 %v4649
    %v4722 = vpop.f32.mrb[0].mxu0
    %v4723 = vadd.f32 0.0, %v4722
    %v4724 = vpop.f32.mrb[0].mxu0
    %4725 = vdwg.mxu0
    %v4727 = vsel %vm199, %v4631, 0
    %v4730 = vsel %vm199, %v4632, 0
    %4732 = vmatprep.subr.mxu0 0.0
    %4733 = vmatpush1.msra.mxu0 %v4643
    %4734 = vmatprep.subr.mxu0 0.0
    %4735 = vmatpush1.msra.mxu0 %v4644
    %4736 = vmatprep.subr.mxu0 0.0
    %4737 = vmatpush1.msra.mxu0 0.0
    %4738 = vmatprep.subr.mxu0 0.0
    %4739 = vmatpush1.msra.mxu0 0.0
    %4740 = vmatprep.subr.mxu0 0.0
    %4741 = vmatpush1.msra.mxu0 0.0
    %4742 = vmatprep.subr.mxu0 0.0
    %4743 = vmatpush1.msra.mxu0 0.0
    %4744 = vmatprep.subr.mxu0 0.0
    %4745 = vmatpush1.msra.mxu0 0.0
    %4746 = vmatprep.subr.mxu0 0.0
    %4747 = vmatpush1.msra.mxu0 0.0
    %4748 = vmatprep.subr.mxu0 0.0
    %4749 = vmatpush1.msra.mxu0 0.0
    %4750 = vmatprep.subr.mxu0 0.0
    %4751 = vmatpush1.msra.mxu0 0.0
    %4752 = vmatprep.subr.mxu0 0.0
    %4753 = vmatpush1.msra.mxu0 0.0
    %4754 = vmatprep.subr.mxu0 0.0
    %4755 = vmatpush1.msra.mxu0 0.0
    %4756 = vmatprep.subr.mxu0 0.0
    %4757 = vmatpush1.msra.mxu0 0.0
    %4758 = vmatprep.subr.mxu0 0.0
    %4759 = vmatpush1.msra.mxu0 0.0
    %4760 = vmatprep.subr.mxu0 0.0
    %4761 = vmatpush1.msra.mxu0 0.0
    %4762 = vmatprep.subr.mxu0 0.0
    %4763 = vmatpush1.msra.mxu0 0.0
    %4764 = vmatprep.subr.mxu0 0.0
    %4765 = vmatpush1.msra.mxu0 0.0
    %4766 = vmatprep.subr.mxu0 0.0
    %4767 = vmatpush1.msra.mxu0 0.0
    %4768 = vmatprep.subr.mxu0 0.0
    %4769 = vmatpush1.msra.mxu0 0.0
    %4770 = vmatprep.subr.mxu0 0.0
    %4771 = vmatpush1.msra.mxu0 0.0
    %4772 = vmatprep.subr.mxu0 0.0
    %4773 = vmatpush1.msra.mxu0 0.0
    %4774 = vmatprep.subr.mxu0 0.0
    %4775 = vmatpush1.msra.mxu0 0.0
    %4776 = vmatprep.subr.mxu0 0.0
    %4777 = vmatpush1.msra.mxu0 0.0
    %4778 = vmatprep.subr.mxu0 0.0
    %4779 = vmatpush1.msra.mxu0 0.0
    %4780 = vmatprep.subr.mxu0 0.0
    %4781 = vmatpush1.msra.mxu0 0.0
    %4782 = vmatprep.subr.mxu0 0.0
    %4783 = vmatpush1.msra.mxu0 0.0
    %4784 = vmatprep.subr.mxu0 0.0
    %4785 = vmatpush1.msra.mxu0 0.0
    %4786 = vmatprep.subr.mxu0 0.0
    %4787 = vmatpush1.msra.mxu0 0.0
    %4788 = vmatprep.subr.mxu0 0.0
    %4789 = vmatpush1.msra.mxu0 0.0
    %4790 = vmatprep.subr.mxu0 0.0
    %4791 = vmatpush1.msra.mxu0 0.0
    %4792 = vmatprep.subr.mxu0 0.0
    %4793 = vmatpush1.msra.mxu0 0.0
    %4794 = vmatprep.subr.mxu0 0.0
    %4795 = vmatpush1.msra.mxu0 0.0
    %4796 = vmatprep.mubr.f32.mxu0 0.0
    %4797 = vmatmul.mubr.f32.gmra.mrb[0].mxu0 %v4727
    %v4798 = vpop.f32.mrb[0].mxu0
    %v4799 = vadd.f32 %v4718, %v4798
    %v4800 = vpop.f32.mrb[0].mxu0
    %4801 = vmatprep.mubr.f32.mxu0 0.0
    %4802 = vmatmul.mubr.f32.gmra.mrb[0].mxu0 %v4730
    %v4803 = vpop.f32.mrb[0].mxu0
    %v4804 = vadd.f32 %v4723, %v4803
    %v4805 = vpop.f32.mrb[0].mxu0
    %4806 = vdwg.mxu0
    %v4807 = vmul.f32 %v4621, %v4621
    %v4808 = vmul.f32 %v4622, %v4622
    %v4809 = vld [vmem:[%s17] sm:$0xff]
    %v4810 = vld [vmem:[%s17 + $0x8] sm:$0xff]
    %v4811 = vld [vmem:[%s17 + $0x10] sm:$0xff]
    %v4812 = vld [vmem:[%s17 + $0x18] sm:$0xff]
    %v4813 = vld [vmem:[%s17 + $0x20] sm:$0xff]
    %v4814 = vld [vmem:[%s17 + $0x28] sm:$0xff]
    %v4815 = vld [vmem:[%s17 + $0x30] sm:$0xff]
    %v4816 = vld [vmem:[%s17 + $0x38] sm:$0xff]
    %v4818 = vsel %vm411, %v4807, 0
    %v4821 = vsel %vm411, %v4808, 0
    %4823 = vmatprep.subr.mxu0 0.0
    %4824 = vmatpush1.msra.mxu0 %v4809
    %4825 = vmatprep.subr.mxu0 0.0
    %4826 = vmatpush1.msra.mxu0 %v4810
    %4827 = vmatprep.subr.mxu0 0.0
    %4828 = vmatpush1.msra.mxu0 %v4811
    %4829 = vmatprep.subr.mxu0 0.0
    %4830 = vmatpush1.msra.mxu0 %v4812
    %4831 = vmatprep.subr.mxu0 0.0
    %4832 = vmatpush1.msra.mxu0 %v4813
    %4833 = vmatprep.subr.mxu0 0.0
    %4834 = vmatpush1.msra.mxu0 %v4814
    %4835 = vmatprep.subr.mxu0 0.0
    %4836 = vmatpush1.msra.mxu0 %v4815
    %4837 = vmatprep.subr.mxu0 0.0
    %4838 = vmatpush1.msra.mxu0 %v4816
    %4839 = vmatprep.subr.mxu0 0.0
    %4840 = vmatpush1.msra.mxu0 0.0
    %4841 = vmatprep.subr.mxu0 0.0
    %4842 = vmatpush1.msra.mxu0 0.0
    %4843 = vmatprep.subr.mxu0 0.0
    %4844 = vmatpush1.msra.mxu0 0.0
    %4845 = vmatprep.subr.mxu0 0.0
    %4846 = vmatpush1.msra.mxu0 0.0
    %4847 = vmatprep.subr.mxu0 0.0
    %4848 = vmatpush1.msra.mxu0 0.0
    %4849 = vmatprep.subr.mxu0 0.0
    %4850 = vmatpush1.msra.mxu0 0.0
    %4851 = vmatprep.subr.mxu0 0.0
    %4852 = vmatpush1.msra.mxu0 0.0
    %4853 = vmatprep.subr.mxu0 0.0
    %4854 = vmatpush1.msra.mxu0 0.0
    %4855 = vmatprep.subr.mxu0 0.0
    %4856 = vmatpush1.msra.mxu0 0.0
    %4857 = vmatprep.subr.mxu0 0.0
    %4858 = vmatpush1.msra.mxu0 0.0
    %4859 = vmatprep.subr.mxu0 0.0
    %4860 = vmatpush1.msra.mxu0 0.0
    %4861 = vmatprep.subr.mxu0 0.0
    %4862 = vmatpush1.msra.mxu0 0.0
    %4863 = vmatprep.subr.mxu0 0.0
    %4864 = vmatpush1.msra.mxu0 0.0
    %4865 = vmatprep.subr.mxu0 0.0
    %4866 = vmatpush1.msra.mxu0 0.0
    %4867 = vmatprep.subr.mxu0 0.0
    %4868 = vmatpush1.msra.mxu0 0.0
    %4869 = vmatprep.subr.mxu0 0.0
    %4870 = vmatpush1.msra.mxu0 0.0
    %4871 = vmatprep.subr.mxu0 0.0
    %4872 = vmatpush1.msra.mxu0 0.0
    %4873 = vmatprep.subr.mxu0 0.0
    %4874 = vmatpush1.msra.mxu0 0.0
    %4875 = vmatprep.subr.mxu0 0.0
    %4876 = vmatpush1.msra.mxu0 0.0
    %4877 = vmatprep.subr.mxu0 0.0
    %4878 = vmatpush1.msra.mxu0 0.0
    %4879 = vmatprep.subr.mxu0 0.0
    %4880 = vmatpush1.msra.mxu0 0.0
    %4881 = vmatprep.subr.mxu0 0.0
    %4882 = vmatpush1.msra.mxu0 0.0
    %4883 = vmatprep.subr.mxu0 0.0
    %4884 = vmatpush1.msra.mxu0 0.0
    %4885 = vmatprep.subr.mxu0 0.0
    %4886 = vmatpush1.msra.mxu0 0.0
    %4887 = vmatprep.mubr.f32.mxu0 0.0
    %4888 = vmatmul.mubr.f32.gmra.mrb[0].mxu0 %v4818
    %v4889 = vpop.f32.mrb[0].mxu0
    %v4890 = vadd.f32 0.0, %v4889
    %v4891 = vpop.f32.mrb[0].mxu0
    %4892 = vmatprep.mubr.f32.mxu0 0.0
    %4893 = vmatmul.mubr.f32.gmra.mrb[0].mxu0 %v4821
    %v4894 = vpop.f32.mrb[0].mxu0
    %v4895 = vadd.f32 0.0, %v4894
    %v4896 = vpop.f32.mrb[0].mxu0
    %4897 = vdwg.mxu0
    %v4898 = vadd.f32 %v4799, %v4890
    %v4899 = vadd.f32 %v4804, %v4895
    %v4900 = vadd.f32 %v4898, %v1358
    %v4901 = vadd.f32 %v4899, %v1358
    %4904 = vrot.lane.b32.xlu0 %v4900, 3
    %v4905 = vpop.permute.xlu0 %4904
    %4906 = vrot.lane.b32.xlu0 %v4901, 3
    %v4907 = vpop.permute.xlu0 %4906
    %vm4910 = vcmask 31768
    %4911 = vst.msk [vmem:[%s19] sm:$0xff] %vm4910, %v4905
    %4912 = vst.msk [vmem:[%s19 + $0x8] sm:$0xff] %vm4910, %v4907
    %s4913 = scalar_lea.vmem [#allocation16], 48
    %4914 = vst.msk [vmem:[%s4913] sm:$0xff] %vm199, %v4420
    %4915 = vst.msk [vmem:[%s4913 + $0x8] sm:$0xff] %vm199, %v4421
    %4916 = vst.msk [vmem:[#allocation2] sm:$0xff] %vm199, %v4420
    %4917 = vst.msk [vmem:[#allocation2 + $0x8] sm:$0xff] %vm199, %v4421
    %4918 = vst.msk [vmem:[#allocation3] sm:$0xff] %vm494, %v4518
    %4919 = vst.msk [vmem:[#allocation3 + $0x8] sm:$0xff] %vm494, %v4519
    // Predicated region
    $region106: #{tpu_custom_call.1} parent=1 // pred_check
      _
    $region107: #{tpu_custom_call.1} parent=1 // pred_check_branch
      %4921 = sbr.rel (0) target = $region109
    $region108: #{tpu_custom_call.1} parent=1 // pred_region
      _
    $region109: #{tpu_custom_call.1} parent=1 // pred_fallthru
      _
    // Predicated region
    $region110: #{tpu_custom_call.1} parent=1 // pred_check
      _
    $region111: #{tpu_custom_call.1} parent=1 // pred_check_branch
      %4923 = sbr.rel (0) target = $region113
    $region112: #{tpu_custom_call.1} parent=1 // pred_region
      %s4925 = ssub.s32 1024, 1024
      %4926 = vsyncadd [#allocation7], %s4925
      %s4927 = sshll.u32 [#allocation16], 4
      %s4928 = int_to_ptr.vmem [resolvable:$true] %s4927
      %4933 = dma.vmem_to_hbm [thread:$0]  %s4928, 1024, %s20, [#allocation7], 128, 128, 8
    $region113: #{tpu_custom_call.1} parent=1 // pred_fallthru
      _
    // Predicated region
    $region114: #{tpu_custom_call.1} parent=1 // pred_check
      _
    $region115: #{tpu_custom_call.1} parent=1 // pred_check_branch
      %4935 = sbr.rel (0) target = $region117
    $region116: #{tpu_custom_call.1} parent=1 // pred_region
      _
    $region117: #{tpu_custom_call.1} parent=1 // pred_fallthru
      _
    // Predicated region
    $region118: #{tpu_custom_call.1} parent=1 // pred_check
      _
    $region119: #{tpu_custom_call.1} parent=1 // pred_check_branch
      %4937 = sbr.rel (0) target = $region121
    $region120: #{tpu_custom_call.1} parent=1 // pred_region
      %4938 = dma.done [#allocation7], 1024
    $region121: #{tpu_custom_call.1} parent=1 // pred_fallthru
      _
    %4939 = vsyncpa [#allocation6], 1
    %4940 = vsyncpa [#allocation9], 1
    %4941 = vsyncpa [#allocation12], 1
    %4942 = vsyncpa [#allocation15], 1
    %4943 = vsyncpa [#allocation7], 1

</llo_original>
